<compile_context>
chip_gen: v5e
topology: v5e:2x2
jax: 0.10.0
libtpu: 0.0.40
codegen_flags: <defaults>
</compile_context>

<pallas_src>
import jax
import jax.numpy as jnp
from jax import lax
from jax.experimental import pallas as pl
from jax.experimental.pallas import tpu as pltpu


def _vmem_spec():
    return pl.BlockSpec(memory_space=pltpu.MemorySpace.VMEM)


# ----------------------------------------------------------------------------
# Single fused forward kernel
# ----------------------------------------------------------------------------
def make_fused_forward_kernel(*, BP, S, VP, E, F, nk, H, WLEN, PAD_L):
    C1 = F * nk
    H2, H4, H6, H8, H16 = 2 * H, 4 * H, 6 * H, 8 * H, 16 * H
    SB = S * BP
    PAD_R = WLEN - 1 - PAD_L
    f32 = jnp.float32

    def _ln(x, g, b, eps=1e-5):
        mu = jnp.mean(x, axis=-1, keepdims=True)
        var = jnp.mean(jnp.square(x - mu), axis=-1, keepdims=True)
        return (x - mu) * lax.rsqrt(var + eps) * g + b

    def _bilstm_layer(x2d, wih, whh_bd, bias, out_ref=None, pool=False):
        # Hoisted input projection for BOTH directions (one matmul per layer):
        #   gx[t-block, :8H]  = fwd gate contribution at time t   (bwd cols zero)
        #   gx[t-block, 8H:]  = bwd gate contribution at time t   (fwd cols zero)
        # Columns are in the interleaved gate layout [i_f,i_b,f_f,f_b,o_f,o_b,g_f,g_b].
        gx = jnp.dot(x2d, wih, preferred_element_type=f32)          # (S*BP, 16H)
        h = jnp.zeros((BP, H2), f32)                                # [h_f | h_b]
        c = jnp.zeros((BP, H2), f32)                                # [c_f | c_b]
        sum_p = None
        max_p = None
        # Static unroll: S is small; switch to lax.fori_loop if S grows beyond ~16.
        for t in range(S):
            tb = S - 1 - t
            pre = (jnp.dot(h, whh_bd, preferred_element_type=f32)   # one block-diag matmul
                   + bias
                   + gx[t * BP:(t + 1) * BP, 0:H8]
                   + gx[tb * BP:(tb + 1) * BP, H8:H16])             # (BP, 8H) = 1 vreg
            sig = jax.nn.sigmoid(pre)                               # 1 EUP pass, full vreg
            g_g = jnp.tanh(pre[:, H6:H8])                           # (BP, 2H)
            c = sig[:, H2:H4] * c + sig[:, 0:H2] * g_g              # f*c + i*g
            h = sig[:, H4:H6] * jnp.tanh(c)                         # o * tanh(c)
            if out_ref is not None:
                out_ref[t * BP:(t + 1) * BP, 0:H] = h[:, 0:H]       # fwd hidden @ time t
                out_ref[tb * BP:(tb + 1) * BP, H:H2] = h[:, H:H2]   # bwd hidden @ time tb
            if pool:
                sum_p = h if sum_p is None else sum_p + h
                max_p = h if max_p is None else jnp.maximum(max_p, h)
        return sum_p, max_p

    def kernel(tok_ref, emb_ref, wconv_ref, cscale_ref, cshift_ref,
               wih1_ref, whh1_ref, b1_ref,
               wih2_ref, whh2_ref, b2_ref,
               extra_ref,
               fe_w1, fe_b1, fe_g1, fe_be1, fe_w2, fe_b2,
               cl_w1, cl_b1, cl_g1, cl_be1, cl_w2, cl_b2, cl_g2, cl_be2,
               cl_w3, cl_b3,
               out_ref, xp_ref, h1_ref):
        # ---- embedding as one-hot matmul over the 128-padded vocab ----
        tok = tok_ref[...]                                          # (S*BP, 1) int32
        iota_v = lax.broadcasted_iota(jnp.int32, (SB, VP), 1)
        onehot = (iota_v == tok).astype(f32)
        emb = jnp.dot(onehot, emb_ref[...], preferred_element_type=f32)  # (S*BP, E)
        # embedding dropout: identity (eval)

        # ---- Conv1d('same') x nk + folded conv-bias/eval-BN + ReLU ----
        # Padded time-major slab lives in VMEM scratch: each tap slice below is a
        # clean sublane-aligned load feeding the MXU (rows are multiples of BP=8).
        if PAD_L > 0:
            xp_ref[0:PAD_L * BP, :] = jnp.zeros((PAD_L * BP, E), f32)
        xp_ref[PAD_L * BP:PAD_L * BP + SB, :] = emb
        if PAD_R > 0:
            xp_ref[PAD_L * BP + SB:(S + WLEN - 1) * BP, :] = jnp.zeros((PAD_R * BP, E), f32)
        acc = jnp.zeros((SB, C1), f32)
        for j in range(WLEN):
            acc = acc + jnp.dot(xp_ref[j * BP:j * BP + SB, :],
                                wconv_ref[j * E:(j + 1) * E, :],
                                preferred_element_type=f32)
        conv_out = jnp.maximum(acc * cscale_ref[...] + cshift_ref[...], 0.0)  # (S*BP, C1)
        # conv dropout: identity (eval)

        # ---- 2-layer BiLSTM: layer 1 -> VMEM scratch, layer 2 -> in-loop pooling ----
        _bilstm_layer(conv_out, wih1_ref[...], whh1_ref[...], b1_ref[...],
                      out_ref=h1_ref)
        # inter-layer dropout: identity (eval)
        sum_p, max_p = _bilstm_layer(h1_ref[...], wih2_ref[...], whh2_ref[...],
                                     b2_ref[...], pool=True)

        # ---- pooling: cat([0.6*max + 0.4*mean, max]) over time ----
        mean_p = sum_p * (1.0 / S)
        weighted = 0.6 * max_p + 0.4 * mean_p
        text = jnp.concatenate([weighted, max_p], axis=-1)          # (BP, 4H)

        # ---- feature encoder: Linear -> LN -> ReLU -> (Dropout=id) -> Linear ----
        extra = extra_ref[...]                                      # (BP, 17)
        h1e = jnp.dot(extra, fe_w1[...], preferred_element_type=f32) + fe_b1[...]
        h1e = jnp.maximum(_ln(h1e, fe_g1[...], fe_be1[...]), 0.0)
        enc = jnp.dot(h1e, fe_w2[...], preferred_element_type=f32) + fe_b2[...]  # (BP, 2H)

        # ---- classifier: cat([text, enc]) @ W1 expressed as a split matmul ----
        w1 = cl_w1[...]                                             # (6H, 2H)
        z = (jnp.dot(text, w1[0:H4, :], preferred_element_type=f32)
             + jnp.dot(enc, w1[H4:H4 + H2, :], preferred_element_type=f32)
             + cl_b1[...])
        z = jnp.maximum(_ln(z, cl_g1[...], cl_be1[...]), 0.0)
        z = jnp.dot(z, cl_w2[...], preferred_element_type=f32) + cl_b2[...]
        z = jnp.maximum(_ln(z, cl_g2[...], cl_be2[...]), 0.0)
        out_ref[...] = jnp.dot(z, cl_w3[...], preferred_element_type=f32) + cl_b3[...]

    return kernel


# ----------------------------------------------------------------------------
# Forward wrapper: one gridless pallas_call, everything resident in VMEM (<1 MiB).
# ----------------------------------------------------------------------------
def forward(params, tokens, extra_features, k_range, H):
    B, S = tokens.shape
    VP, E = params['embedding'].shape
    nk = len(k_range)
    F = params['conv']['scale'].shape[1] // nk
    assert all(k % 2 == 1 for k in k_range), "'same' padding fold assumes odd kernel sizes"
    pads = [(k - 1) // 2 for k in k_range]
    PAD_L = max(pads)
    WLEN = max(k - p for k, p in zip(k_range, pads)) + PAD_L

    BP = ((B + 7) // 8) * 8            # pad batch to a full sublane tile
    kernel = make_fused_forward_kernel(BP=BP, S=S, VP=VP, E=E, F=F, nk=nk,
                                       H=H, WLEN=WLEN, PAD_L=PAD_L)

    # Pad batch; padded rows carry garbage that is sliced off the logits at the end
    # (pooling/LN are per-row so real rows are unaffected).
    tok_p = jnp.pad(tokens.astype(jnp.int32), ((0, BP - B), (0, 0)))
    extra_p = jnp.pad(extra_features.astype(jnp.float32), ((0, BP - B), (0, 0)))
    tok_sb = jnp.transpose(tok_p).reshape(S * BP, 1)     # time-major rows (t*BP + b)

    l1, l2 = params['lstm']
    fe, cl = params['fe'], params['cl']
    inputs = [
        tok_sb, params['embedding'],
        params['conv']['w'], params['conv']['scale'], params['conv']['shift'],
        l1['wih'], l1['whh'], l1['b'],
        l2['wih'], l2['whh'], l2['b'],
        extra_p,
        fe['w1'], fe['b1'], fe['g1'], fe['be1'], fe['w2'], fe['b2'],
        cl['w1'], cl['b1'], cl['g1'], cl['be1'],
        cl['w2'], cl['b2'], cl['g2'], cl['be2'],
        cl['w3'], cl['b3'],
    ]
    out = pl.pallas_call(
        kernel,
        out_shape=jax.ShapeDtypeStruct((BP, 2), jnp.float32),
        in_specs=[_vmem_spec() for _ in inputs],
        out_specs=_vmem_spec(),
        scratch_shapes=[
            pltpu.VMEM(((S + WLEN - 1) * BP, E), jnp.float32),   # padded conv slab
            pltpu.VMEM((S * BP, 2 * H), jnp.float32),            # layer-1 BiLSTM outputs
        ],
    )(*inputs)
    return out[:B]


# ----------------------------------------------------------------------------
# Deterministic parameter construction (synthetic; matches module shapes).
# All weight restructuring (vocab padding, tap-stacking, BN/bias folding, interleaved
# gate columns, block-diagonal W_hh, fwd|bwd concat of W_ih) happens here, once.
# ----------------------------------------------------------------------------
def init_params(key, vocab_size, E, F, H, k_range, extra_dim=17):
    keys = iter(jax.random.split(key, 128))

    def nrm(shape, scale=0.1):
        return jax.random.normal(next(keys), shape, jnp.float32) * scale

    nk = len(k_range)
    C1 = F * nk
    assert all(k % 2 == 1 for k in k_range), "'same' padding fold assumes odd kernel sizes"
    pads = [(k - 1) // 2 for k in k_range]
    PAD_L = max(pads)
    WLEN = max(k - p for k, p in zip(k_range, pads)) + PAD_L

    # embedding table padded to a lane-aligned vocab
    VP = ((vocab_size + 127) // 128) * 128
    emb = jnp.zeros((VP, E), jnp.float32).at[:vocab_size].set(nrm((vocab_size, E), 0.5))
    params = {'embedding': emb}

    # conv weights stacked per tap as a 2-D (WLEN*E, C1) slab;
    # eval-BatchNorm and conv bias folded into scale/shift: BN(conv + b) = scale*conv + shift'
    w_stack = jnp.zeros((WLEN, E, C1), jnp.float32)
    scales, shifts = [], []
    for ci, (k, p) in enumerate(zip(k_range, pads)):
        w = nrm((k, E, F), 0.2)                  # (tap, C_in, C_out)
        b = nrm((1, F), 0.05)
        gamma = 1.0 + nrm((1, F), 0.05)
        beta = nrm((1, F), 0.05)
        rmean = nrm((1, F), 0.05)
        rvar = jnp.abs(nrm((1, F), 0.1)) + 1.0
        scale = gamma / jnp.sqrt(rvar + 1e-5)
        shift = beta - rmean * scale + scale * b
        off = PAD_L - p                          # tap alignment in the shared window
        w_stack = w_stack.at[off:off + k, :, ci * F:(ci + 1) * F].set(w)
        scales.append(scale)
        shifts.append(shift)
    params['conv'] = {'w': w_stack.reshape(WLEN * E, C1),
                      'scale': jnp.concatenate(scales, axis=1),
                      'shift': jnp.concatenate(shifts, axis=1)}

    # Interleaved gate-column layout: [i_f, i_b, f_f, f_b, o_f, o_b, g_f, g_b], each H wide.
    def interleave(gate_blocks, direction, rows):
        out = jnp.zeros((rows, 8 * H), jnp.float32)
        for slot, w in enumerate(gate_blocks):           # order: (i, f, o, g)
            col = (2 * slot + direction) * H
            out = out.at[:, col:col + H].set(w)
        return out

    lstm_layers = []
    in_dim = C1
    for _ in range(2):
        def gate_set(rows, scale):
            return [nrm((rows, H), scale) for _ in range(4)]        # i, f, o, g

        wih_f, wih_b = gate_set(in_dim, 0.2), gate_set(in_dim, 0.2)
        whh_f, whh_b = gate_set(H, 0.2), gate_set(H, 0.2)
        bf = [nrm((1, H), 0.05) + nrm((1, H), 0.05) for _ in range(4)]   # b_ih + b_hh
        bb = [nrm((1, H), 0.05) + nrm((1, H), 0.05) for _ in range(4)]

        wih = jnp.concatenate([interleave(wih_f, 0, in_dim),
                               interleave(wih_b, 1, in_dim)], axis=1)    # (In, 16H)
        whh_bd = jnp.zeros((2 * H, 8 * H), jnp.float32)
        whh_bd = whh_bd.at[0:H, :].set(interleave(whh_f, 0, H))          # block-diag
        whh_bd = whh_bd.at[H:2 * H, :].set(interleave(whh_b, 1, H))
        bias = interleave(bf, 0, 1) + interleave(bb, 1, 1)               # (1, 8H)

        lstm_layers.append({'wih': wih, 'whh': whh_bd, 'b': bias})
        in_dim = 2 * H
    params['lstm'] = lstm_layers

    params['fe'] = {
        'w1': nrm((extra_dim, H), 0.2), 'b1': nrm((1, H), 0.05),
        'g1': 1.0 + nrm((1, H), 0.05), 'be1': nrm((1, H), 0.05),
        'w2': nrm((H, 2 * H), 0.2), 'b2': nrm((1, 2 * H), 0.05),
    }
    params['cl'] = {
        'w1': nrm((6 * H, 2 * H), 0.2), 'b1': nrm((1, 2 * H), 0.05),
        'g1': 1.0 + nrm((1, 2 * H), 0.05), 'be1': nrm((1, 2 * H), 0.05),
        'w2': nrm((2 * H, H), 0.2), 'b2': nrm((1, H), 0.05),
        'g2': 1.0 + nrm((1, H), 0.05), 'be2': nrm((1, H), 0.05),
        'w3': nrm((H, 2), 0.2), 'b3': nrm((1, 2), 0.05),
    }
    return params


if __name__ == "__main__":
    vocab_size, embedding_dim, num_filters, lstm_hidden = 100, 16, 8, 16
    k_range = (3, 5)
    B, S = 2, 8

    key = jax.random.PRNGKey(0)
    kp, kt, ke = jax.random.split(key, 3)
    params = init_params(kp, vocab_size, embedding_dim, num_filters, lstm_hidden, k_range)
    tokens = jax.random.randint(kt, (B, S), 0, vocab_size, dtype=jnp.int32)
    extra = jax.random.normal(ke, (B, 17), jnp.float32)

    fwd = jax.jit(forward, static_argnums=(3, 4))
    logits = fwd(params, tokens, extra, k_range, lstm_hidden)
    jax.block_until_ready(logits)
    assert logits.shape == (B, 2) and logits.dtype == jnp.float32
    print("KERNEL_OK")
</pallas_src>

<mosaic_0001>
module attributes {stable_mosaic.version = 11 : i64} {
  func.func @kernel(%arg0: memref<64x1xi32, #tpu.memory_space<vmem>>, %arg1: memref<128x16xf32, #tpu.memory_space<vmem>>, %arg2: memref<80x16xf32, #tpu.memory_space<vmem>>, %arg3: memref<1x16xf32, #tpu.memory_space<vmem>>, %arg4: memref<1x16xf32, #tpu.memory_space<vmem>>, %arg5: memref<16x256xf32, #tpu.memory_space<vmem>>, %arg6: memref<32x128xf32, #tpu.memory_space<vmem>>, %arg7: memref<1x128xf32, #tpu.memory_space<vmem>>, %arg8: memref<32x256xf32, #tpu.memory_space<vmem>>, %arg9: memref<32x128xf32, #tpu.memory_space<vmem>>, %arg10: memref<1x128xf32, #tpu.memory_space<vmem>>, %arg11: memref<8x17xf32, #tpu.memory_space<vmem>>, %arg12: memref<17x16xf32, #tpu.memory_space<vmem>>, %arg13: memref<1x16xf32, #tpu.memory_space<vmem>>, %arg14: memref<1x16xf32, #tpu.memory_space<vmem>>, %arg15: memref<1x16xf32, #tpu.memory_space<vmem>>, %arg16: memref<16x32xf32, #tpu.memory_space<vmem>>, %arg17: memref<1x32xf32, #tpu.memory_space<vmem>>, %arg18: memref<96x32xf32, #tpu.memory_space<vmem>>, %arg19: memref<1x32xf32, #tpu.memory_space<vmem>>, %arg20: memref<1x32xf32, #tpu.memory_space<vmem>>, %arg21: memref<1x32xf32, #tpu.memory_space<vmem>>, %arg22: memref<32x16xf32, #tpu.memory_space<vmem>>, %arg23: memref<1x16xf32, #tpu.memory_space<vmem>>, %arg24: memref<1x16xf32, #tpu.memory_space<vmem>>, %arg25: memref<1x16xf32, #tpu.memory_space<vmem>>, %arg26: memref<16x2xf32, #tpu.memory_space<vmem>>, %arg27: memref<1x2xf32, #tpu.memory_space<vmem>>, %arg28: memref<8x2xf32, #tpu.memory_space<vmem>>, %arg29: memref<96x16xf32, #tpu.memory_space<vmem>>, %arg30: memref<64x32xf32, #tpu.memory_space<vmem>>) attributes {dimension_semantics = [], scalar_prefetch = 0 : i64, scratch_operands = 2 : i64, tpu.core_type = #tpu.core_type<tc>} {
    %c0 = arith.constant 0 : index
    %c0_0 = arith.constant 0 : index
    %0 = vector.load %arg0[%c0, %c0_0] : memref<64x1xi32, #tpu.memory_space<vmem>>, vector<64x1xi32>
    %1 = tpu.iota {dimensions = array<i32: 1>} : vector<64x128xi32>
    %2 = vector.broadcast %0 : vector<64x1xi32> to vector<64x128xi32>
    %3 = arith.cmpi eq, %1, %2 : vector<64x128xi32>
    %4 = arith.extui %3 : vector<64x128xi1> to vector<64x128xi32>
    %5 = arith.sitofp %4 : vector<64x128xi32> to vector<64x128xf32>
    %c0_1 = arith.constant 0 : index
    %c0_2 = arith.constant 0 : index
    %6 = vector.load %arg1[%c0_1, %c0_2] : memref<128x16xf32, #tpu.memory_space<vmem>>, vector<128x16xf32>
    %cst = arith.constant dense<0.000000e+00> : vector<64x16xf32>
    %7 = tpu.matmul %5, %6, %cst {dimension_numbers = #tpu.dot_dimension_numbers<[1], [0], [0], [1], [0, 0, 1, 1], [], []>} : vector<64x128xf32>, vector<128x16xf32>, vector<64x16xf32> -> vector<64x16xf32>
    %cst_3 = arith.constant 0.000000e+00 : f32
    %8 = vector.broadcast %cst_3 : f32 to vector<16x16xf32>
    %c0_4 = arith.constant 0 : index
    %c0_5 = arith.constant 0 : index
    %9 = vector.load %arg29[%c0_4, %c0_5] : memref<96x16xf32, #tpu.memory_space<vmem>>, vector<16x16xf32>
    tpu.vector_store %arg29[%c0_4, %c0_5], %8 {strides = array<i32>} : memref<96x16xf32, #tpu.memory_space<vmem>>, vector<16x16xf32>,
    %c16 = arith.constant 16 : index
    %c0_6 = arith.constant 0 : index
    %10 = vector.load %arg29[%c16, %c0_6] : memref<96x16xf32, #tpu.memory_space<vmem>>, vector<64x16xf32>
    tpu.vector_store %arg29[%c16, %c0_6], %7 {strides = array<i32>} : memref<96x16xf32, #tpu.memory_space<vmem>>, vector<64x16xf32>,
    %cst_7 = arith.constant 0.000000e+00 : f32
    %11 = vector.broadcast %cst_7 : f32 to vector<16x16xf32>
    %c80 = arith.constant 80 : index
    %c0_8 = arith.constant 0 : index
    %12 = vector.load %arg29[%c80, %c0_8] : memref<96x16xf32, #tpu.memory_space<vmem>>, vector<16x16xf32>
    tpu.vector_store %arg29[%c80, %c0_8], %11 {strides = array<i32>} : memref<96x16xf32, #tpu.memory_space<vmem>>, vector<16x16xf32>,
    %cst_9 = arith.constant 0.000000e+00 : f32
    %13 = vector.broadcast %cst_9 : f32 to vector<64x16xf32>
    %c0_10 = arith.constant 0 : index
    %c0_11 = arith.constant 0 : index
    %14 = vector.load %arg29[%c0_10, %c0_11] : memref<96x16xf32, #tpu.memory_space<vmem>>, vector<64x16xf32>
    %c0_12 = arith.constant 0 : index
    %c0_13 = arith.constant 0 : index
    %15 = vector.load %arg2[%c0_12, %c0_13] : memref<80x16xf32, #tpu.memory_space<vmem>>, vector<16x16xf32>
    %cst_14 = arith.constant dense<0.000000e+00> : vector<64x16xf32>
    %16 = tpu.matmul %14, %15, %cst_14 {dimension_numbers = #tpu.dot_dimension_numbers<[1], [0], [0], [1], [0, 0, 1, 1], [], []>} : vector<64x16xf32>, vector<16x16xf32>, vector<64x16xf32> -> vector<64x16xf32>
    %17 = arith.addf %13, %16 : vector<64x16xf32>
    %c8 = arith.constant 8 : index
    %c0_15 = arith.constant 0 : index
    %18 = vector.load %arg29[%c8, %c0_15] : memref<96x16xf32, #tpu.memory_space<vmem>>, vector<64x16xf32>
    %c16_16 = arith.constant 16 : index
    %c0_17 = arith.constant 0 : index
    %19 = vector.load %arg2[%c16_16, %c0_17] : memref<80x16xf32, #tpu.memory_space<vmem>>, vector<16x16xf32>
    %cst_18 = arith.constant dense<0.000000e+00> : vector<64x16xf32>
    %20 = tpu.matmul %18, %19, %cst_18 {dimension_numbers = #tpu.dot_dimension_numbers<[1], [0], [0], [1], [0, 0, 1, 1], [], []>} : vector<64x16xf32>, vector<16x16xf32>, vector<64x16xf32> -> vector<64x16xf32>
    %21 = arith.addf %17, %20 : vector<64x16xf32>
    %c16_19 = arith.constant 16 : index
    %c0_20 = arith.constant 0 : index
    %22 = vector.load %arg29[%c16_19, %c0_20] : memref<96x16xf32, #tpu.memory_space<vmem>>, vector<64x16xf32>
    %c32 = arith.constant 32 : index
    %c0_21 = arith.constant 0 : index
    %23 = vector.load %arg2[%c32, %c0_21] : memref<80x16xf32, #tpu.memory_space<vmem>>, vector<16x16xf32>
    %cst_22 = arith.constant dense<0.000000e+00> : vector<64x16xf32>
    %24 = tpu.matmul %22, %23, %cst_22 {dimension_numbers = #tpu.dot_dimension_numbers<[1], [0], [0], [1], [0, 0, 1, 1], [], []>} : vector<64x16xf32>, vector<16x16xf32>, vector<64x16xf32> -> vector<64x16xf32>
    %25 = arith.addf %21, %24 : vector<64x16xf32>
    %c24 = arith.constant 24 : index
    %c0_23 = arith.constant 0 : index
    %26 = vector.load %arg29[%c24, %c0_23] : memref<96x16xf32, #tpu.memory_space<vmem>>, vector<64x16xf32>
    %c48 = arith.constant 48 : index
    %c0_24 = arith.constant 0 : index
    %27 = vector.load %arg2[%c48, %c0_24] : memref<80x16xf32, #tpu.memory_space<vmem>>, vector<16x16xf32>
    %cst_25 = arith.constant dense<0.000000e+00> : vector<64x16xf32>
    %28 = tpu.matmul %26, %27, %cst_25 {dimension_numbers = #tpu.dot_dimension_numbers<[1], [0], [0], [1], [0, 0, 1, 1], [], []>} : vector<64x16xf32>, vector<16x16xf32>, vector<64x16xf32> -> vector<64x16xf32>
    %29 = arith.addf %25, %28 : vector<64x16xf32>
    %c32_26 = arith.constant 32 : index
    %c0_27 = arith.constant 0 : index
    %30 = vector.load %arg29[%c32_26, %c0_27] : memref<96x16xf32, #tpu.memory_space<vmem>>, vector<64x16xf32>
    %c64 = arith.constant 64 : index
    %c0_28 = arith.constant 0 : index
    %31 = vector.load %arg2[%c64, %c0_28] : memref<80x16xf32, #tpu.memory_space<vmem>>, vector<16x16xf32>
    %cst_29 = arith.constant dense<0.000000e+00> : vector<64x16xf32>
    %32 = tpu.matmul %30, %31, %cst_29 {dimension_numbers = #tpu.dot_dimension_numbers<[1], [0], [0], [1], [0, 0, 1, 1], [], []>} : vector<64x16xf32>, vector<16x16xf32>, vector<64x16xf32> -> vector<64x16xf32>
    %33 = arith.addf %29, %32 : vector<64x16xf32>
    %c0_30 = arith.constant 0 : index
    %c0_31 = arith.constant 0 : index
    %34 = vector.load %arg3[%c0_30, %c0_31] : memref<1x16xf32, #tpu.memory_space<vmem>>, vector<1x16xf32>
    %35 = vector.broadcast %34 : vector<1x16xf32> to vector<64x16xf32>
    %36 = arith.mulf %33, %35 : vector<64x16xf32>
    %c0_32 = arith.constant 0 : index
    %c0_33 = arith.constant 0 : index
    %37 = vector.load %arg4[%c0_32, %c0_33] : memref<1x16xf32, #tpu.memory_space<vmem>>, vector<1x16xf32>
    %38 = vector.broadcast %37 : vector<1x16xf32> to vector<64x16xf32>
    %39 = arith.addf %36, %38 : vector<64x16xf32>
    %cst_34 = arith.constant 0.000000e+00 : f32
    %40 = vector.broadcast %cst_34 : f32 to vector<64x16xf32>
    %41 = arith.maximumf %39, %40 : vector<64x16xf32>
    %c0_35 = arith.constant 0 : index
    %c0_36 = arith.constant 0 : index
    %42 = vector.load %arg5[%c0_35, %c0_36] : memref<16x256xf32, #tpu.memory_space<vmem>>, vector<16x256xf32>
    %c0_37 = arith.constant 0 : index
    %c0_38 = arith.constant 0 : index
    %43 = vector.load %arg6[%c0_37, %c0_38] : memref<32x128xf32, #tpu.memory_space<vmem>>, vector<32x128xf32>
    %c0_39 = arith.constant 0 : index
    %c0_40 = arith.constant 0 : index
    %44 = vector.load %arg7[%c0_39, %c0_40] : memref<1x128xf32, #tpu.memory_space<vmem>>, vector<1x128xf32>
    %cst_41 = arith.constant dense<0.000000e+00> : vector<64x256xf32>
    %45 = tpu.matmul %41, %42, %cst_41 {dimension_numbers = #tpu.dot_dimension_numbers<[1], [0], [0], [1], [0, 0, 1, 1], [], []>} : vector<64x16xf32>, vector<16x256xf32>, vector<64x256xf32> -> vector<64x256xf32>
    %cst_42 = arith.constant 0.000000e+00 : f32
    %46 = vector.broadcast %cst_42 : f32 to vector<8x32xf32>
    %cst_43 = arith.constant 0.000000e+00 : f32
    %47 = vector.broadcast %cst_43 : f32 to vector<8x32xf32>
    %cst_44 = arith.constant dense<0.000000e+00> : vector<8x128xf32>
    %48 = tpu.matmul %46, %43, %cst_44 {dimension_numbers = #tpu.dot_dimension_numbers<[1], [0], [0], [1], [0, 0, 1, 1], [], []>} : vector<8x32xf32>, vector<32x128xf32>, vector<8x128xf32> -> vector<8x128xf32>
    %49 = vector.broadcast %44 : vector<1x128xf32> to vector<8x128xf32>
    %50 = arith.addf %48, %49 : vector<8x128xf32>
    %51 = vector.extract_strided_slice %45 {offsets = [0, 0], sizes = [8, 128], strides = [1, 1]} : vector<64x256xf32> to vector<8x128xf32>
    %52 = arith.addf %50, %51 : vector<8x128xf32>
    %53 = vector.extract_strided_slice %45 {offsets = [56, 128], sizes = [8, 128], strides = [1, 1]} : vector<64x256xf32> to vector<8x128xf32>
    %54 = arith.addf %52, %53 : vector<8x128xf32>
    %55 = arith.negf %54 : vector<8x128xf32>
    %56 = math.exp %55 : vector<8x128xf32>
    %cst_45 = arith.constant 1.000000e+00 : f32
    %57 = vector.broadcast %cst_45 : f32 to vector<8x128xf32>
    %58 = arith.addf %57, %56 : vector<8x128xf32>
    %59 = arith.divf %57, %58 : vector<8x128xf32>
    %60 = vector.extract_strided_slice %54 {offsets = [0, 96], sizes = [8, 32], strides = [1, 1]} : vector<8x128xf32> to vector<8x32xf32>
    %61 = math.tanh %60 : vector<8x32xf32>
    %62 = vector.extract_strided_slice %59 {offsets = [0, 32], sizes = [8, 32], strides = [1, 1]} : vector<8x128xf32> to vector<8x32xf32>
    %63 = arith.mulf %62, %47 : vector<8x32xf32>
    %64 = vector.extract_strided_slice %59 {offsets = [0, 0], sizes = [8, 32], strides = [1, 1]} : vector<8x128xf32> to vector<8x32xf32>
    %65 = arith.mulf %64, %61 : vector<8x32xf32>
    %66 = arith.addf %63, %65 : vector<8x32xf32>
    %67 = vector.extract_strided_slice %59 {offsets = [0, 64], sizes = [8, 32], strides = [1, 1]} : vector<8x128xf32> to vector<8x32xf32>
    %68 = math.tanh %66 : vector<8x32xf32>
    %69 = arith.mulf %67, %68 : vector<8x32xf32>
    %70 = vector.extract_strided_slice %69 {offsets = [0, 0], sizes = [8, 16], strides = [1, 1]} : vector<8x32xf32> to vector<8x16xf32>
    %c0_46 = arith.constant 0 : index
    %c0_47 = arith.constant 0 : index
    %71 = vector.load %arg30[%c0_46, %c0_47] : memref<64x32xf32, #tpu.memory_space<vmem>>, vector<8x16xf32>
    tpu.vector_store %arg30[%c0_46, %c0_47], %70 {strides = array<i32>} : memref<64x32xf32, #tpu.memory_space<vmem>>, vector<8x16xf32>,
    %72 = vector.extract_strided_slice %69 {offsets = [0, 16], sizes = [8, 16], strides = [1, 1]} : vector<8x32xf32> to vector<8x16xf32>
    %c56 = arith.constant 56 : index
    %c16_48 = arith.constant 16 : index
    %73 = vector.load %arg30[%c56, %c16_48] : memref<64x32xf32, #tpu.memory_space<vmem>>, vector<8x16xf32>
    tpu.vector_store %arg30[%c56, %c16_48], %72 {strides = array<i32>} : memref<64x32xf32, #tpu.memory_space<vmem>>, vector<8x16xf32>,
    %cst_49 = arith.constant dense<0.000000e+00> : vector<8x128xf32>
    %74 = tpu.matmul %69, %43, %cst_49 {dimension_numbers = #tpu.dot_dimension_numbers<[1], [0], [0], [1], [0, 0, 1, 1], [], []>} : vector<8x32xf32>, vector<32x128xf32>, vector<8x128xf32> -> vector<8x128xf32>
    %75 = vector.broadcast %44 : vector<1x128xf32> to vector<8x128xf32>
    %76 = arith.addf %74, %75 : vector<8x128xf32>
    %77 = vector.extract_strided_slice %45 {offsets = [8, 0], sizes = [8, 128], strides = [1, 1]} : vector<64x256xf32> to vector<8x128xf32>
    %78 = arith.addf %76, %77 : vector<8x128xf32>
    %79 = vector.extract_strided_slice %45 {offsets = [48, 128], sizes = [8, 128], strides = [1, 1]} : vector<64x256xf32> to vector<8x128xf32>
    %80 = arith.addf %78, %79 : vector<8x128xf32>
    %81 = arith.negf %80 : vector<8x128xf32>
    %82 = math.exp %81 : vector<8x128xf32>
    %cst_50 = arith.constant 1.000000e+00 : f32
    %83 = vector.broadcast %cst_50 : f32 to vector<8x128xf32>
    %84 = arith.addf %83, %82 : vector<8x128xf32>
    %85 = arith.divf %83, %84 : vector<8x128xf32>
    %86 = vector.extract_strided_slice %80 {offsets = [0, 96], sizes = [8, 32], strides = [1, 1]} : vector<8x128xf32> to vector<8x32xf32>
    %87 = math.tanh %86 : vector<8x32xf32>
    %88 = vector.extract_strided_slice %85 {offsets = [0, 32], sizes = [8, 32], strides = [1, 1]} : vector<8x128xf32> to vector<8x32xf32>
    %89 = arith.mulf %88, %66 : vector<8x32xf32>
    %90 = vector.extract_strided_slice %85 {offsets = [0, 0], sizes = [8, 32], strides = [1, 1]} : vector<8x128xf32> to vector<8x32xf32>
    %91 = arith.mulf %90, %87 : vector<8x32xf32>
    %92 = arith.addf %89, %91 : vector<8x32xf32>
    %93 = vector.extract_strided_slice %85 {offsets = [0, 64], sizes = [8, 32], strides = [1, 1]} : vector<8x128xf32> to vector<8x32xf32>
    %94 = math.tanh %92 : vector<8x32xf32>
    %95 = arith.mulf %93, %94 : vector<8x32xf32>
    %96 = vector.extract_strided_slice %95 {offsets = [0, 0], sizes = [8, 16], strides = [1, 1]} : vector<8x32xf32> to vector<8x16xf32>
    %c8_51 = arith.constant 8 : index
    %c0_52 = arith.constant 0 : index
    %97 = vector.load %arg30[%c8_51, %c0_52] : memref<64x32xf32, #tpu.memory_space<vmem>>, vector<8x16xf32>
    tpu.vector_store %arg30[%c8_51, %c0_52], %96 {strides = array<i32>} : memref<64x32xf32, #tpu.memory_space<vmem>>, vector<8x16xf32>,
    %98 = vector.extract_strided_slice %95 {offsets = [0, 16], sizes = [8, 16], strides = [1, 1]} : vector<8x32xf32> to vector<8x16xf32>
    %c48_53 = arith.constant 48 : index
    %c16_54 = arith.constant 16 : index
    %99 = vector.load %arg30[%c48_53, %c16_54] : memref<64x32xf32, #tpu.memory_space<vmem>>, vector<8x16xf32>
    tpu.vector_store %arg30[%c48_53, %c16_54], %98 {strides = array<i32>} : memref<64x32xf32, #tpu.memory_space<vmem>>, vector<8x16xf32>,
    %cst_55 = arith.constant dense<0.000000e+00> : vector<8x128xf32>
    %100 = tpu.matmul %95, %43, %cst_55 {dimension_numbers = #tpu.dot_dimension_numbers<[1], [0], [0], [1], [0, 0, 1, 1], [], []>} : vector<8x32xf32>, vector<32x128xf32>, vector<8x128xf32> -> vector<8x128xf32>
    %101 = vector.broadcast %44 : vector<1x128xf32> to vector<8x128xf32>
    %102 = arith.addf %100, %101 : vector<8x128xf32>
    %103 = vector.extract_strided_slice %45 {offsets = [16, 0], sizes = [8, 128], strides = [1, 1]} : vector<64x256xf32> to vector<8x128xf32>
    %104 = arith.addf %102, %103 : vector<8x128xf32>
    %105 = vector.extract_strided_slice %45 {offsets = [40, 128], sizes = [8, 128], strides = [1, 1]} : vector<64x256xf32> to vector<8x128xf32>
    %106 = arith.addf %104, %105 : vector<8x128xf32>
    %107 = arith.negf %106 : vector<8x128xf32>
    %108 = math.exp %107 : vector<8x128xf32>
    %cst_56 = arith.constant 1.000000e+00 : f32
    %109 = vector.broadcast %cst_56 : f32 to vector<8x128xf32>
    %110 = arith.addf %109, %108 : vector<8x128xf32>
    %111 = arith.divf %109, %110 : vector<8x128xf32>
    %112 = vector.extract_strided_slice %106 {offsets = [0, 96], sizes = [8, 32], strides = [1, 1]} : vector<8x128xf32> to vector<8x32xf32>
    %113 = math.tanh %112 : vector<8x32xf32>
    %114 = vector.extract_strided_slice %111 {offsets = [0, 32], sizes = [8, 32], strides = [1, 1]} : vector<8x128xf32> to vector<8x32xf32>
    %115 = arith.mulf %114, %92 : vector<8x32xf32>
    %116 = vector.extract_strided_slice %111 {offsets = [0, 0], sizes = [8, 32], strides = [1, 1]} : vector<8x128xf32> to vector<8x32xf32>
    %117 = arith.mulf %116, %113 : vector<8x32xf32>
    %118 = arith.addf %115, %117 : vector<8x32xf32>
    %119 = vector.extract_strided_slice %111 {offsets = [0, 64], sizes = [8, 32], strides = [1, 1]} : vector<8x128xf32> to vector<8x32xf32>
    %120 = math.tanh %118 : vector<8x32xf32>
    %121 = arith.mulf %119, %120 : vector<8x32xf32>
    %122 = vector.extract_strided_slice %121 {offsets = [0, 0], sizes = [8, 16], strides = [1, 1]} : vector<8x32xf32> to vector<8x16xf32>
    %c16_57 = arith.constant 16 : index
    %c0_58 = arith.constant 0 : index
    %123 = vector.load %arg30[%c16_57, %c0_58] : memref<64x32xf32, #tpu.memory_space<vmem>>, vector<8x16xf32>
    tpu.vector_store %arg30[%c16_57, %c0_58], %122 {strides = array<i32>} : memref<64x32xf32, #tpu.memory_space<vmem>>, vector<8x16xf32>,
    %124 = vector.extract_strided_slice %121 {offsets = [0, 16], sizes = [8, 16], strides = [1, 1]} : vector<8x32xf32> to vector<8x16xf32>
    %c40 = arith.constant 40 : index
    %c16_59 = arith.constant 16 : index
    %125 = vector.load %arg30[%c40, %c16_59] : memref<64x32xf32, #tpu.memory_space<vmem>>, vector<8x16xf32>
    tpu.vector_store %arg30[%c40, %c16_59], %124 {strides = array<i32>} : memref<64x32xf32, #tpu.memory_space<vmem>>, vector<8x16xf32>,
    %cst_60 = arith.constant dense<0.000000e+00> : vector<8x128xf32>
    %126 = tpu.matmul %121, %43, %cst_60 {dimension_numbers = #tpu.dot_dimension_numbers<[1], [0], [0], [1], [0, 0, 1, 1], [], []>} : vector<8x32xf32>, vector<32x128xf32>, vector<8x128xf32> -> vector<8x128xf32>
    %127 = vector.broadcast %44 : vector<1x128xf32> to vector<8x128xf32>
    %128 = arith.addf %126, %127 : vector<8x128xf32>
    %129 = vector.extract_strided_slice %45 {offsets = [24, 0], sizes = [8, 128], strides = [1, 1]} : vector<64x256xf32> to vector<8x128xf32>
    %130 = arith.addf %128, %129 : vector<8x128xf32>
    %131 = vector.extract_strided_slice %45 {offsets = [32, 128], sizes = [8, 128], strides = [1, 1]} : vector<64x256xf32> to vector<8x128xf32>
    %132 = arith.addf %130, %131 : vector<8x128xf32>
    %133 = arith.negf %132 : vector<8x128xf32>
    %134 = math.exp %133 : vector<8x128xf32>
    %cst_61 = arith.constant 1.000000e+00 : f32
    %135 = vector.broadcast %cst_61 : f32 to vector<8x128xf32>
    %136 = arith.addf %135, %134 : vector<8x128xf32>
    %137 = arith.divf %135, %136 : vector<8x128xf32>
    %138 = vector.extract_strided_slice %132 {offsets = [0, 96], sizes = [8, 32], strides = [1, 1]} : vector<8x128xf32> to vector<8x32xf32>
    %139 = math.tanh %138 : vector<8x32xf32>
    %140 = vector.extract_strided_slice %137 {offsets = [0, 32], sizes = [8, 32], strides = [1, 1]} : vector<8x128xf32> to vector<8x32xf32>
    %141 = arith.mulf %140, %118 : vector<8x32xf32>
    %142 = vector.extract_strided_slice %137 {offsets = [0, 0], sizes = [8, 32], strides = [1, 1]} : vector<8x128xf32> to vector<8x32xf32>
    %143 = arith.mulf %142, %139 : vector<8x32xf32>
    %144 = arith.addf %141, %143 : vector<8x32xf32>
    %145 = vector.extract_strided_slice %137 {offsets = [0, 64], sizes = [8, 32], strides = [1, 1]} : vector<8x128xf32> to vector<8x32xf32>
    %146 = math.tanh %144 : vector<8x32xf32>
    %147 = arith.mulf %145, %146 : vector<8x32xf32>
    %148 = vector.extract_strided_slice %147 {offsets = [0, 0], sizes = [8, 16], strides = [1, 1]} : vector<8x32xf32> to vector<8x16xf32>
    %c24_62 = arith.constant 24 : index
    %c0_63 = arith.constant 0 : index
    %149 = vector.load %arg30[%c24_62, %c0_63] : memref<64x32xf32, #tpu.memory_space<vmem>>, vector<8x16xf32>
    tpu.vector_store %arg30[%c24_62, %c0_63], %148 {strides = array<i32>} : memref<64x32xf32, #tpu.memory_space<vmem>>, vector<8x16xf32>,
    %150 = vector.extract_strided_slice %147 {offsets = [0, 16], sizes = [8, 16], strides = [1, 1]} : vector<8x32xf32> to vector<8x16xf32>
    %c32_64 = arith.constant 32 : index
    %c16_65 = arith.constant 16 : index
    %151 = vector.load %arg30[%c32_64, %c16_65] : memref<64x32xf32, #tpu.memory_space<vmem>>, vector<8x16xf32>
    tpu.vector_store %arg30[%c32_64, %c16_65], %150 {strides = array<i32>} : memref<64x32xf32, #tpu.memory_space<vmem>>, vector<8x16xf32>,
    %cst_66 = arith.constant dense<0.000000e+00> : vector<8x128xf32>
    %152 = tpu.matmul %147, %43, %cst_66 {dimension_numbers = #tpu.dot_dimension_numbers<[1], [0], [0], [1], [0, 0, 1, 1], [], []>} : vector<8x32xf32>, vector<32x128xf32>, vector<8x128xf32> -> vector<8x128xf32>
    %153 = vector.broadcast %44 : vector<1x128xf32> to vector<8x128xf32>
    %154 = arith.addf %152, %153 : vector<8x128xf32>
    %155 = vector.extract_strided_slice %45 {offsets = [32, 0], sizes = [8, 128], strides = [1, 1]} : vector<64x256xf32> to vector<8x128xf32>
    %156 = arith.addf %154, %155 : vector<8x128xf32>
    %157 = vector.extract_strided_slice %45 {offsets = [24, 128], sizes = [8, 128], strides = [1, 1]} : vector<64x256xf32> to vector<8x128xf32>
    %158 = arith.addf %156, %157 : vector<8x128xf32>
    %159 = arith.negf %158 : vector<8x128xf32>
    %160 = math.exp %159 : vector<8x128xf32>
    %cst_67 = arith.constant 1.000000e+00 : f32
    %161 = vector.broadcast %cst_67 : f32 to vector<8x128xf32>
    %162 = arith.addf %161, %160 : vector<8x128xf32>
    %163 = arith.divf %161, %162 : vector<8x128xf32>
    %164 = vector.extract_strided_slice %158 {offsets = [0, 96], sizes = [8, 32], strides = [1, 1]} : vector<8x128xf32> to vector<8x32xf32>
    %165 = math.tanh %164 : vector<8x32xf32>
    %166 = vector.extract_strided_slice %163 {offsets = [0, 32], sizes = [8, 32], strides = [1, 1]} : vector<8x128xf32> to vector<8x32xf32>
    %167 = arith.mulf %166, %144 : vector<8x32xf32>
    %168 = vector.extract_strided_slice %163 {offsets = [0, 0], sizes = [8, 32], strides = [1, 1]} : vector<8x128xf32> to vector<8x32xf32>
    %169 = arith.mulf %168, %165 : vector<8x32xf32>
    %170 = arith.addf %167, %169 : vector<8x32xf32>
    %171 = vector.extract_strided_slice %163 {offsets = [0, 64], sizes = [8, 32], strides = [1, 1]} : vector<8x128xf32> to vector<8x32xf32>
    %172 = math.tanh %170 : vector<8x32xf32>
    %173 = arith.mulf %171, %172 : vector<8x32xf32>
    %174 = vector.extract_strided_slice %173 {offsets = [0, 0], sizes = [8, 16], strides = [1, 1]} : vector<8x32xf32> to vector<8x16xf32>
    %c32_68 = arith.constant 32 : index
    %c0_69 = arith.constant 0 : index
    %175 = vector.load %arg30[%c32_68, %c0_69] : memref<64x32xf32, #tpu.memory_space<vmem>>, vector<8x16xf32>
    tpu.vector_store %arg30[%c32_68, %c0_69], %174 {strides = array<i32>} : memref<64x32xf32, #tpu.memory_space<vmem>>, vector<8x16xf32>,
    %176 = vector.extract_strided_slice %173 {offsets = [0, 16], sizes = [8, 16], strides = [1, 1]} : vector<8x32xf32> to vector<8x16xf32>
    %c24_70 = arith.constant 24 : index
    %c16_71 = arith.constant 16 : index
    %177 = vector.load %arg30[%c24_70, %c16_71] : memref<64x32xf32, #tpu.memory_space<vmem>>, vector<8x16xf32>
    tpu.vector_store %arg30[%c24_70, %c16_71], %176 {strides = array<i32>} : memref<64x32xf32, #tpu.memory_space<vmem>>, vector<8x16xf32>,
    %cst_72 = arith.constant dense<0.000000e+00> : vector<8x128xf32>
    %178 = tpu.matmul %173, %43, %cst_72 {dimension_numbers = #tpu.dot_dimension_numbers<[1], [0], [0], [1], [0, 0, 1, 1], [], []>} : vector<8x32xf32>, vector<32x128xf32>, vector<8x128xf32> -> vector<8x128xf32>
    %179 = vector.broadcast %44 : vector<1x128xf32> to vector<8x128xf32>
    %180 = arith.addf %178, %179 : vector<8x128xf32>
    %181 = vector.extract_strided_slice %45 {offsets = [40, 0], sizes = [8, 128], strides = [1, 1]} : vector<64x256xf32> to vector<8x128xf32>
    %182 = arith.addf %180, %181 : vector<8x128xf32>
    %183 = vector.extract_strided_slice %45 {offsets = [16, 128], sizes = [8, 128], strides = [1, 1]} : vector<64x256xf32> to vector<8x128xf32>
    %184 = arith.addf %182, %183 : vector<8x128xf32>
    %185 = arith.negf %184 : vector<8x128xf32>
    %186 = math.exp %185 : vector<8x128xf32>
    %cst_73 = arith.constant 1.000000e+00 : f32
    %187 = vector.broadcast %cst_73 : f32 to vector<8x128xf32>
    %188 = arith.addf %187, %186 : vector<8x128xf32>
    %189 = arith.divf %187, %188 : vector<8x128xf32>
    %190 = vector.extract_strided_slice %184 {offsets = [0, 96], sizes = [8, 32], strides = [1, 1]} : vector<8x128xf32> to vector<8x32xf32>
    %191 = math.tanh %190 : vector<8x32xf32>
    %192 = vector.extract_strided_slice %189 {offsets = [0, 32], sizes = [8, 32], strides = [1, 1]} : vector<8x128xf32> to vector<8x32xf32>
    %193 = arith.mulf %192, %170 : vector<8x32xf32>
    %194 = vector.extract_strided_slice %189 {offsets = [0, 0], sizes = [8, 32], strides = [1, 1]} : vector<8x128xf32> to vector<8x32xf32>
    %195 = arith.mulf %194, %191 : vector<8x32xf32>
    %196 = arith.addf %193, %195 : vector<8x32xf32>
    %197 = vector.extract_strided_slice %189 {offsets = [0, 64], sizes = [8, 32], strides = [1, 1]} : vector<8x128xf32> to vector<8x32xf32>
    %198 = math.tanh %196 : vector<8x32xf32>
    %199 = arith.mulf %197, %198 : vector<8x32xf32>
    %200 = vector.extract_strided_slice %199 {offsets = [0, 0], sizes = [8, 16], strides = [1, 1]} : vector<8x32xf32> to vector<8x16xf32>
    %c40_74 = arith.constant 40 : index
    %c0_75 = arith.constant 0 : index
    %201 = vector.load %arg30[%c40_74, %c0_75] : memref<64x32xf32, #tpu.memory_space<vmem>>, vector<8x16xf32>
    tpu.vector_store %arg30[%c40_74, %c0_75], %200 {strides = array<i32>} : memref<64x32xf32, #tpu.memory_space<vmem>>, vector<8x16xf32>,
    %202 = vector.extract_strided_slice %199 {offsets = [0, 16], sizes = [8, 16], strides = [1, 1]} : vector<8x32xf32> to vector<8x16xf32>
    %c16_76 = arith.constant 16 : index
    %c16_77 = arith.constant 16 : index
    %203 = vector.load %arg30[%c16_76, %c16_77] : memref<64x32xf32, #tpu.memory_space<vmem>>, vector<8x16xf32>
    tpu.vector_store %arg30[%c16_76, %c16_77], %202 {strides = array<i32>} : memref<64x32xf32, #tpu.memory_space<vmem>>, vector<8x16xf32>,
    %cst_78 = arith.constant dense<0.000000e+00> : vector<8x128xf32>
    %204 = tpu.matmul %199, %43, %cst_78 {dimension_numbers = #tpu.dot_dimension_numbers<[1], [0], [0], [1], [0, 0, 1, 1], [], []>} : vector<8x32xf32>, vector<32x128xf32>, vector<8x128xf32> -> vector<8x128xf32>
    %205 = vector.broadcast %44 : vector<1x128xf32> to vector<8x128xf32>
    %206 = arith.addf %204, %205 : vector<8x128xf32>
    %207 = vector.extract_strided_slice %45 {offsets = [48, 0], sizes = [8, 128], strides = [1, 1]} : vector<64x256xf32> to vector<8x128xf32>
    %208 = arith.addf %206, %207 : vector<8x128xf32>
    %209 = vector.extract_strided_slice %45 {offsets = [8, 128], sizes = [8, 128], strides = [1, 1]} : vector<64x256xf32> to vector<8x128xf32>
    %210 = arith.addf %208, %209 : vector<8x128xf32>
    %211 = arith.negf %210 : vector<8x128xf32>
    %212 = math.exp %211 : vector<8x128xf32>
    %cst_79 = arith.constant 1.000000e+00 : f32
    %213 = vector.broadcast %cst_79 : f32 to vector<8x128xf32>
    %214 = arith.addf %213, %212 : vector<8x128xf32>
    %215 = arith.divf %213, %214 : vector<8x128xf32>
    %216 = vector.extract_strided_slice %210 {offsets = [0, 96], sizes = [8, 32], strides = [1, 1]} : vector<8x128xf32> to vector<8x32xf32>
    %217 = math.tanh %216 : vector<8x32xf32>
    %218 = vector.extract_strided_slice %215 {offsets = [0, 32], sizes = [8, 32], strides = [1, 1]} : vector<8x128xf32> to vector<8x32xf32>
    %219 = arith.mulf %218, %196 : vector<8x32xf32>
    %220 = vector.extract_strided_slice %215 {offsets = [0, 0], sizes = [8, 32], strides = [1, 1]} : vector<8x128xf32> to vector<8x32xf32>
    %221 = arith.mulf %220, %217 : vector<8x32xf32>
    %222 = arith.addf %219, %221 : vector<8x32xf32>
    %223 = vector.extract_strided_slice %215 {offsets = [0, 64], sizes = [8, 32], strides = [1, 1]} : vector<8x128xf32> to vector<8x32xf32>
    %224 = math.tanh %222 : vector<8x32xf32>
    %225 = arith.mulf %223, %224 : vector<8x32xf32>
    %226 = vector.extract_strided_slice %225 {offsets = [0, 0], sizes = [8, 16], strides = [1, 1]} : vector<8x32xf32> to vector<8x16xf32>
    %c48_80 = arith.constant 48 : index
    %c0_81 = arith.constant 0 : index
    %227 = vector.load %arg30[%c48_80, %c0_81] : memref<64x32xf32, #tpu.memory_space<vmem>>, vector<8x16xf32>
    tpu.vector_store %arg30[%c48_80, %c0_81], %226 {strides = array<i32>} : memref<64x32xf32, #tpu.memory_space<vmem>>, vector<8x16xf32>,
    %228 = vector.extract_strided_slice %225 {offsets = [0, 16], sizes = [8, 16], strides = [1, 1]} : vector<8x32xf32> to vector<8x16xf32>
    %c8_82 = arith.constant 8 : index
    %c16_83 = arith.constant 16 : index
    %229 = vector.load %arg30[%c8_82, %c16_83] : memref<64x32xf32, #tpu.memory_space<vmem>>, vector<8x16xf32>
    tpu.vector_store %arg30[%c8_82, %c16_83], %228 {strides = array<i32>} : memref<64x32xf32, #tpu.memory_space<vmem>>, vector<8x16xf32>,
    %cst_84 = arith.constant dense<0.000000e+00> : vector<8x128xf32>
    %230 = tpu.matmul %225, %43, %cst_84 {dimension_numbers = #tpu.dot_dimension_numbers<[1], [0], [0], [1], [0, 0, 1, 1], [], []>} : vector<8x32xf32>, vector<32x128xf32>, vector<8x128xf32> -> vector<8x128xf32>
    %231 = vector.broadcast %44 : vector<1x128xf32> to vector<8x128xf32>
    %232 = arith.addf %230, %231 : vector<8x128xf32>
    %233 = vector.extract_strided_slice %45 {offsets = [56, 0], sizes = [8, 128], strides = [1, 1]} : vector<64x256xf32> to vector<8x128xf32>
    %234 = arith.addf %232, %233 : vector<8x128xf32>
    %235 = vector.extract_strided_slice %45 {offsets = [0, 128], sizes = [8, 128], strides = [1, 1]} : vector<64x256xf32> to vector<8x128xf32>
    %236 = arith.addf %234, %235 : vector<8x128xf32>
    %237 = arith.negf %236 : vector<8x128xf32>
    %238 = math.exp %237 : vector<8x128xf32>
    %cst_85 = arith.constant 1.000000e+00 : f32
    %239 = vector.broadcast %cst_85 : f32 to vector<8x128xf32>
    %240 = arith.addf %239, %238 : vector<8x128xf32>
    %241 = arith.divf %239, %240 : vector<8x128xf32>
    %242 = vector.extract_strided_slice %236 {offsets = [0, 96], sizes = [8, 32], strides = [1, 1]} : vector<8x128xf32> to vector<8x32xf32>
    %243 = math.tanh %242 : vector<8x32xf32>
    %244 = vector.extract_strided_slice %241 {offsets = [0, 32], sizes = [8, 32], strides = [1, 1]} : vector<8x128xf32> to vector<8x32xf32>
    %245 = arith.mulf %244, %222 : vector<8x32xf32>
    %246 = vector.extract_strided_slice %241 {offsets = [0, 0], sizes = [8, 32], strides = [1, 1]} : vector<8x128xf32> to vector<8x32xf32>
    %247 = arith.mulf %246, %243 : vector<8x32xf32>
    %248 = arith.addf %245, %247 : vector<8x32xf32>
    %249 = vector.extract_strided_slice %241 {offsets = [0, 64], sizes = [8, 32], strides = [1, 1]} : vector<8x128xf32> to vector<8x32xf32>
    %250 = math.tanh %248 : vector<8x32xf32>
    %251 = arith.mulf %249, %250 : vector<8x32xf32>
    %252 = vector.extract_strided_slice %251 {offsets = [0, 0], sizes = [8, 16], strides = [1, 1]} : vector<8x32xf32> to vector<8x16xf32>
    %c56_86 = arith.constant 56 : index
    %c0_87 = arith.constant 0 : index
    %253 = vector.load %arg30[%c56_86, %c0_87] : memref<64x32xf32, #tpu.memory_space<vmem>>, vector<8x16xf32>
    tpu.vector_store %arg30[%c56_86, %c0_87], %252 {strides = array<i32>} : memref<64x32xf32, #tpu.memory_space<vmem>>, vector<8x16xf32>,
    %254 = vector.extract_strided_slice %251 {offsets = [0, 16], sizes = [8, 16], strides = [1, 1]} : vector<8x32xf32> to vector<8x16xf32>
    %c0_88 = arith.constant 0 : index
    %c16_89 = arith.constant 16 : index
    %255 = vector.load %arg30[%c0_88, %c16_89] : memref<64x32xf32, #tpu.memory_space<vmem>>, vector<8x16xf32>
    tpu.vector_store %arg30[%c0_88, %c16_89], %254 {strides = array<i32>} : memref<64x32xf32, #tpu.memory_space<vmem>>, vector<8x16xf32>,
    %c0_90 = arith.constant 0 : index
    %c0_91 = arith.constant 0 : index
    %256 = vector.load %arg30[%c0_90, %c0_91] : memref<64x32xf32, #tpu.memory_space<vmem>>, vector<64x32xf32>
    %c0_92 = arith.constant 0 : index
    %c0_93 = arith.constant 0 : index
    %257 = vector.load %arg8[%c0_92, %c0_93] : memref<32x256xf32, #tpu.memory_space<vmem>>, vector<32x256xf32>
    %c0_94 = arith.constant 0 : index
    %c0_95 = arith.constant 0 : index
    %258 = vector.load %arg9[%c0_94, %c0_95] : memref<32x128xf32, #tpu.memory_space<vmem>>, vector<32x128xf32>
    %c0_96 = arith.constant 0 : index
    %c0_97 = arith.constant 0 : index
    %259 = vector.load %arg10[%c0_96, %c0_97] : memref<1x128xf32, #tpu.memory_space<vmem>>, vector<1x128xf32>
    %cst_98 = arith.constant dense<0.000000e+00> : vector<64x256xf32>
    %260 = tpu.matmul %256, %257, %cst_98 {dimension_numbers = #tpu.dot_dimension_numbers<[1], [0], [0], [1], [0, 0, 1, 1], [], []>} : vector<64x32xf32>, vector<32x256xf32>, vector<64x256xf32> -> vector<64x256xf32>
    %cst_99 = arith.constant 0.000000e+00 : f32
    %261 = vector.broadcast %cst_99 : f32 to vector<8x32xf32>
    %cst_100 = arith.constant 0.000000e+00 : f32
    %262 = vector.broadcast %cst_100 : f32 to vector<8x32xf32>
    %cst_101 = arith.constant dense<0.000000e+00> : vector<8x128xf32>
    %263 = tpu.matmul %261, %258, %cst_101 {dimension_numbers = #tpu.dot_dimension_numbers<[1], [0], [0], [1], [0, 0, 1, 1], [], []>} : vector<8x32xf32>, vector<32x128xf32>, vector<8x128xf32> -> vector<8x128xf32>
    %264 = vector.broadcast %259 : vector<1x128xf32> to vector<8x128xf32>
    %265 = arith.addf %263, %264 : vector<8x128xf32>
    %266 = vector.extract_strided_slice %260 {offsets = [0, 0], sizes = [8, 128], strides = [1, 1]} : vector<64x256xf32> to vector<8x128xf32>
    %267 = arith.addf %265, %266 : vector<8x128xf32>
    %268 = vector.extract_strided_slice %260 {offsets = [56, 128], sizes = [8, 128], strides = [1, 1]} : vector<64x256xf32> to vector<8x128xf32>
    %269 = arith.addf %267, %268 : vector<8x128xf32>
    %270 = arith.negf %269 : vector<8x128xf32>
    %271 = math.exp %270 : vector<8x128xf32>
    %cst_102 = arith.constant 1.000000e+00 : f32
    %272 = vector.broadcast %cst_102 : f32 to vector<8x128xf32>
    %273 = arith.addf %272, %271 : vector<8x128xf32>
    %274 = arith.divf %272, %273 : vector<8x128xf32>
    %275 = vector.extract_strided_slice %269 {offsets = [0, 96], sizes = [8, 32], strides = [1, 1]} : vector<8x128xf32> to vector<8x32xf32>
    %276 = math.tanh %275 : vector<8x32xf32>
    %277 = vector.extract_strided_slice %274 {offsets = [0, 32], sizes = [8, 32], strides = [1, 1]} : vector<8x128xf32> to vector<8x32xf32>
    %278 = arith.mulf %277, %262 : vector<8x32xf32>
    %279 = vector.extract_strided_slice %274 {offsets = [0, 0], sizes = [8, 32], strides = [1, 1]} : vector<8x128xf32> to vector<8x32xf32>
    %280 = arith.mulf %279, %276 : vector<8x32xf32>
    %281 = arith.addf %278, %280 : vector<8x32xf32>
    %282 = vector.extract_strided_slice %274 {offsets = [0, 64], sizes = [8, 32], strides = [1, 1]} : vector<8x128xf32> to vector<8x32xf32>
    %283 = math.tanh %281 : vector<8x32xf32>
    %284 = arith.mulf %282, %283 : vector<8x32xf32>
    %cst_103 = arith.constant dense<0.000000e+00> : vector<8x128xf32>
    %285 = tpu.matmul %284, %258, %cst_103 {dimension_numbers = #tpu.dot_dimension_numbers<[1], [0], [0], [1], [0, 0, 1, 1], [], []>} : vector<8x32xf32>, vector<32x128xf32>, vector<8x128xf32> -> vector<8x128xf32>
    %286 = vector.broadcast %259 : vector<1x128xf32> to vector<8x128xf32>
    %287 = arith.addf %285, %286 : vector<8x128xf32>
    %288 = vector.extract_strided_slice %260 {offsets = [8, 0], sizes = [8, 128], strides = [1, 1]} : vector<64x256xf32> to vector<8x128xf32>
    %289 = arith.addf %287, %288 : vector<8x128xf32>
    %290 = vector.extract_strided_slice %260 {offsets = [48, 128], sizes = [8, 128], strides = [1, 1]} : vector<64x256xf32> to vector<8x128xf32>
    %291 = arith.addf %289, %290 : vector<8x128xf32>
    %292 = arith.negf %291 : vector<8x128xf32>
    %293 = math.exp %292 : vector<8x128xf32>
    %cst_104 = arith.constant 1.000000e+00 : f32
    %294 = vector.broadcast %cst_104 : f32 to vector<8x128xf32>
    %295 = arith.addf %294, %293 : vector<8x128xf32>
    %296 = arith.divf %294, %295 : vector<8x128xf32>
    %297 = vector.extract_strided_slice %291 {offsets = [0, 96], sizes = [8, 32], strides = [1, 1]} : vector<8x128xf32> to vector<8x32xf32>
    %298 = math.tanh %297 : vector<8x32xf32>
    %299 = vector.extract_strided_slice %296 {offsets = [0, 32], sizes = [8, 32], strides = [1, 1]} : vector<8x128xf32> to vector<8x32xf32>
    %300 = arith.mulf %299, %281 : vector<8x32xf32>
    %301 = vector.extract_strided_slice %296 {offsets = [0, 0], sizes = [8, 32], strides = [1, 1]} : vector<8x128xf32> to vector<8x32xf32>
    %302 = arith.mulf %301, %298 : vector<8x32xf32>
    %303 = arith.addf %300, %302 : vector<8x32xf32>
    %304 = vector.extract_strided_slice %296 {offsets = [0, 64], sizes = [8, 32], strides = [1, 1]} : vector<8x128xf32> to vector<8x32xf32>
    %305 = math.tanh %303 : vector<8x32xf32>
    %306 = arith.mulf %304, %305 : vector<8x32xf32>
    %307 = arith.addf %284, %306 : vector<8x32xf32>
    %308 = arith.maximumf %284, %306 : vector<8x32xf32>
    %cst_105 = arith.constant dense<0.000000e+00> : vector<8x128xf32>
    %309 = tpu.matmul %306, %258, %cst_105 {dimension_numbers = #tpu.dot_dimension_numbers<[1], [0], [0], [1], [0, 0, 1, 1], [], []>} : vector<8x32xf32>, vector<32x128xf32>, vector<8x128xf32> -> vector<8x128xf32>
    %310 = vector.broadcast %259 : vector<1x128xf32> to vector<8x128xf32>
    %311 = arith.addf %309, %310 : vector<8x128xf32>
    %312 = vector.extract_strided_slice %260 {offsets = [16, 0], sizes = [8, 128], strides = [1, 1]} : vector<64x256xf32> to vector<8x128xf32>
    %313 = arith.addf %311, %312 : vector<8x128xf32>
    %314 = vector.extract_strided_slice %260 {offsets = [40, 128], sizes = [8, 128], strides = [1, 1]} : vector<64x256xf32> to vector<8x128xf32>
    %315 = arith.addf %313, %314 : vector<8x128xf32>
    %316 = arith.negf %315 : vector<8x128xf32>
    %317 = math.exp %316 : vector<8x128xf32>
    %cst_106 = arith.constant 1.000000e+00 : f32
    %318 = vector.broadcast %cst_106 : f32 to vector<8x128xf32>
    %319 = arith.addf %318, %317 : vector<8x128xf32>
    %320 = arith.divf %318, %319 : vector<8x128xf32>
    %321 = vector.extract_strided_slice %315 {offsets = [0, 96], sizes = [8, 32], strides = [1, 1]} : vector<8x128xf32> to vector<8x32xf32>
    %322 = math.tanh %321 : vector<8x32xf32>
    %323 = vector.extract_strided_slice %320 {offsets = [0, 32], sizes = [8, 32], strides = [1, 1]} : vector<8x128xf32> to vector<8x32xf32>
    %324 = arith.mulf %323, %303 : vector<8x32xf32>
    %325 = vector.extract_strided_slice %320 {offsets = [0, 0], sizes = [8, 32], strides = [1, 1]} : vector<8x128xf32> to vector<8x32xf32>
    %326 = arith.mulf %325, %322 : vector<8x32xf32>
    %327 = arith.addf %324, %326 : vector<8x32xf32>
    %328 = vector.extract_strided_slice %320 {offsets = [0, 64], sizes = [8, 32], strides = [1, 1]} : vector<8x128xf32> to vector<8x32xf32>
    %329 = math.tanh %327 : vector<8x32xf32>
    %330 = arith.mulf %328, %329 : vector<8x32xf32>
    %331 = arith.addf %307, %330 : vector<8x32xf32>
    %332 = arith.maximumf %308, %330 : vector<8x32xf32>
    %cst_107 = arith.constant dense<0.000000e+00> : vector<8x128xf32>
    %333 = tpu.matmul %330, %258, %cst_107 {dimension_numbers = #tpu.dot_dimension_numbers<[1], [0], [0], [1], [0, 0, 1, 1], [], []>} : vector<8x32xf32>, vector<32x128xf32>, vector<8x128xf32> -> vector<8x128xf32>
    %334 = vector.broadcast %259 : vector<1x128xf32> to vector<8x128xf32>
    %335 = arith.addf %333, %334 : vector<8x128xf32>
    %336 = vector.extract_strided_slice %260 {offsets = [24, 0], sizes = [8, 128], strides = [1, 1]} : vector<64x256xf32> to vector<8x128xf32>
    %337 = arith.addf %335, %336 : vector<8x128xf32>
    %338 = vector.extract_strided_slice %260 {offsets = [32, 128], sizes = [8, 128], strides = [1, 1]} : vector<64x256xf32> to vector<8x128xf32>
    %339 = arith.addf %337, %338 : vector<8x128xf32>
    %340 = arith.negf %339 : vector<8x128xf32>
    %341 = math.exp %340 : vector<8x128xf32>
    %cst_108 = arith.constant 1.000000e+00 : f32
    %342 = vector.broadcast %cst_108 : f32 to vector<8x128xf32>
    %343 = arith.addf %342, %341 : vector<8x128xf32>
    %344 = arith.divf %342, %343 : vector<8x128xf32>
    %345 = vector.extract_strided_slice %339 {offsets = [0, 96], sizes = [8, 32], strides = [1, 1]} : vector<8x128xf32> to vector<8x32xf32>
    %346 = math.tanh %345 : vector<8x32xf32>
    %347 = vector.extract_strided_slice %344 {offsets = [0, 32], sizes = [8, 32], strides = [1, 1]} : vector<8x128xf32> to vector<8x32xf32>
    %348 = arith.mulf %347, %327 : vector<8x32xf32>
    %349 = vector.extract_strided_slice %344 {offsets = [0, 0], sizes = [8, 32], strides = [1, 1]} : vector<8x128xf32> to vector<8x32xf32>
    %350 = arith.mulf %349, %346 : vector<8x32xf32>
    %351 = arith.addf %348, %350 : vector<8x32xf32>
    %352 = vector.extract_strided_slice %344 {offsets = [0, 64], sizes = [8, 32], strides = [1, 1]} : vector<8x128xf32> to vector<8x32xf32>
    %353 = math.tanh %351 : vector<8x32xf32>
    %354 = arith.mulf %352, %353 : vector<8x32xf32>
    %355 = arith.addf %331, %354 : vector<8x32xf32>
    %356 = arith.maximumf %332, %354 : vector<8x32xf32>
    %cst_109 = arith.constant dense<0.000000e+00> : vector<8x128xf32>
    %357 = tpu.matmul %354, %258, %cst_109 {dimension_numbers = #tpu.dot_dimension_numbers<[1], [0], [0], [1], [0, 0, 1, 1], [], []>} : vector<8x32xf32>, vector<32x128xf32>, vector<8x128xf32> -> vector<8x128xf32>
    %358 = vector.broadcast %259 : vector<1x128xf32> to vector<8x128xf32>
    %359 = arith.addf %357, %358 : vector<8x128xf32>
    %360 = vector.extract_strided_slice %260 {offsets = [32, 0], sizes = [8, 128], strides = [1, 1]} : vector<64x256xf32> to vector<8x128xf32>
    %361 = arith.addf %359, %360 : vector<8x128xf32>
    %362 = vector.extract_strided_slice %260 {offsets = [24, 128], sizes = [8, 128], strides = [1, 1]} : vector<64x256xf32> to vector<8x128xf32>
    %363 = arith.addf %361, %362 : vector<8x128xf32>
    %364 = arith.negf %363 : vector<8x128xf32>
    %365 = math.exp %364 : vector<8x128xf32>
    %cst_110 = arith.constant 1.000000e+00 : f32
    %366 = vector.broadcast %cst_110 : f32 to vector<8x128xf32>
    %367 = arith.addf %366, %365 : vector<8x128xf32>
    %368 = arith.divf %366, %367 : vector<8x128xf32>
    %369 = vector.extract_strided_slice %363 {offsets = [0, 96], sizes = [8, 32], strides = [1, 1]} : vector<8x128xf32> to vector<8x32xf32>
    %370 = math.tanh %369 : vector<8x32xf32>
    %371 = vector.extract_strided_slice %368 {offsets = [0, 32], sizes = [8, 32], strides = [1, 1]} : vector<8x128xf32> to vector<8x32xf32>
    %372 = arith.mulf %371, %351 : vector<8x32xf32>
    %373 = vector.extract_strided_slice %368 {offsets = [0, 0], sizes = [8, 32], strides = [1, 1]} : vector<8x128xf32> to vector<8x32xf32>
    %374 = arith.mulf %373, %370 : vector<8x32xf32>
    %375 = arith.addf %372, %374 : vector<8x32xf32>
    %376 = vector.extract_strided_slice %368 {offsets = [0, 64], sizes = [8, 32], strides = [1, 1]} : vector<8x128xf32> to vector<8x32xf32>
    %377 = math.tanh %375 : vector<8x32xf32>
    %378 = arith.mulf %376, %377 : vector<8x32xf32>
    %379 = arith.addf %355, %378 : vector<8x32xf32>
    %380 = arith.maximumf %356, %378 : vector<8x32xf32>
    %cst_111 = arith.constant dense<0.000000e+00> : vector<8x128xf32>
    %381 = tpu.matmul %378, %258, %cst_111 {dimension_numbers = #tpu.dot_dimension_numbers<[1], [0], [0], [1], [0, 0, 1, 1], [], []>} : vector<8x32xf32>, vector<32x128xf32>, vector<8x128xf32> -> vector<8x128xf32>
    %382 = vector.broadcast %259 : vector<1x128xf32> to vector<8x128xf32>
    %383 = arith.addf %381, %382 : vector<8x128xf32>
    %384 = vector.extract_strided_slice %260 {offsets = [40, 0], sizes = [8, 128], strides = [1, 1]} : vector<64x256xf32> to vector<8x128xf32>
    %385 = arith.addf %383, %384 : vector<8x128xf32>
    %386 = vector.extract_strided_slice %260 {offsets = [16, 128], sizes = [8, 128], strides = [1, 1]} : vector<64x256xf32> to vector<8x128xf32>
    %387 = arith.addf %385, %386 : vector<8x128xf32>
    %388 = arith.negf %387 : vector<8x128xf32>
    %389 = math.exp %388 : vector<8x128xf32>
    %cst_112 = arith.constant 1.000000e+00 : f32
    %390 = vector.broadcast %cst_112 : f32 to vector<8x128xf32>
    %391 = arith.addf %390, %389 : vector<8x128xf32>
    %392 = arith.divf %390, %391 : vector<8x128xf32>
    %393 = vector.extract_strided_slice %387 {offsets = [0, 96], sizes = [8, 32], strides = [1, 1]} : vector<8x128xf32> to vector<8x32xf32>
    %394 = math.tanh %393 : vector<8x32xf32>
    %395 = vector.extract_strided_slice %392 {offsets = [0, 32], sizes = [8, 32], strides = [1, 1]} : vector<8x128xf32> to vector<8x32xf32>
    %396 = arith.mulf %395, %375 : vector<8x32xf32>
    %397 = vector.extract_strided_slice %392 {offsets = [0, 0], sizes = [8, 32], strides = [1, 1]} : vector<8x128xf32> to vector<8x32xf32>
    %398 = arith.mulf %397, %394 : vector<8x32xf32>
    %399 = arith.addf %396, %398 : vector<8x32xf32>
    %400 = vector.extract_strided_slice %392 {offsets = [0, 64], sizes = [8, 32], strides = [1, 1]} : vector<8x128xf32> to vector<8x32xf32>
    %401 = math.tanh %399 : vector<8x32xf32>
    %402 = arith.mulf %400, %401 : vector<8x32xf32>
    %403 = arith.addf %379, %402 : vector<8x32xf32>
    %404 = arith.maximumf %380, %402 : vector<8x32xf32>
    %cst_113 = arith.constant dense<0.000000e+00> : vector<8x128xf32>
    %405 = tpu.matmul %402, %258, %cst_113 {dimension_numbers = #tpu.dot_dimension_numbers<[1], [0], [0], [1], [0, 0, 1, 1], [], []>} : vector<8x32xf32>, vector<32x128xf32>, vector<8x128xf32> -> vector<8x128xf32>
    %406 = vector.broadcast %259 : vector<1x128xf32> to vector<8x128xf32>
    %407 = arith.addf %405, %406 : vector<8x128xf32>
    %408 = vector.extract_strided_slice %260 {offsets = [48, 0], sizes = [8, 128], strides = [1, 1]} : vector<64x256xf32> to vector<8x128xf32>
    %409 = arith.addf %407, %408 : vector<8x128xf32>
    %410 = vector.extract_strided_slice %260 {offsets = [8, 128], sizes = [8, 128], strides = [1, 1]} : vector<64x256xf32> to vector<8x128xf32>
    %411 = arith.addf %409, %410 : vector<8x128xf32>
    %412 = arith.negf %411 : vector<8x128xf32>
    %413 = math.exp %412 : vector<8x128xf32>
    %cst_114 = arith.constant 1.000000e+00 : f32
    %414 = vector.broadcast %cst_114 : f32 to vector<8x128xf32>
    %415 = arith.addf %414, %413 : vector<8x128xf32>
    %416 = arith.divf %414, %415 : vector<8x128xf32>
    %417 = vector.extract_strided_slice %411 {offsets = [0, 96], sizes = [8, 32], strides = [1, 1]} : vector<8x128xf32> to vector<8x32xf32>
    %418 = math.tanh %417 : vector<8x32xf32>
    %419 = vector.extract_strided_slice %416 {offsets = [0, 32], sizes = [8, 32], strides = [1, 1]} : vector<8x128xf32> to vector<8x32xf32>
    %420 = arith.mulf %419, %399 : vector<8x32xf32>
    %421 = vector.extract_strided_slice %416 {offsets = [0, 0], sizes = [8, 32], strides = [1, 1]} : vector<8x128xf32> to vector<8x32xf32>
    %422 = arith.mulf %421, %418 : vector<8x32xf32>
    %423 = arith.addf %420, %422 : vector<8x32xf32>
    %424 = vector.extract_strided_slice %416 {offsets = [0, 64], sizes = [8, 32], strides = [1, 1]} : vector<8x128xf32> to vector<8x32xf32>
    %425 = math.tanh %423 : vector<8x32xf32>
    %426 = arith.mulf %424, %425 : vector<8x32xf32>
    %427 = arith.addf %403, %426 : vector<8x32xf32>
    %428 = arith.maximumf %404, %426 : vector<8x32xf32>
    %cst_115 = arith.constant dense<0.000000e+00> : vector<8x128xf32>
    %429 = tpu.matmul %426, %258, %cst_115 {dimension_numbers = #tpu.dot_dimension_numbers<[1], [0], [0], [1], [0, 0, 1, 1], [], []>} : vector<8x32xf32>, vector<32x128xf32>, vector<8x128xf32> -> vector<8x128xf32>
    %430 = vector.broadcast %259 : vector<1x128xf32> to vector<8x128xf32>
    %431 = arith.addf %429, %430 : vector<8x128xf32>
    %432 = vector.extract_strided_slice %260 {offsets = [56, 0], sizes = [8, 128], strides = [1, 1]} : vector<64x256xf32> to vector<8x128xf32>
    %433 = arith.addf %431, %432 : vector<8x128xf32>
    %434 = vector.extract_strided_slice %260 {offsets = [0, 128], sizes = [8, 128], strides = [1, 1]} : vector<64x256xf32> to vector<8x128xf32>
    %435 = arith.addf %433, %434 : vector<8x128xf32>
    %436 = arith.negf %435 : vector<8x128xf32>
    %437 = math.exp %436 : vector<8x128xf32>
    %cst_116 = arith.constant 1.000000e+00 : f32
    %438 = vector.broadcast %cst_116 : f32 to vector<8x128xf32>
    %439 = arith.addf %438, %437 : vector<8x128xf32>
    %440 = arith.divf %438, %439 : vector<8x128xf32>
    %441 = vector.extract_strided_slice %435 {offsets = [0, 96], sizes = [8, 32], strides = [1, 1]} : vector<8x128xf32> to vector<8x32xf32>
    %442 = math.tanh %441 : vector<8x32xf32>
    %443 = vector.extract_strided_slice %440 {offsets = [0, 32], sizes = [8, 32], strides = [1, 1]} : vector<8x128xf32> to vector<8x32xf32>
    %444 = arith.mulf %443, %423 : vector<8x32xf32>
    %445 = vector.extract_strided_slice %440 {offsets = [0, 0], sizes = [8, 32], strides = [1, 1]} : vector<8x128xf32> to vector<8x32xf32>
    %446 = arith.mulf %445, %442 : vector<8x32xf32>
    %447 = arith.addf %444, %446 : vector<8x32xf32>
    %448 = vector.extract_strided_slice %440 {offsets = [0, 64], sizes = [8, 32], strides = [1, 1]} : vector<8x128xf32> to vector<8x32xf32>
    %449 = math.tanh %447 : vector<8x32xf32>
    %450 = arith.mulf %448, %449 : vector<8x32xf32>
    %451 = arith.addf %427, %450 : vector<8x32xf32>
    %452 = arith.maximumf %428, %450 : vector<8x32xf32>
    %cst_117 = arith.constant 1.250000e-01 : f32
    %453 = vector.broadcast %cst_117 : f32 to vector<8x32xf32>
    %454 = arith.mulf %451, %453 : vector<8x32xf32>
    %cst_118 = arith.constant 6.000000e-01 : f32
    %455 = vector.broadcast %cst_118 : f32 to vector<8x32xf32>
    %456 = arith.mulf %455, %452 : vector<8x32xf32>
    %cst_119 = arith.constant 4.000000e-01 : f32
    %457 = vector.broadcast %cst_119 : f32 to vector<8x32xf32>
    %458 = arith.mulf %457, %454 : vector<8x32xf32>
    %459 = arith.addf %456, %458 : vector<8x32xf32>
    %460 = tpu.concatenate %459, %452 in 1 : vector<8x32xf32>, vector<8x32xf32> -> vector<8x64xf32>
    %c0_120 = arith.constant 0 : index
    %c0_121 = arith.constant 0 : index
    %461 = vector.load %arg11[%c0_120, %c0_121] : memref<8x17xf32, #tpu.memory_space<vmem>>, vector<8x17xf32>
    %c0_122 = arith.constant 0 : index
    %c0_123 = arith.constant 0 : index
    %462 = vector.load %arg12[%c0_122, %c0_123] : memref<17x16xf32, #tpu.memory_space<vmem>>, vector<17x16xf32>
    %cst_124 = arith.constant dense<0.000000e+00> : vector<8x16xf32>
    %463 = tpu.matmul %461, %462, %cst_124 {dimension_numbers = #tpu.dot_dimension_numbers<[1], [0], [0], [1], [0, 0, 1, 1], [], []>} : vector<8x17xf32>, vector<17x16xf32>, vector<8x16xf32> -> vector<8x16xf32>
    %c0_125 = arith.constant 0 : index
    %c0_126 = arith.constant 0 : index
    %464 = vector.load %arg13[%c0_125, %c0_126] : memref<1x16xf32, #tpu.memory_space<vmem>>, vector<1x16xf32>
    %465 = vector.broadcast %464 : vector<1x16xf32> to vector<8x16xf32>
    %466 = arith.addf %463, %465 : vector<8x16xf32>
    %c0_127 = arith.constant 0 : index
    %c0_128 = arith.constant 0 : index
    %467 = vector.load %arg14[%c0_127, %c0_128] : memref<1x16xf32, #tpu.memory_space<vmem>>, vector<1x16xf32>
    %c0_129 = arith.constant 0 : index
    %c0_130 = arith.constant 0 : index
    %468 = vector.load %arg15[%c0_129, %c0_130] : memref<1x16xf32, #tpu.memory_space<vmem>>, vector<1x16xf32>
    %cst_131 = arith.constant dense<0.000000e+00> : vector<8xf32>
    %469 = vector.multi_reduction <add>, %466, %cst_131 [1] : vector<8x16xf32> to vector<8xf32>
    %470 = vector.shape_cast %469 : vector<8xf32> to vector<8x1xf32>
    %cst_132 = arith.constant 1.600000e+01 : f32
    %471 = vector.broadcast %cst_132 : f32 to vector<8x1xf32>
    %472 = arith.divf %470, %471 : vector<8x1xf32>
    %473 = vector.broadcast %472 : vector<8x1xf32> to vector<8x16xf32>
    %474 = arith.subf %466, %473 : vector<8x16xf32>
    %475 = arith.mulf %474, %474 : vector<8x16xf32>
    %cst_133 = arith.constant dense<0.000000e+00> : vector<8xf32>
    %476 = vector.multi_reduction <add>, %475, %cst_133 [1] : vector<8x16xf32> to vector<8xf32>
    %477 = vector.shape_cast %476 : vector<8xf32> to vector<8x1xf32>
    %cst_134 = arith.constant 1.600000e+01 : f32
    %478 = vector.broadcast %cst_134 : f32 to vector<8x1xf32>
    %479 = arith.divf %477, %478 : vector<8x1xf32>
    %480 = vector.broadcast %472 : vector<8x1xf32> to vector<8x16xf32>
    %481 = arith.subf %466, %480 : vector<8x16xf32>
    %cst_135 = arith.constant 9.99999974E-6 : f32
    %482 = vector.broadcast %cst_135 : f32 to vector<8x1xf32>
    %483 = arith.addf %479, %482 : vector<8x1xf32>
    %484 = math.rsqrt %483 : vector<8x1xf32>
    %485 = vector.broadcast %484 : vector<8x1xf32> to vector<8x16xf32>
    %486 = arith.mulf %481, %485 : vector<8x16xf32>
    %487 = vector.broadcast %467 : vector<1x16xf32> to vector<8x16xf32>
    %488 = arith.mulf %486, %487 : vector<8x16xf32>
    %489 = vector.broadcast %468 : vector<1x16xf32> to vector<8x16xf32>
    %490 = arith.addf %488, %489 : vector<8x16xf32>
    %cst_136 = arith.constant 0.000000e+00 : f32
    %491 = vector.broadcast %cst_136 : f32 to vector<8x16xf32>
    %492 = arith.maximumf %490, %491 : vector<8x16xf32>
    %c0_137 = arith.constant 0 : index
    %c0_138 = arith.constant 0 : index
    %493 = vector.load %arg16[%c0_137, %c0_138] : memref<16x32xf32, #tpu.memory_space<vmem>>, vector<16x32xf32>
    %cst_139 = arith.constant dense<0.000000e+00> : vector<8x32xf32>
    %494 = tpu.matmul %492, %493, %cst_139 {dimension_numbers = #tpu.dot_dimension_numbers<[1], [0], [0], [1], [0, 0, 1, 1], [], []>} : vector<8x16xf32>, vector<16x32xf32>, vector<8x32xf32> -> vector<8x32xf32>
    %c0_140 = arith.constant 0 : index
    %c0_141 = arith.constant 0 : index
    %495 = vector.load %arg17[%c0_140, %c0_141] : memref<1x32xf32, #tpu.memory_space<vmem>>, vector<1x32xf32>
    %496 = vector.broadcast %495 : vector<1x32xf32> to vector<8x32xf32>
    %497 = arith.addf %494, %496 : vector<8x32xf32>
    %c0_142 = arith.constant 0 : index
    %c0_143 = arith.constant 0 : index
    %498 = vector.load %arg18[%c0_142, %c0_143] : memref<96x32xf32, #tpu.memory_space<vmem>>, vector<96x32xf32>
    %499 = vector.extract_strided_slice %498 {offsets = [0, 0], sizes = [64, 32], strides = [1, 1]} : vector<96x32xf32> to vector<64x32xf32>
    %cst_144 = arith.constant dense<0.000000e+00> : vector<8x32xf32>
    %500 = tpu.matmul %460, %499, %cst_144 {dimension_numbers = #tpu.dot_dimension_numbers<[1], [0], [0], [1], [0, 0, 1, 1], [], []>} : vector<8x64xf32>, vector<64x32xf32>, vector<8x32xf32> -> vector<8x32xf32>
    %501 = vector.extract_strided_slice %498 {offsets = [64, 0], sizes = [32, 32], strides = [1, 1]} : vector<96x32xf32> to vector<32x32xf32>
    %cst_145 = arith.constant dense<0.000000e+00> : vector<8x32xf32>
    %502 = tpu.matmul %497, %501, %cst_145 {dimension_numbers = #tpu.dot_dimension_numbers<[1], [0], [0], [1], [0, 0, 1, 1], [], []>} : vector<8x32xf32>, vector<32x32xf32>, vector<8x32xf32> -> vector<8x32xf32>
    %503 = arith.addf %500, %502 : vector<8x32xf32>
    %c0_146 = arith.constant 0 : index
    %c0_147 = arith.constant 0 : index
    %504 = vector.load %arg19[%c0_146, %c0_147] : memref<1x32xf32, #tpu.memory_space<vmem>>, vector<1x32xf32>
    %505 = vector.broadcast %504 : vector<1x32xf32> to vector<8x32xf32>
    %506 = arith.addf %503, %505 : vector<8x32xf32>
    %c0_148 = arith.constant 0 : index
    %c0_149 = arith.constant 0 : index
    %507 = vector.load %arg20[%c0_148, %c0_149] : memref<1x32xf32, #tpu.memory_space<vmem>>, vector<1x32xf32>
    %c0_150 = arith.constant 0 : index
    %c0_151 = arith.constant 0 : index
    %508 = vector.load %arg21[%c0_150, %c0_151] : memref<1x32xf32, #tpu.memory_space<vmem>>, vector<1x32xf32>
    %cst_152 = arith.constant dense<0.000000e+00> : vector<8xf32>
    %509 = vector.multi_reduction <add>, %506, %cst_152 [1] : vector<8x32xf32> to vector<8xf32>
    %510 = vector.shape_cast %509 : vector<8xf32> to vector<8x1xf32>
    %cst_153 = arith.constant 3.200000e+01 : f32
    %511 = vector.broadcast %cst_153 : f32 to vector<8x1xf32>
    %512 = arith.divf %510, %511 : vector<8x1xf32>
    %513 = vector.broadcast %512 : vector<8x1xf32> to vector<8x32xf32>
    %514 = arith.subf %506, %513 : vector<8x32xf32>
    %515 = arith.mulf %514, %514 : vector<8x32xf32>
    %cst_154 = arith.constant dense<0.000000e+00> : vector<8xf32>
    %516 = vector.multi_reduction <add>, %515, %cst_154 [1] : vector<8x32xf32> to vector<8xf32>
    %517 = vector.shape_cast %516 : vector<8xf32> to vector<8x1xf32>
    %cst_155 = arith.constant 3.200000e+01 : f32
    %518 = vector.broadcast %cst_155 : f32 to vector<8x1xf32>
    %519 = arith.divf %517, %518 : vector<8x1xf32>
    %520 = vector.broadcast %512 : vector<8x1xf32> to vector<8x32xf32>
    %521 = arith.subf %506, %520 : vector<8x32xf32>
    %cst_156 = arith.constant 9.99999974E-6 : f32
    %522 = vector.broadcast %cst_156 : f32 to vector<8x1xf32>
    %523 = arith.addf %519, %522 : vector<8x1xf32>
    %524 = math.rsqrt %523 : vector<8x1xf32>
    %525 = vector.broadcast %524 : vector<8x1xf32> to vector<8x32xf32>
    %526 = arith.mulf %521, %525 : vector<8x32xf32>
    %527 = vector.broadcast %507 : vector<1x32xf32> to vector<8x32xf32>
    %528 = arith.mulf %526, %527 : vector<8x32xf32>
    %529 = vector.broadcast %508 : vector<1x32xf32> to vector<8x32xf32>
    %530 = arith.addf %528, %529 : vector<8x32xf32>
    %cst_157 = arith.constant 0.000000e+00 : f32
    %531 = vector.broadcast %cst_157 : f32 to vector<8x32xf32>
    %532 = arith.maximumf %530, %531 : vector<8x32xf32>
    %c0_158 = arith.constant 0 : index
    %c0_159 = arith.constant 0 : index
    %533 = vector.load %arg22[%c0_158, %c0_159] : memref<32x16xf32, #tpu.memory_space<vmem>>, vector<32x16xf32>
    %cst_160 = arith.constant dense<0.000000e+00> : vector<8x16xf32>
    %534 = tpu.matmul %532, %533, %cst_160 {dimension_numbers = #tpu.dot_dimension_numbers<[1], [0], [0], [1], [0, 0, 1, 1], [], []>} : vector<8x32xf32>, vector<32x16xf32>, vector<8x16xf32> -> vector<8x16xf32>
    %c0_161 = arith.constant 0 : index
    %c0_162 = arith.constant 0 : index
    %535 = vector.load %arg23[%c0_161, %c0_162] : memref<1x16xf32, #tpu.memory_space<vmem>>, vector<1x16xf32>
    %536 = vector.broadcast %535 : vector<1x16xf32> to vector<8x16xf32>
    %537 = arith.addf %534, %536 : vector<8x16xf32>
    %c0_163 = arith.constant 0 : index
    %c0_164 = arith.constant 0 : index
    %538 = vector.load %arg24[%c0_163, %c0_164] : memref<1x16xf32, #tpu.memory_space<vmem>>, vector<1x16xf32>
    %c0_165 = arith.constant 0 : index
    %c0_166 = arith.constant 0 : index
    %539 = vector.load %arg25[%c0_165, %c0_166] : memref<1x16xf32, #tpu.memory_space<vmem>>, vector<1x16xf32>
    %cst_167 = arith.constant dense<0.000000e+00> : vector<8xf32>
    %540 = vector.multi_reduction <add>, %537, %cst_167 [1] : vector<8x16xf32> to vector<8xf32>
    %541 = vector.shape_cast %540 : vector<8xf32> to vector<8x1xf32>
    %cst_168 = arith.constant 1.600000e+01 : f32
    %542 = vector.broadcast %cst_168 : f32 to vector<8x1xf32>
    %543 = arith.divf %541, %542 : vector<8x1xf32>
    %544 = vector.broadcast %543 : vector<8x1xf32> to vector<8x16xf32>
    %545 = arith.subf %537, %544 : vector<8x16xf32>
    %546 = arith.mulf %545, %545 : vector<8x16xf32>
    %cst_169 = arith.constant dense<0.000000e+00> : vector<8xf32>
    %547 = vector.multi_reduction <add>, %546, %cst_169 [1] : vector<8x16xf32> to vector<8xf32>
    %548 = vector.shape_cast %547 : vector<8xf32> to vector<8x1xf32>
    %cst_170 = arith.constant 1.600000e+01 : f32
    %549 = vector.broadcast %cst_170 : f32 to vector<8x1xf32>
    %550 = arith.divf %548, %549 : vector<8x1xf32>
    %551 = vector.broadcast %543 : vector<8x1xf32> to vector<8x16xf32>
    %552 = arith.subf %537, %551 : vector<8x16xf32>
    %cst_171 = arith.constant 9.99999974E-6 : f32
    %553 = vector.broadcast %cst_171 : f32 to vector<8x1xf32>
    %554 = arith.addf %550, %553 : vector<8x1xf32>
    %555 = math.rsqrt %554 : vector<8x1xf32>
    %556 = vector.broadcast %555 : vector<8x1xf32> to vector<8x16xf32>
    %557 = arith.mulf %552, %556 : vector<8x16xf32>
    %558 = vector.broadcast %538 : vector<1x16xf32> to vector<8x16xf32>
    %559 = arith.mulf %557, %558 : vector<8x16xf32>
    %560 = vector.broadcast %539 : vector<1x16xf32> to vector<8x16xf32>
    %561 = arith.addf %559, %560 : vector<8x16xf32>
    %cst_172 = arith.constant 0.000000e+00 : f32
    %562 = vector.broadcast %cst_172 : f32 to vector<8x16xf32>
    %563 = arith.maximumf %561, %562 : vector<8x16xf32>
    %c0_173 = arith.constant 0 : index
    %c0_174 = arith.constant 0 : index
    %564 = vector.load %arg26[%c0_173, %c0_174] : memref<16x2xf32, #tpu.memory_space<vmem>>, vector<16x2xf32>
    %cst_175 = arith.constant dense<0.000000e+00> : vector<8x2xf32>
    %565 = tpu.matmul %563, %564, %cst_175 {dimension_numbers = #tpu.dot_dimension_numbers<[1], [0], [0], [1], [0, 0, 1, 1], [], []>} : vector<8x16xf32>, vector<16x2xf32>, vector<8x2xf32> -> vector<8x2xf32>
    %c0_176 = arith.constant 0 : index
    %c0_177 = arith.constant 0 : index
    %566 = vector.load %arg27[%c0_176, %c0_177] : memref<1x2xf32, #tpu.memory_space<vmem>>, vector<1x2xf32>
    %567 = vector.broadcast %566 : vector<1x2xf32> to vector<8x2xf32>
    %568 = arith.addf %565, %567 : vector<8x2xf32>
    %c0_178 = arith.constant 0 : index
    %c0_179 = arith.constant 0 : index
    %569 = vector.load %arg28[%c0_178, %c0_179] : memref<8x2xf32, #tpu.memory_space<vmem>>, vector<8x2xf32>
    tpu.vector_store %arg28[%c0_178, %c0_179], %568 {strides = array<i32>} : memref<8x2xf32, #tpu.memory_space<vmem>>, vector<8x2xf32>,
    return
  }
}

</mosaic_0001>

<llo_original>
// kernel: forward.1
$region0: #{forward.1}
  #allocation0 [shape = 'u32[]', space=smem, size = 0x4, offset = 0x4, fixed_abs, tag = 'smem constant byte address 0x4 - core index']
  #allocation1 [shape = 'u32[72,128]{1,0:T(1,128)}', space=vmem, size = 0x9000, scoped, tag = 'internal scratch']
  #allocation2 [shape = 'f32[96,16]{1,0:T(8,128)}', space=vmem, size = 0xc000, scoped, tag = 'scratch operand']
  #allocation3 [shape = 'f32[64,32]{1,0:T(8,128)}', space=vmem, size = 0x8000, scoped, tag = 'scratch operand']
  %s0 = inlined_call_operand.vmem [shape: s32[64,1], index: 0, kind: input, shape index: {}]
  %s1 = inlined_call_operand.vmem [shape: f32[128,16], index: 1, kind: input, shape index: {}]
  %s2 = inlined_call_operand.vmem [shape: f32[80,16], index: 2, kind: input, shape index: {}]
  %s3 = inlined_call_operand.vmem [shape: f32[1,16], index: 3, kind: input, shape index: {}]
  %s4 = inlined_call_operand.vmem [shape: f32[1,16], index: 4, kind: input, shape index: {}]
  %s5 = inlined_call_operand.vmem [shape: f32[16,256], index: 5, kind: input, shape index: {}]
  %s6 = inlined_call_operand.vmem [shape: f32[32,128], index: 6, kind: input, shape index: {}]
  %s7 = inlined_call_operand.vmem [shape: f32[1,128], index: 7, kind: input, shape index: {}]
  %s8 = inlined_call_operand.vmem [shape: f32[32,256], index: 8, kind: input, shape index: {}]
  %s9 = inlined_call_operand.vmem [shape: f32[32,128], index: 9, kind: input, shape index: {}]
  %s10 = inlined_call_operand.vmem [shape: f32[1,128], index: 10, kind: input, shape index: {}]
  %s11 = inlined_call_operand.vmem [shape: f32[8,17], index: 11, kind: input, shape index: {}]
  %s12 = inlined_call_operand.vmem [shape: f32[17,16], index: 12, kind: input, shape index: {}]
  %s13 = inlined_call_operand.vmem [shape: f32[1,16], index: 13, kind: input, shape index: {}]
  %s14 = inlined_call_operand.vmem [shape: f32[1,16], index: 14, kind: input, shape index: {}]
  %s15 = inlined_call_operand.vmem [shape: f32[1,16], index: 15, kind: input, shape index: {}]
  %s16 = inlined_call_operand.vmem [shape: f32[16,32], index: 16, kind: input, shape index: {}]
  %s17 = inlined_call_operand.vmem [shape: f32[1,32], index: 17, kind: input, shape index: {}]
  %s18 = inlined_call_operand.vmem [shape: f32[96,32], index: 18, kind: input, shape index: {}]
  %s19 = inlined_call_operand.vmem [shape: f32[1,32], index: 19, kind: input, shape index: {}]
  %s20 = inlined_call_operand.vmem [shape: f32[1,32], index: 20, kind: input, shape index: {}]
  %s21 = inlined_call_operand.vmem [shape: f32[1,32], index: 21, kind: input, shape index: {}]
  %s22 = inlined_call_operand.vmem [shape: f32[32,16], index: 22, kind: input, shape index: {}]
  %s23 = inlined_call_operand.vmem [shape: f32[1,16], index: 23, kind: input, shape index: {}]
  %s24 = inlined_call_operand.vmem [shape: f32[1,16], index: 24, kind: input, shape index: {}]
  %s25 = inlined_call_operand.vmem [shape: f32[1,16], index: 25, kind: input, shape index: {}]
  %s26 = inlined_call_operand.vmem [shape: f32[16,2], index: 26, kind: input, shape index: {}]
  %s27 = inlined_call_operand.vmem [shape: f32[1,2], index: 27, kind: input, shape index: {}]
  %s28 = inlined_call_operand.vmem [shape: f32[8,2], index: 28, kind: output, shape index: {}]
  %s29 = sld [smem:[#allocation0]]
  $region122: #{forward.1} parent=0
    _
  %s31 = ssub.s32 1, %s29
  %s32 = scalar_select 0, %s31, %s29
  // Predicated region
  $region2: #{forward.1} parent=0 // pred_check
    _
  $region3: #{forward.1} parent=0 // pred_check_branch
    %34 = sbr.rel (0) target = $region5
  $region4: #{forward.1} parent=0 // pred_region
    _
  $region5: #{forward.1} parent=0 // pred_fallthru
    _
  // Predicated region
  $region6: #{forward.1} parent=0 // pred_check
    _
  $region7: #{forward.1} parent=0 // pred_check_branch
    %36 = sbr.rel (0) target = $region9
  $region8: #{forward.1} parent=0 // pred_region
    _
  $region9: #{forward.1} parent=0 // pred_fallthru
    _
  // Predicated region
  $region10: #{forward.1} parent=0 // pred_check
    _
  $region11: #{forward.1} parent=0 // pred_check_branch
    %38 = sbr.rel (0) target = $region13
  $region12: #{forward.1} parent=0 // pred_region
    _
  $region13: #{forward.1} parent=0 // pred_fallthru
    _
  // Predicated region
  $region14: #{forward.1} parent=0 // pred_check
    _
  $region15: #{forward.1} parent=0 // pred_check_branch
    %40 = sbr.rel (0) target = $region17
  $region16: #{forward.1} parent=0 // pred_region
    _
  $region17: #{forward.1} parent=0 // pred_fallthru
    _
  // Predicated region
  $region18: #{forward.1} parent=0 // pred_check
    _
  $region19: #{forward.1} parent=0 // pred_check_branch
    %42 = sbr.rel (0) target = $region21
  $region20: #{forward.1} parent=0 // pred_region
    _
  $region21: #{forward.1} parent=0 // pred_fallthru
    _
  // Predicated region
  $region22: #{forward.1} parent=0 // pred_check
    _
  $region23: #{forward.1} parent=0 // pred_check_branch
    %44 = sbr.rel (0) target = $region25
  $region24: #{forward.1} parent=0 // pred_region
    _
  $region25: #{forward.1} parent=0 // pred_fallthru
    _
  // Predicated region
  $region26: #{forward.1} parent=0 // pred_check
    _
  $region27: #{forward.1} parent=0 // pred_check_branch
    %46 = sbr.rel (0) target = $region29
  $region28: #{forward.1} parent=0 // pred_region
    _
  $region29: #{forward.1} parent=0 // pred_fallthru
    _
  // Predicated region
  $region30: #{forward.1} parent=0 // pred_check
    _
  $region31: #{forward.1} parent=0 // pred_check_branch
    %48 = sbr.rel (0) target = $region33
  $region32: #{forward.1} parent=0 // pred_region
    _
  $region33: #{forward.1} parent=0 // pred_fallthru
    _
  // Predicated region
  $region34: #{forward.1} parent=0 // pred_check
    _
  $region35: #{forward.1} parent=0 // pred_check_branch
    %50 = sbr.rel (0) target = $region37
  $region36: #{forward.1} parent=0 // pred_region
    _
  $region37: #{forward.1} parent=0 // pred_fallthru
    _
  // Predicated region
  $region38: #{forward.1} parent=0 // pred_check
    _
  $region39: #{forward.1} parent=0 // pred_check_branch
    %52 = sbr.rel (0) target = $region41
  $region40: #{forward.1} parent=0 // pred_region
    _
  $region41: #{forward.1} parent=0 // pred_fallthru
    _
  // Predicated region
  $region42: #{forward.1} parent=0 // pred_check
    _
  $region43: #{forward.1} parent=0 // pred_check_branch
    %54 = sbr.rel (0) target = $region45
  $region44: #{forward.1} parent=0 // pred_region
    _
  $region45: #{forward.1} parent=0 // pred_fallthru
    _
  // Predicated region
  $region46: #{forward.1} parent=0 // pred_check
    _
  $region47: #{forward.1} parent=0 // pred_check_branch
    %56 = sbr.rel (0) target = $region49
  $region48: #{forward.1} parent=0 // pred_region
    _
  $region49: #{forward.1} parent=0 // pred_fallthru
    _
  // Predicated region
  $region50: #{forward.1} parent=0 // pred_check
    _
  $region51: #{forward.1} parent=0 // pred_check_branch
    %58 = sbr.rel (0) target = $region53
  $region52: #{forward.1} parent=0 // pred_region
    _
  $region53: #{forward.1} parent=0 // pred_fallthru
    _
  // Predicated region
  $region54: #{forward.1} parent=0 // pred_check
    _
  $region55: #{forward.1} parent=0 // pred_check_branch
    %60 = sbr.rel (0) target = $region57
  $region56: #{forward.1} parent=0 // pred_region
    _
  $region57: #{forward.1} parent=0 // pred_fallthru
    _
  // Predicated region
  $region58: #{forward.1} parent=0 // pred_check
    _
  $region59: #{forward.1} parent=0 // pred_check_branch
    %62 = sbr.rel (0) target = $region61
  $region60: #{forward.1} parent=0 // pred_region
    _
  $region61: #{forward.1} parent=0 // pred_fallthru
    _
  // Predicated region
  $region62: #{forward.1} parent=0 // pred_check
    _
  $region63: #{forward.1} parent=0 // pred_check_branch
    %64 = sbr.rel (0) target = $region65
  $region64: #{forward.1} parent=0 // pred_region
    _
  $region65: #{forward.1} parent=0 // pred_fallthru
    _
  // Predicated region
  $region66: #{forward.1} parent=0 // pred_check
    _
  $region67: #{forward.1} parent=0 // pred_check_branch
    %66 = sbr.rel (0) target = $region69
  $region68: #{forward.1} parent=0 // pred_region
    _
  $region69: #{forward.1} parent=0 // pred_fallthru
    _
  // Predicated region
  $region70: #{forward.1} parent=0 // pred_check
    _
  $region71: #{forward.1} parent=0 // pred_check_branch
    %68 = sbr.rel (0) target = $region73
  $region72: #{forward.1} parent=0 // pred_region
    _
  $region73: #{forward.1} parent=0 // pred_fallthru
    _
  // Predicated region
  $region74: #{forward.1} parent=0 // pred_check
    _
  $region75: #{forward.1} parent=0 // pred_check_branch
    %70 = sbr.rel (0) target = $region77
  $region76: #{forward.1} parent=0 // pred_region
    _
  $region77: #{forward.1} parent=0 // pred_fallthru
    _
  // Predicated region
  $region78: #{forward.1} parent=0 // pred_check
    _
  $region79: #{forward.1} parent=0 // pred_check_branch
    %72 = sbr.rel (0) target = $region81
  $region80: #{forward.1} parent=0 // pred_region
    _
  $region81: #{forward.1} parent=0 // pred_fallthru
    _
  // Predicated region
  $region82: #{forward.1} parent=0 // pred_check
    _
  $region83: #{forward.1} parent=0 // pred_check_branch
    %74 = sbr.rel (0) target = $region85
  $region84: #{forward.1} parent=0 // pred_region
    _
  $region85: #{forward.1} parent=0 // pred_fallthru
    _
  // Predicated region
  $region86: #{forward.1} parent=0 // pred_check
    _
  $region87: #{forward.1} parent=0 // pred_check_branch
    %76 = sbr.rel (0) target = $region89
  $region88: #{forward.1} parent=0 // pred_region
    _
  $region89: #{forward.1} parent=0 // pred_fallthru
    _
  // Predicated region
  $region90: #{forward.1} parent=0 // pred_check
    _
  $region91: #{forward.1} parent=0 // pred_check_branch
    %78 = sbr.rel (0) target = $region93
  $region92: #{forward.1} parent=0 // pred_region
    _
  $region93: #{forward.1} parent=0 // pred_fallthru
    _
  // Predicated region
  $region94: #{forward.1} parent=0 // pred_check
    _
  $region95: #{forward.1} parent=0 // pred_check_branch
    %80 = sbr.rel (0) target = $region97
  $region96: #{forward.1} parent=0 // pred_region
    _
  $region97: #{forward.1} parent=0 // pred_fallthru
    _
  // Predicated region
  $region98: #{forward.1} parent=0 // pred_check
    _
  $region99: #{forward.1} parent=0 // pred_check_branch
    %82 = sbr.rel (0) target = $region101
  $region100: #{forward.1} parent=0 // pred_region
    _
  $region101: #{forward.1} parent=0 // pred_fallthru
    _
  // Predicated region
  $region102: #{forward.1} parent=0 // pred_check
    _
  $region103: #{forward.1} parent=0 // pred_check_branch
    %84 = sbr.rel (0) target = $region105
  $region104: #{forward.1} parent=0 // pred_region
    _
  $region105: #{forward.1} parent=0 // pred_fallthru
    _
  // Predicated region
  $region106: #{forward.1} parent=0 // pred_check
    _
  $region107: #{forward.1} parent=0 // pred_check_branch
    %86 = sbr.rel (0) target = $region109
  $region108: #{forward.1} parent=0 // pred_region
    _
  $region109: #{forward.1} parent=0 // pred_fallthru
    _
  // Predicated region
  $region110: #{forward.1} parent=0 // pred_check
    _
  $region111: #{forward.1} parent=0 // pred_check_branch
    %88 = sbr.rel (0) target = $region113
  $region112: #{forward.1} parent=0 // pred_region
    _
  $region113: #{forward.1} parent=0 // pred_fallthru
    _
  %v89 = vld [vmem:[%s0] sm:$0xff]
  %v90 = vld [vmem:[%s0 + $0x8] sm:$0xff]
  %v91 = vld [vmem:[%s0 + $0x10] sm:$0xff]
  %v92 = vld [vmem:[%s0 + $0x18] sm:$0xff]
  %v93 = vld [vmem:[%s0 + $0x20] sm:$0xff]
  %v94 = vld [vmem:[%s0 + $0x28] sm:$0xff]
  %v95 = vld [vmem:[%s0 + $0x30] sm:$0xff]
  %v96 = vld [vmem:[%s0 + $0x38] sm:$0xff]
  %v97 = vlaneseq
  %v98 = vand.u32 %v97, 127
  %99 = vset.pattern.permute.xlu0 0
  %100 = vperm.xlu0 %99, %v89
  %v101 = vpop.permute.xlu0 %100
  %102 = vset.pattern.permute.xlu0 0
  %103 = vperm.xlu0 %102, %v90
  %v104 = vpop.permute.xlu0 %103
  %105 = vset.pattern.permute.xlu0 0
  %106 = vperm.xlu0 %105, %v91
  %v107 = vpop.permute.xlu0 %106
  %108 = vset.pattern.permute.xlu0 0
  %109 = vperm.xlu0 %108, %v92
  %v110 = vpop.permute.xlu0 %109
  %111 = vset.pattern.permute.xlu0 0
  %112 = vperm.xlu0 %111, %v93
  %v113 = vpop.permute.xlu0 %112
  %114 = vset.pattern.permute.xlu0 0
  %115 = vperm.xlu0 %114, %v94
  %v116 = vpop.permute.xlu0 %115
  %117 = vset.pattern.permute.xlu0 0
  %118 = vperm.xlu0 %117, %v95
  %v119 = vpop.permute.xlu0 %118
  %120 = vset.pattern.permute.xlu0 0
  %121 = vperm.xlu0 %120, %v96
  %v122 = vpop.permute.xlu0 %121
  %vm123 = vcmp.eq.s32.totalorder %v98, %v101
  %vm124 = vcmp.eq.s32.totalorder %v98, %v104
  %vm125 = vcmp.eq.s32.totalorder %v98, %v107
  %vm126 = vcmp.eq.s32.totalorder %v98, %v110
  %vm127 = vcmp.eq.s32.totalorder %v98, %v113
  %vm128 = vcmp.eq.s32.totalorder %v98, %v116
  %vm129 = vcmp.eq.s32.totalorder %v98, %v119
  %vm130 = vcmp.eq.s32.totalorder %v98, %v122
  %v131 = vsel %vm123, 1, 0
  %v132 = vsel %vm124, 1, 0
  %v133 = vsel %vm125, 1, 0
  %v134 = vsel %vm126, 1, 0
  %v135 = vsel %vm127, 1, 0
  %v136 = vsel %vm128, 1, 0
  %v137 = vsel %vm129, 1, 0
  %v138 = vsel %vm130, 1, 0
  %v139 = vcvt.s32.f32 %v131
  %v140 = vcvt.s32.f32 %v132
  %v141 = vcvt.s32.f32 %v133
  %v142 = vcvt.s32.f32 %v134
  %v143 = vcvt.s32.f32 %v135
  %v144 = vcvt.s32.f32 %v136
  %v145 = vcvt.s32.f32 %v137
  %v146 = vcvt.s32.f32 %v138
  %v147 = vld [vmem:[%s1] sm:$0xff]
  %v148 = vld [vmem:[%s1 + $0x8] sm:$0xff]
  %v149 = vld [vmem:[%s1 + $0x10] sm:$0xff]
  %v150 = vld [vmem:[%s1 + $0x18] sm:$0xff]
  %v151 = vld [vmem:[%s1 + $0x20] sm:$0xff]
  %v152 = vld [vmem:[%s1 + $0x28] sm:$0xff]
  %v153 = vld [vmem:[%s1 + $0x30] sm:$0xff]
  %v154 = vld [vmem:[%s1 + $0x38] sm:$0xff]
  %v155 = vld [vmem:[%s1 + $0x40] sm:$0xff]
  %v156 = vld [vmem:[%s1 + $0x48] sm:$0xff]
  %v157 = vld [vmem:[%s1 + $0x50] sm:$0xff]
  %v158 = vld [vmem:[%s1 + $0x58] sm:$0xff]
  %v159 = vld [vmem:[%s1 + $0x60] sm:$0xff]
  %v160 = vld [vmem:[%s1 + $0x68] sm:$0xff]
  %v161 = vld [vmem:[%s1 + $0x70] sm:$0xff]
  %v162 = vld [vmem:[%s1 + $0x78] sm:$0xff]
  %163 = vmatpush.msra.mxu0 %v162
  %164 = vmatpush.msra.mxu0 %v161
  %165 = vmatpush.msra.mxu0 %v160
  %166 = vmatpush.msra.mxu0 %v159
  %167 = vmatpush.msra.mxu0 %v158
  %168 = vmatpush.msra.mxu0 %v157
  %169 = vmatpush.msra.mxu0 %v156
  %170 = vmatpush.msra.mxu0 %v155
  %171 = vmatpush.msra.mxu0 %v154
  %172 = vmatpush.msra.mxu0 %v153
  %173 = vmatpush.msra.mxu0 %v152
  %174 = vmatpush.msra.mxu0 %v151
  %175 = vmatpush.msra.mxu0 %v150
  %176 = vmatpush.msra.mxu0 %v149
  %177 = vmatpush.msra.mxu0 %v148
  %178 = vmatpush.msra.mxu0 %v147
  %179 = vmatmul.f32.gmra.mxu0 %v139
  %v180 = vpop.f32.mrf.mxu0
  %v181 = vadd.f32 0.0, %v180
  %182 = vmatmul.f32.gmra.mxu0 %v140
  %v183 = vpop.f32.mrf.mxu0
  %v184 = vadd.f32 0.0, %v183
  %185 = vmatmul.f32.gmra.mxu0 %v141
  %v186 = vpop.f32.mrf.mxu0
  %v187 = vadd.f32 0.0, %v186
  %188 = vmatmul.f32.gmra.mxu0 %v142
  %v189 = vpop.f32.mrf.mxu0
  %v190 = vadd.f32 0.0, %v189
  %191 = vmatmul.f32.gmra.mxu0 %v143
  %v192 = vpop.f32.mrf.mxu0
  %v193 = vadd.f32 0.0, %v192
  %194 = vmatmul.f32.gmra.mxu0 %v144
  %v195 = vpop.f32.mrf.mxu0
  %v196 = vadd.f32 0.0, %v195
  %197 = vmatmul.f32.gmra.mxu0 %v145
  %v198 = vpop.f32.mrf.mxu0
  %v199 = vadd.f32 0.0, %v198
  %200 = vmatmul.f32.gmra.mxu0 %v146
  %v201 = vpop.f32.mrf.mxu0
  %v202 = vadd.f32 0.0, %v201
  %203 = vdwg.mxu0
  %vm204 = vcmask 130048
  %205 = vst.msk [vmem:[#allocation2] sm:$0xff] %vm204, 0.0
  %206 = vst.msk [vmem:[#allocation2 + $0x8] sm:$0xff] %vm204, 0.0
  %207 = vst.msk [vmem:[#allocation2 + $0x10] sm:$0xff] %vm204, %v181
  %208 = vst.msk [vmem:[#allocation2 + $0x18] sm:$0xff] %vm204, %v184
  %209 = vst.msk [vmem:[#allocation2 + $0x20] sm:$0xff] %vm204, %v187
  %210 = vst.msk [vmem:[#allocation2 + $0x28] sm:$0xff] %vm204, %v190
  %211 = vst.msk [vmem:[#allocation2 + $0x30] sm:$0xff] %vm204, %v193
  %212 = vst.msk [vmem:[#allocation2 + $0x38] sm:$0xff] %vm204, %v196
  %213 = vst.msk [vmem:[#allocation2 + $0x40] sm:$0xff] %vm204, %v199
  %214 = vst.msk [vmem:[#allocation2 + $0x48] sm:$0xff] %vm204, %v202
  %215 = vst.msk [vmem:[#allocation2 + $0x50] sm:$0xff] %vm204, 0.0
  %216 = vst.msk [vmem:[#allocation2 + $0x58] sm:$0xff] %vm204, 0.0
  %v217 = vld [vmem:[#allocation2] sm:$0xff]
  %v218 = vld [vmem:[#allocation2 + $0x8] sm:$0xff]
  %v219 = vld [vmem:[#allocation2 + $0x10] sm:$0xff]
  %v220 = vld [vmem:[#allocation2 + $0x18] sm:$0xff]
  %v221 = vld [vmem:[#allocation2 + $0x20] sm:$0xff]
  %v222 = vld [vmem:[#allocation2 + $0x28] sm:$0xff]
  %v223 = vld [vmem:[#allocation2 + $0x30] sm:$0xff]
  %v224 = vld [vmem:[#allocation2 + $0x38] sm:$0xff]
  %v225 = vld [vmem:[%s2] sm:$0xff]
  %v226 = vld [vmem:[%s2 + $0x8] sm:$0xff]
  %v227 = vld [vmem:[#allocation2 + $0x40] sm:$0xff]
  %v228 = vld [vmem:[%s2 + $0x10] sm:$0xff]
  %v229 = vld [vmem:[%s2 + $0x18] sm:$0xff]
  %v231 = vsel %vm204, %v218, 0
  %v234 = vsel %vm204, %v219, 0
  %v237 = vsel %vm204, %v220, 0
  %v240 = vsel %vm204, %v221, 0
  %v243 = vsel %vm204, %v222, 0
  %v246 = vsel %vm204, %v223, 0
  %v249 = vsel %vm204, %v224, 0
  %v252 = vsel %vm204, %v227, 0
  %254 = vmatpush.msra.mxu0 0.0
  %255 = vmatpush.msra.mxu0 0.0
  %256 = vmatpush.msra.mxu0 0.0
  %257 = vmatpush.msra.mxu0 0.0
  %258 = vmatpush.msra.mxu0 0.0
  %259 = vmatpush.msra.mxu0 0.0
  %260 = vmatpush.msra.mxu0 0.0
  %261 = vmatpush.msra.mxu0 0.0
  %262 = vmatpush.msra.mxu0 0.0
  %263 = vmatpush.msra.mxu0 0.0
  %264 = vmatpush.msra.mxu0 0.0
  %265 = vmatpush.msra.mxu0 0.0
  %266 = vmatpush.msra.mxu0 0.0
  %267 = vmatpush.msra.mxu0 0.0
  %268 = vmatpush.msra.mxu0 %v229
  %269 = vmatpush.msra.mxu0 %v228
  %270 = vmatmul.f32.gmra.mxu0 %v231
  %v271 = vpop.f32.mrf.mxu0
  %v272 = vadd.f32 0.0, %v271
  %273 = vmatmul.f32.gmra.mxu0 %v234
  %v274 = vpop.f32.mrf.mxu0
  %v275 = vadd.f32 0.0, %v274
  %276 = vmatmul.f32.gmra.mxu0 %v237
  %v277 = vpop.f32.mrf.mxu0
  %v278 = vadd.f32 0.0, %v277
  %279 = vmatmul.f32.gmra.mxu0 %v240
  %v280 = vpop.f32.mrf.mxu0
  %v281 = vadd.f32 0.0, %v280
  %282 = vmatmul.f32.gmra.mxu0 %v243
  %v283 = vpop.f32.mrf.mxu0
  %v284 = vadd.f32 0.0, %v283
  %285 = vmatmul.f32.gmra.mxu0 %v246
  %v286 = vpop.f32.mrf.mxu0
  %v287 = vadd.f32 0.0, %v286
  %288 = vmatmul.f32.gmra.mxu0 %v249
  %v289 = vpop.f32.mrf.mxu0
  %v290 = vadd.f32 0.0, %v289
  %291 = vmatmul.f32.gmra.mxu0 %v252
  %v292 = vpop.f32.mrf.mxu0
  %v293 = vadd.f32 0.0, %v292
  %294 = vdwg.mxu0
  %v296 = vsel %vm204, %v217, 0
  %298 = vmatpush.msra.mxu0 0.0
  %299 = vmatpush.msra.mxu0 0.0
  %300 = vmatpush.msra.mxu0 0.0
  %301 = vmatpush.msra.mxu0 0.0
  %302 = vmatpush.msra.mxu0 0.0
  %303 = vmatpush.msra.mxu0 0.0
  %304 = vmatpush.msra.mxu0 0.0
  %305 = vmatpush.msra.mxu0 0.0
  %306 = vmatpush.msra.mxu0 0.0
  %307 = vmatpush.msra.mxu0 0.0
  %308 = vmatpush.msra.mxu0 0.0
  %309 = vmatpush.msra.mxu0 0.0
  %310 = vmatpush.msra.mxu0 0.0
  %311 = vmatpush.msra.mxu0 0.0
  %312 = vmatpush.msra.mxu0 %v226
  %313 = vmatpush.msra.mxu0 %v225
  %314 = vmatmul.f32.gmra.mxu0 %v296
  %v315 = vpop.f32.mrf.mxu0
  %v316 = vadd.f32 %v272, %v315
  %317 = vmatmul.f32.gmra.mxu0 %v231
  %v318 = vpop.f32.mrf.mxu0
  %v319 = vadd.f32 %v275, %v318
  %320 = vmatmul.f32.gmra.mxu0 %v234
  %v321 = vpop.f32.mrf.mxu0
  %v322 = vadd.f32 %v278, %v321
  %323 = vmatmul.f32.gmra.mxu0 %v237
  %v324 = vpop.f32.mrf.mxu0
  %v325 = vadd.f32 %v281, %v324
  %326 = vmatmul.f32.gmra.mxu0 %v240
  %v327 = vpop.f32.mrf.mxu0
  %v328 = vadd.f32 %v284, %v327
  %329 = vmatmul.f32.gmra.mxu0 %v243
  %v330 = vpop.f32.mrf.mxu0
  %v331 = vadd.f32 %v287, %v330
  %332 = vmatmul.f32.gmra.mxu0 %v246
  %v333 = vpop.f32.mrf.mxu0
  %v334 = vadd.f32 %v290, %v333
  %335 = vmatmul.f32.gmra.mxu0 %v249
  %v336 = vpop.f32.mrf.mxu0
  %v337 = vadd.f32 %v293, %v336
  %338 = vdwg.mxu0
  %v339 = vld [vmem:[#allocation2 + $0x10] sm:$0xff]
  %v340 = vld [vmem:[#allocation2 + $0x18] sm:$0xff]
  %v341 = vld [vmem:[#allocation2 + $0x20] sm:$0xff]
  %v342 = vld [vmem:[#allocation2 + $0x28] sm:$0xff]
  %v343 = vld [vmem:[#allocation2 + $0x30] sm:$0xff]
  %v344 = vld [vmem:[#allocation2 + $0x38] sm:$0xff]
  %v345 = vld [vmem:[#allocation2 + $0x40] sm:$0xff]
  %v346 = vld [vmem:[#allocation2 + $0x48] sm:$0xff]
  %v347 = vld [vmem:[%s2 + $0x20] sm:$0xff]
  %v348 = vld [vmem:[%s2 + $0x28] sm:$0xff]
  %v350 = vsel %vm204, %v339, 0
  %v353 = vsel %vm204, %v340, 0
  %v356 = vsel %vm204, %v341, 0
  %v359 = vsel %vm204, %v342, 0
  %v362 = vsel %vm204, %v343, 0
  %v365 = vsel %vm204, %v344, 0
  %v368 = vsel %vm204, %v345, 0
  %v371 = vsel %vm204, %v346, 0
  %373 = vmatpush.msra.mxu0 0.0
  %374 = vmatpush.msra.mxu0 0.0
  %375 = vmatpush.msra.mxu0 0.0
  %376 = vmatpush.msra.mxu0 0.0
  %377 = vmatpush.msra.mxu0 0.0
  %378 = vmatpush.msra.mxu0 0.0
  %379 = vmatpush.msra.mxu0 0.0
  %380 = vmatpush.msra.mxu0 0.0
  %381 = vmatpush.msra.mxu0 0.0
  %382 = vmatpush.msra.mxu0 0.0
  %383 = vmatpush.msra.mxu0 0.0
  %384 = vmatpush.msra.mxu0 0.0
  %385 = vmatpush.msra.mxu0 0.0
  %386 = vmatpush.msra.mxu0 0.0
  %387 = vmatpush.msra.mxu0 %v348
  %388 = vmatpush.msra.mxu0 %v347
  %389 = vmatmul.f32.gmra.mxu0 %v350
  %v390 = vpop.f32.mrf.mxu0
  %v391 = vadd.f32 0.0, %v390
  %392 = vmatmul.f32.gmra.mxu0 %v353
  %v393 = vpop.f32.mrf.mxu0
  %v394 = vadd.f32 0.0, %v393
  %395 = vmatmul.f32.gmra.mxu0 %v356
  %v396 = vpop.f32.mrf.mxu0
  %v397 = vadd.f32 0.0, %v396
  %398 = vmatmul.f32.gmra.mxu0 %v359
  %v399 = vpop.f32.mrf.mxu0
  %v400 = vadd.f32 0.0, %v399
  %401 = vmatmul.f32.gmra.mxu0 %v362
  %v402 = vpop.f32.mrf.mxu0
  %v403 = vadd.f32 0.0, %v402
  %404 = vmatmul.f32.gmra.mxu0 %v365
  %v405 = vpop.f32.mrf.mxu0
  %v406 = vadd.f32 0.0, %v405
  %407 = vmatmul.f32.gmra.mxu0 %v368
  %v408 = vpop.f32.mrf.mxu0
  %v409 = vadd.f32 0.0, %v408
  %410 = vmatmul.f32.gmra.mxu0 %v371
  %v411 = vpop.f32.mrf.mxu0
  %v412 = vadd.f32 0.0, %v411
  %413 = vdwg.mxu0
  %v414 = vadd.f32 %v316, %v391
  %v415 = vadd.f32 %v319, %v394
  %v416 = vadd.f32 %v322, %v397
  %v417 = vadd.f32 %v325, %v400
  %v418 = vadd.f32 %v328, %v403
  %v419 = vadd.f32 %v331, %v406
  %v420 = vadd.f32 %v334, %v409
  %v421 = vadd.f32 %v337, %v412
  %v422 = vld [vmem:[#allocation2 + $0x18] sm:$0xff]
  %v423 = vld [vmem:[#allocation2 + $0x20] sm:$0xff]
  %v424 = vld [vmem:[#allocation2 + $0x28] sm:$0xff]
  %v425 = vld [vmem:[#allocation2 + $0x30] sm:$0xff]
  %v426 = vld [vmem:[#allocation2 + $0x38] sm:$0xff]
  %v427 = vld [vmem:[#allocation2 + $0x40] sm:$0xff]
  %v428 = vld [vmem:[#allocation2 + $0x48] sm:$0xff]
  %v429 = vld [vmem:[#allocation2 + $0x50] sm:$0xff]
  %v430 = vld [vmem:[%s2 + $0x30] sm:$0xff]
  %v431 = vld [vmem:[%s2 + $0x38] sm:$0xff]
  %v433 = vsel %vm204, %v422, 0
  %v436 = vsel %vm204, %v423, 0
  %v439 = vsel %vm204, %v424, 0
  %v442 = vsel %vm204, %v425, 0
  %v445 = vsel %vm204, %v426, 0
  %v448 = vsel %vm204, %v427, 0
  %v451 = vsel %vm204, %v428, 0
  %v454 = vsel %vm204, %v429, 0
  %456 = vmatpush.msra.mxu0 0.0
  %457 = vmatpush.msra.mxu0 0.0
  %458 = vmatpush.msra.mxu0 0.0
  %459 = vmatpush.msra.mxu0 0.0
  %460 = vmatpush.msra.mxu0 0.0
  %461 = vmatpush.msra.mxu0 0.0
  %462 = vmatpush.msra.mxu0 0.0
  %463 = vmatpush.msra.mxu0 0.0
  %464 = vmatpush.msra.mxu0 0.0
  %465 = vmatpush.msra.mxu0 0.0
  %466 = vmatpush.msra.mxu0 0.0
  %467 = vmatpush.msra.mxu0 0.0
  %468 = vmatpush.msra.mxu0 0.0
  %469 = vmatpush.msra.mxu0 0.0
  %470 = vmatpush.msra.mxu0 %v431
  %471 = vmatpush.msra.mxu0 %v430
  %472 = vmatmul.f32.gmra.mxu0 %v433
  %v473 = vpop.f32.mrf.mxu0
  %v474 = vadd.f32 0.0, %v473
  %475 = vmatmul.f32.gmra.mxu0 %v436
  %v476 = vpop.f32.mrf.mxu0
  %v477 = vadd.f32 0.0, %v476
  %478 = vmatmul.f32.gmra.mxu0 %v439
  %v479 = vpop.f32.mrf.mxu0
  %v480 = vadd.f32 0.0, %v479
  %481 = vmatmul.f32.gmra.mxu0 %v442
  %v482 = vpop.f32.mrf.mxu0
  %v483 = vadd.f32 0.0, %v482
  %484 = vmatmul.f32.gmra.mxu0 %v445
  %v485 = vpop.f32.mrf.mxu0
  %v486 = vadd.f32 0.0, %v485
  %487 = vmatmul.f32.gmra.mxu0 %v448
  %v488 = vpop.f32.mrf.mxu0
  %v489 = vadd.f32 0.0, %v488
  %490 = vmatmul.f32.gmra.mxu0 %v451
  %v491 = vpop.f32.mrf.mxu0
  %v492 = vadd.f32 0.0, %v491
  %493 = vmatmul.f32.gmra.mxu0 %v454
  %v494 = vpop.f32.mrf.mxu0
  %v495 = vadd.f32 0.0, %v494
  %496 = vdwg.mxu0
  %v497 = vadd.f32 %v414, %v474
  %v498 = vadd.f32 %v415, %v477
  %v499 = vadd.f32 %v416, %v480
  %v500 = vadd.f32 %v417, %v483
  %v501 = vadd.f32 %v418, %v486
  %v502 = vadd.f32 %v419, %v489
  %v503 = vadd.f32 %v420, %v492
  %v504 = vadd.f32 %v421, %v495
  %v505 = vld [vmem:[#allocation2 + $0x20] sm:$0xff]
  %v506 = vld [vmem:[#allocation2 + $0x28] sm:$0xff]
  %v507 = vld [vmem:[#allocation2 + $0x30] sm:$0xff]
  %v508 = vld [vmem:[#allocation2 + $0x38] sm:$0xff]
  %v509 = vld [vmem:[#allocation2 + $0x40] sm:$0xff]
  %v510 = vld [vmem:[#allocation2 + $0x48] sm:$0xff]
  %v511 = vld [vmem:[#allocation2 + $0x50] sm:$0xff]
  %v512 = vld [vmem:[#allocation2 + $0x58] sm:$0xff]
  %v513 = vld [vmem:[%s2 + $0x40] sm:$0xff]
  %v514 = vld [vmem:[%s2 + $0x48] sm:$0xff]
  %v516 = vsel %vm204, %v505, 0
  %v519 = vsel %vm204, %v506, 0
  %v522 = vsel %vm204, %v507, 0
  %v525 = vsel %vm204, %v508, 0
  %v528 = vsel %vm204, %v509, 0
  %v531 = vsel %vm204, %v510, 0
  %v534 = vsel %vm204, %v511, 0
  %v537 = vsel %vm204, %v512, 0
  %539 = vmatpush.msra.mxu0 0.0
  %540 = vmatpush.msra.mxu0 0.0
  %541 = vmatpush.msra.mxu0 0.0
  %542 = vmatpush.msra.mxu0 0.0
  %543 = vmatpush.msra.mxu0 0.0
  %544 = vmatpush.msra.mxu0 0.0
  %545 = vmatpush.msra.mxu0 0.0
  %546 = vmatpush.msra.mxu0 0.0
  %547 = vmatpush.msra.mxu0 0.0
  %548 = vmatpush.msra.mxu0 0.0
  %549 = vmatpush.msra.mxu0 0.0
  %550 = vmatpush.msra.mxu0 0.0
  %551 = vmatpush.msra.mxu0 0.0
  %552 = vmatpush.msra.mxu0 0.0
  %553 = vmatpush.msra.mxu0 %v514
  %554 = vmatpush.msra.mxu0 %v513
  %555 = vmatmul.f32.gmra.mxu0 %v516
  %v556 = vpop.f32.mrf.mxu0
  %v557 = vadd.f32 0.0, %v556
  %558 = vmatmul.f32.gmra.mxu0 %v519
  %v559 = vpop.f32.mrf.mxu0
  %v560 = vadd.f32 0.0, %v559
  %561 = vmatmul.f32.gmra.mxu0 %v522
  %v562 = vpop.f32.mrf.mxu0
  %v563 = vadd.f32 0.0, %v562
  %564 = vmatmul.f32.gmra.mxu0 %v525
  %v565 = vpop.f32.mrf.mxu0
  %v566 = vadd.f32 0.0, %v565
  %567 = vmatmul.f32.gmra.mxu0 %v528
  %v568 = vpop.f32.mrf.mxu0
  %v569 = vadd.f32 0.0, %v568
  %570 = vmatmul.f32.gmra.mxu0 %v531
  %v571 = vpop.f32.mrf.mxu0
  %v572 = vadd.f32 0.0, %v571
  %573 = vmatmul.f32.gmra.mxu0 %v534
  %v574 = vpop.f32.mrf.mxu0
  %v575 = vadd.f32 0.0, %v574
  %576 = vmatmul.f32.gmra.mxu0 %v537
  %v577 = vpop.f32.mrf.mxu0
  %v578 = vadd.f32 0.0, %v577
  %579 = vdwg.mxu0
  %v580 = vadd.f32 %v497, %v557
  %v581 = vadd.f32 %v498, %v560
  %v582 = vadd.f32 %v499, %v563
  %v583 = vadd.f32 %v500, %v566
  %v584 = vadd.f32 %v501, %v569
  %v585 = vadd.f32 %v502, %v572
  %v586 = vadd.f32 %v503, %v575
  %v587 = vadd.f32 %v504, %v578
  %v588 = vld [vmem:[%s3] sm:$0x1]
  %v590 = vperm.slane %v588, 0
  %v592 = vmul.f32 %v580, %v590
  %v593 = vmul.f32 %v581, %v590
  %v594 = vmul.f32 %v582, %v590
  %v595 = vmul.f32 %v583, %v590
  %v596 = vmul.f32 %v584, %v590
  %v597 = vmul.f32 %v585, %v590
  %v598 = vmul.f32 %v586, %v590
  %v599 = vmul.f32 %v587, %v590
  %v600 = vld [vmem:[%s4] sm:$0x1]
  %v602 = vperm.slane %v600, 0
  %v604 = vadd.f32 %v592, %v602
  %v605 = vadd.f32 %v593, %v602
  %v606 = vadd.f32 %v594, %v602
  %v607 = vadd.f32 %v595, %v602
  %v608 = vadd.f32 %v596, %v602
  %v609 = vadd.f32 %v597, %v602
  %v610 = vadd.f32 %v598, %v602
  %v611 = vadd.f32 %v599, %v602
  %v612 = vmax.f32 %v604, 0.0
  %v613 = vmax.f32 %v605, 0.0
  %v614 = vmax.f32 %v606, 0.0
  %v615 = vmax.f32 %v607, 0.0
  %v616 = vmax.f32 %v608, 0.0
  %v617 = vmax.f32 %v609, 0.0
  %v618 = vmax.f32 %v610, 0.0
  %v619 = vmax.f32 %v611, 0.0
  %v620 = vld [vmem:[%s5] sm:$0xff]
  %v621 = vld [vmem:[%s5 + $0x8] sm:$0xff]
  %v622 = vld [vmem:[%s5 + $0x10] sm:$0xff]
  %v623 = vld [vmem:[%s5 + $0x18] sm:$0xff]
  %v624 = vld [vmem:[%s6] sm:$0xff]
  %v625 = vld [vmem:[%s6 + $0x8] sm:$0xff]
  %v626 = vld [vmem:[%s6 + $0x10] sm:$0xff]
  %v627 = vld [vmem:[%s6 + $0x18] sm:$0xff]
  %v628 = vld [vmem:[%s7] sm:$0x1]
  %v630 = vsel %vm204, %v612, 0
  %v633 = vsel %vm204, %v613, 0
  %v636 = vsel %vm204, %v614, 0
  %v639 = vsel %vm204, %v615, 0
  %v642 = vsel %vm204, %v616, 0
  %v645 = vsel %vm204, %v617, 0
  %v648 = vsel %vm204, %v618, 0
  %v651 = vsel %vm204, %v619, 0
  %653 = vmatpush.msra.mxu0 0.0
  %654 = vmatpush.msra.mxu0 0.0
  %655 = vmatpush.msra.mxu0 0.0
  %656 = vmatpush.msra.mxu0 0.0
  %657 = vmatpush.msra.mxu0 0.0
  %658 = vmatpush.msra.mxu0 0.0
  %659 = vmatpush.msra.mxu0 0.0
  %660 = vmatpush.msra.mxu0 0.0
  %661 = vmatpush.msra.mxu0 0.0
  %662 = vmatpush.msra.mxu0 0.0
  %663 = vmatpush.msra.mxu0 0.0
  %664 = vmatpush.msra.mxu0 0.0
  %665 = vmatpush.msra.mxu0 0.0
  %666 = vmatpush.msra.mxu0 0.0
  %667 = vmatpush.msra.mxu0 %v622
  %668 = vmatpush.msra.mxu0 %v620
  %669 = vmatmul.f32.gmra.mxu0 %v630
  %v670 = vpop.f32.mrf.mxu0
  %v671 = vadd.f32 0.0, %v670
  %672 = vmatmul.f32.gmra.mxu0 %v633
  %v673 = vpop.f32.mrf.mxu0
  %v674 = vadd.f32 0.0, %v673
  %675 = vmatmul.f32.gmra.mxu0 %v636
  %v676 = vpop.f32.mrf.mxu0
  %v677 = vadd.f32 0.0, %v676
  %678 = vmatmul.f32.gmra.mxu0 %v639
  %v679 = vpop.f32.mrf.mxu0
  %v680 = vadd.f32 0.0, %v679
  %681 = vmatmul.f32.gmra.mxu0 %v642
  %v682 = vpop.f32.mrf.mxu0
  %v683 = vadd.f32 0.0, %v682
  %684 = vmatmul.f32.gmra.mxu0 %v645
  %v685 = vpop.f32.mrf.mxu0
  %v686 = vadd.f32 0.0, %v685
  %687 = vmatmul.f32.gmra.mxu0 %v648
  %v688 = vpop.f32.mrf.mxu0
  %v689 = vadd.f32 0.0, %v688
  %690 = vmatmul.f32.gmra.mxu0 %v651
  %v691 = vpop.f32.mrf.mxu0
  %v692 = vadd.f32 0.0, %v691
  %693 = vdwg.mxu0
  %694 = vmatpush.msra.mxu0 0.0
  %695 = vmatpush.msra.mxu0 0.0
  %696 = vmatpush.msra.mxu0 0.0
  %697 = vmatpush.msra.mxu0 0.0
  %698 = vmatpush.msra.mxu0 0.0
  %699 = vmatpush.msra.mxu0 0.0
  %700 = vmatpush.msra.mxu0 0.0
  %701 = vmatpush.msra.mxu0 0.0
  %702 = vmatpush.msra.mxu0 0.0
  %703 = vmatpush.msra.mxu0 0.0
  %704 = vmatpush.msra.mxu0 0.0
  %705 = vmatpush.msra.mxu0 0.0
  %706 = vmatpush.msra.mxu0 0.0
  %707 = vmatpush.msra.mxu0 0.0
  %708 = vmatpush.msra.mxu0 %v623
  %709 = vmatpush.msra.mxu0 %v621
  %710 = vmatmul.f32.gmra.mxu0 %v630
  %v711 = vpop.f32.mrf.mxu0
  %v712 = vadd.f32 0.0, %v711
  %713 = vmatmul.f32.gmra.mxu0 %v633
  %v714 = vpop.f32.mrf.mxu0
  %v715 = vadd.f32 0.0, %v714
  %716 = vmatmul.f32.gmra.mxu0 %v636
  %v717 = vpop.f32.mrf.mxu0
  %v718 = vadd.f32 0.0, %v717
  %719 = vmatmul.f32.gmra.mxu0 %v639
  %v720 = vpop.f32.mrf.mxu0
  %v721 = vadd.f32 0.0, %v720
  %722 = vmatmul.f32.gmra.mxu0 %v642
  %v723 = vpop.f32.mrf.mxu0
  %v724 = vadd.f32 0.0, %v723
  %725 = vmatmul.f32.gmra.mxu0 %v645
  %v726 = vpop.f32.mrf.mxu0
  %v727 = vadd.f32 0.0, %v726
  %728 = vmatmul.f32.gmra.mxu0 %v648
  %v729 = vpop.f32.mrf.mxu0
  %v730 = vadd.f32 0.0, %v729
  %731 = vmatmul.f32.gmra.mxu0 %v651
  %v732 = vpop.f32.mrf.mxu0
  %v733 = vadd.f32 0.0, %v732
  %734 = vdwg.mxu0
  %v736 = vperm.slane %v628, 0
  %vm738 = vcmask 261120
  %v740 = vsel %vm738, 0.0, 0
  %742 = vmatpush.msra.mxu0 0.0
  %743 = vmatpush.msra.mxu0 0.0
  %744 = vmatpush.msra.mxu0 0.0
  %745 = vmatpush.msra.mxu0 0.0
  %746 = vmatpush.msra.mxu0 0.0
  %747 = vmatpush.msra.mxu0 0.0
  %748 = vmatpush.msra.mxu0 0.0
  %749 = vmatpush.msra.mxu0 0.0
  %750 = vmatpush.msra.mxu0 0.0
  %751 = vmatpush.msra.mxu0 0.0
  %752 = vmatpush.msra.mxu0 0.0
  %753 = vmatpush.msra.mxu0 0.0
  %754 = vmatpush.msra.mxu0 %v627
  %755 = vmatpush.msra.mxu0 %v626
  %756 = vmatpush.msra.mxu0 %v625
  %757 = vmatpush.msra.mxu0 %v624
  %758 = vmatmul.f32.gmra.mxu0 %v740
  %v759 = vpop.f32.mrf.mxu0
  %v760 = vadd.f32 %v736, %v759
  %761 = vdwg.mxu0
  %v762 = vadd.f32 %v760, %v671
  %v763 = vadd.f32 %v762, %v733
  %v764 = vxor.u32 %v763, 2147483648
  %v765 = vmul.f32 %v764, 1.442695
  %v766 = vpow.pop %v765
  %v767 = vadd.f32 %v766, 1.0
  %v768 = vrcp.pop %v767
  %v769 = vmul.f32 %v767, %v768
  %v770 = vsub.f32 1.0, %v769
  %v771 = vmul.f32 %v768, %v770
  %v772 = vadd.f32 %v768, %v771
  %vm773 = vweird.f32 %v767
  %vm774 = vweird.f32 %v768
  %vm775 = vmor %vm773, %vm774
  %v776 = vsel %vm775, %v768, %v772
  %v777 = vand.u32 2147483647, %v767
  %vm778 = vcmp.eq.f32.partialorder %v777, 8.507059e+37
  %v779 = vand.u32 %v767, 2147483648
  %v780 = vor.u32 1.1754944e-38, %v779
  %v781 = vsel %vm778, %v780, %v776
  %v782 = vmul.f32 1.0, %v781
  %v783 = vtanh.pop %v763
  %v784 = vmul.f32 %v782, 0.0
  %786 = vrot.lane.b32.xlu0 %v783, 32
  %v787 = vpop.permute.xlu0 %786
  %v789 = vmul.f32 %v782, %v787
  %791 = vrot.lane.b32.xlu0 %v789, 32
  %v792 = vpop.permute.xlu0 %791
  %v794 = vadd.f32 %v784, %v792
  %v795 = vtanh.pop %v794
  %797 = vrot.lane.b32.xlu0 %v795, 32
  %v798 = vpop.permute.xlu0 %797
  %v800 = vmul.f32 %v782, %v798
  %802 = vrot.lane.b32.xlu0 %v800, 64
  %v803 = vpop.permute.xlu0 %802
  %805 = vst.msk [vmem:[#allocation3] sm:$0xff] %vm204, %v803
  %vm806 = vcmask 261248
  %807 = vst.msk [vmem:[#allocation3 + $0x38] sm:$0xff] %vm806, %v803
  %v808 = vsel %vm738, %v803, 0
  %810 = vmatpush.msra.mxu0 0.0
  %811 = vmatpush.msra.mxu0 0.0
  %812 = vmatpush.msra.mxu0 0.0
  %813 = vmatpush.msra.mxu0 0.0
  %814 = vmatpush.msra.mxu0 0.0
  %815 = vmatpush.msra.mxu0 0.0
  %816 = vmatpush.msra.mxu0 0.0
  %817 = vmatpush.msra.mxu0 0.0
  %818 = vmatpush.msra.mxu0 0.0
  %819 = vmatpush.msra.mxu0 0.0
  %820 = vmatpush.msra.mxu0 0.0
  %821 = vmatpush.msra.mxu0 0.0
  %822 = vmatpush.msra.mxu0 %v627
  %823 = vmatpush.msra.mxu0 %v626
  %824 = vmatpush.msra.mxu0 %v625
  %825 = vmatpush.msra.mxu0 %v624
  %826 = vmatmul.f32.gmra.mxu0 %v808
  %v827 = vpop.f32.mrf.mxu0
  %v828 = vadd.f32 %v736, %v827
  %829 = vdwg.mxu0
  %v830 = vadd.f32 %v828, %v674
  %v831 = vadd.f32 %v830, %v730
  %v832 = vxor.u32 %v831, 2147483648
  %v833 = vmul.f32 %v832, 1.442695
  %v834 = vpow.pop %v833
  %v835 = vadd.f32 %v834, 1.0
  %v836 = vrcp.pop %v835
  %v837 = vmul.f32 %v835, %v836
  %v838 = vsub.f32 1.0, %v837
  %v839 = vmul.f32 %v836, %v838
  %v840 = vadd.f32 %v836, %v839
  %vm841 = vweird.f32 %v835
  %vm842 = vweird.f32 %v836
  %vm843 = vmor %vm841, %vm842
  %v844 = vsel %vm843, %v836, %v840
  %v845 = vand.u32 2147483647, %v835
  %vm846 = vcmp.eq.f32.partialorder %v845, 8.507059e+37
  %v847 = vand.u32 %v835, 2147483648
  %v848 = vor.u32 1.1754944e-38, %v847
  %v849 = vsel %vm846, %v848, %v844
  %v850 = vmul.f32 1.0, %v849
  %v851 = vtanh.pop %v831
  %v852 = vmul.f32 %v850, %v794
  %854 = vrot.lane.b32.xlu0 %v851, 32
  %v855 = vpop.permute.xlu0 %854
  %v857 = vmul.f32 %v850, %v855
  %859 = vrot.lane.b32.xlu0 %v857, 32
  %v860 = vpop.permute.xlu0 %859
  %v862 = vadd.f32 %v852, %v860
  %v863 = vtanh.pop %v862
  %865 = vrot.lane.b32.xlu0 %v863, 32
  %v866 = vpop.permute.xlu0 %865
  %v868 = vmul.f32 %v850, %v866
  %870 = vrot.lane.b32.xlu0 %v868, 64
  %v871 = vpop.permute.xlu0 %870
  %873 = vst.msk [vmem:[#allocation3 + $0x8] sm:$0xff] %vm204, %v871
  %874 = vst.msk [vmem:[#allocation3 + $0x30] sm:$0xff] %vm806, %v871
  %v875 = vsel %vm738, %v871, 0
  %877 = vmatpush.msra.mxu0 0.0
  %878 = vmatpush.msra.mxu0 0.0
  %879 = vmatpush.msra.mxu0 0.0
  %880 = vmatpush.msra.mxu0 0.0
  %881 = vmatpush.msra.mxu0 0.0
  %882 = vmatpush.msra.mxu0 0.0
  %883 = vmatpush.msra.mxu0 0.0
  %884 = vmatpush.msra.mxu0 0.0
  %885 = vmatpush.msra.mxu0 0.0
  %886 = vmatpush.msra.mxu0 0.0
  %887 = vmatpush.msra.mxu0 0.0
  %888 = vmatpush.msra.mxu0 0.0
  %889 = vmatpush.msra.mxu0 %v627
  %890 = vmatpush.msra.mxu0 %v626
  %891 = vmatpush.msra.mxu0 %v625
  %892 = vmatpush.msra.mxu0 %v624
  %893 = vmatmul.f32.gmra.mxu0 %v875
  %v894 = vpop.f32.mrf.mxu0
  %v895 = vadd.f32 %v736, %v894
  %896 = vdwg.mxu0
  %v897 = vadd.f32 %v895, %v677
  %v898 = vadd.f32 %v897, %v727
  %v899 = vxor.u32 %v898, 2147483648
  %v900 = vmul.f32 %v899, 1.442695
  %v901 = vpow.pop %v900
  %v902 = vadd.f32 %v901, 1.0
  %v903 = vrcp.pop %v902
  %v904 = vmul.f32 %v902, %v903
  %v905 = vsub.f32 1.0, %v904
  %v906 = vmul.f32 %v903, %v905
  %v907 = vadd.f32 %v903, %v906
  %vm908 = vweird.f32 %v902
  %vm909 = vweird.f32 %v903
  %vm910 = vmor %vm908, %vm909
  %v911 = vsel %vm910, %v903, %v907
  %v912 = vand.u32 2147483647, %v902
  %vm913 = vcmp.eq.f32.partialorder %v912, 8.507059e+37
  %v914 = vand.u32 %v902, 2147483648
  %v915 = vor.u32 1.1754944e-38, %v914
  %v916 = vsel %vm913, %v915, %v911
  %v917 = vmul.f32 1.0, %v916
  %v918 = vtanh.pop %v898
  %v919 = vmul.f32 %v917, %v862
  %921 = vrot.lane.b32.xlu0 %v918, 32
  %v922 = vpop.permute.xlu0 %921
  %v924 = vmul.f32 %v917, %v922
  %926 = vrot.lane.b32.xlu0 %v924, 32
  %v927 = vpop.permute.xlu0 %926
  %v929 = vadd.f32 %v919, %v927
  %v930 = vtanh.pop %v929
  %932 = vrot.lane.b32.xlu0 %v930, 32
  %v933 = vpop.permute.xlu0 %932
  %v935 = vmul.f32 %v917, %v933
  %937 = vrot.lane.b32.xlu0 %v935, 64
  %v938 = vpop.permute.xlu0 %937
  %940 = vst.msk [vmem:[#allocation3 + $0x10] sm:$0xff] %vm204, %v938
  %941 = vst.msk [vmem:[#allocation3 + $0x28] sm:$0xff] %vm806, %v938
  %v942 = vsel %vm738, %v938, 0
  %944 = vmatpush.msra.mxu0 0.0
  %945 = vmatpush.msra.mxu0 0.0
  %946 = vmatpush.msra.mxu0 0.0
  %947 = vmatpush.msra.mxu0 0.0
  %948 = vmatpush.msra.mxu0 0.0
  %949 = vmatpush.msra.mxu0 0.0
  %950 = vmatpush.msra.mxu0 0.0
  %951 = vmatpush.msra.mxu0 0.0
  %952 = vmatpush.msra.mxu0 0.0
  %953 = vmatpush.msra.mxu0 0.0
  %954 = vmatpush.msra.mxu0 0.0
  %955 = vmatpush.msra.mxu0 0.0
  %956 = vmatpush.msra.mxu0 %v627
  %957 = vmatpush.msra.mxu0 %v626
  %958 = vmatpush.msra.mxu0 %v625
  %959 = vmatpush.msra.mxu0 %v624
  %960 = vmatmul.f32.gmra.mxu0 %v942
  %v961 = vpop.f32.mrf.mxu0
  %v962 = vadd.f32 %v736, %v961
  %963 = vdwg.mxu0
  %v964 = vadd.f32 %v962, %v680
  %v965 = vadd.f32 %v964, %v724
  %v966 = vxor.u32 %v965, 2147483648
  %v967 = vmul.f32 %v966, 1.442695
  %v968 = vpow.pop %v967
  %v969 = vadd.f32 %v968, 1.0
  %v970 = vrcp.pop %v969
  %v971 = vmul.f32 %v969, %v970
  %v972 = vsub.f32 1.0, %v971
  %v973 = vmul.f32 %v970, %v972
  %v974 = vadd.f32 %v970, %v973
  %vm975 = vweird.f32 %v969
  %vm976 = vweird.f32 %v970
  %vm977 = vmor %vm975, %vm976
  %v978 = vsel %vm977, %v970, %v974
  %v979 = vand.u32 2147483647, %v969
  %vm980 = vcmp.eq.f32.partialorder %v979, 8.507059e+37
  %v981 = vand.u32 %v969, 2147483648
  %v982 = vor.u32 1.1754944e-38, %v981
  %v983 = vsel %vm980, %v982, %v978
  %v984 = vmul.f32 1.0, %v983
  %v985 = vtanh.pop %v965
  %v986 = vmul.f32 %v984, %v929
  %988 = vrot.lane.b32.xlu0 %v985, 32
  %v989 = vpop.permute.xlu0 %988
  %v991 = vmul.f32 %v984, %v989
  %993 = vrot.lane.b32.xlu0 %v991, 32
  %v994 = vpop.permute.xlu0 %993
  %v996 = vadd.f32 %v986, %v994
  %v997 = vtanh.pop %v996
  %999 = vrot.lane.b32.xlu0 %v997, 32
  %v1000 = vpop.permute.xlu0 %999
  %v1002 = vmul.f32 %v984, %v1000
  %1004 = vrot.lane.b32.xlu0 %v1002, 64
  %v1005 = vpop.permute.xlu0 %1004
  %1007 = vst.msk [vmem:[#allocation3 + $0x18] sm:$0xff] %vm204, %v1005
  %1008 = vst.msk [vmem:[#allocation3 + $0x20] sm:$0xff] %vm806, %v1005
  %v1009 = vsel %vm738, %v1005, 0
  %1011 = vmatpush.msra.mxu0 0.0
  %1012 = vmatpush.msra.mxu0 0.0
  %1013 = vmatpush.msra.mxu0 0.0
  %1014 = vmatpush.msra.mxu0 0.0
  %1015 = vmatpush.msra.mxu0 0.0
  %1016 = vmatpush.msra.mxu0 0.0
  %1017 = vmatpush.msra.mxu0 0.0
  %1018 = vmatpush.msra.mxu0 0.0
  %1019 = vmatpush.msra.mxu0 0.0
  %1020 = vmatpush.msra.mxu0 0.0
  %1021 = vmatpush.msra.mxu0 0.0
  %1022 = vmatpush.msra.mxu0 0.0
  %1023 = vmatpush.msra.mxu0 %v627
  %1024 = vmatpush.msra.mxu0 %v626
  %1025 = vmatpush.msra.mxu0 %v625
  %1026 = vmatpush.msra.mxu0 %v624
  %1027 = vmatmul.f32.gmra.mxu0 %v1009
  %v1028 = vpop.f32.mrf.mxu0
  %v1029 = vadd.f32 %v736, %v1028
  %1030 = vdwg.mxu0
  %v1031 = vadd.f32 %v1029, %v683
  %v1032 = vadd.f32 %v1031, %v721
  %v1033 = vxor.u32 %v1032, 2147483648
  %v1034 = vmul.f32 %v1033, 1.442695
  %v1035 = vpow.pop %v1034
  %v1036 = vadd.f32 %v1035, 1.0
  %v1037 = vrcp.pop %v1036
  %v1038 = vmul.f32 %v1036, %v1037
  %v1039 = vsub.f32 1.0, %v1038
  %v1040 = vmul.f32 %v1037, %v1039
  %v1041 = vadd.f32 %v1037, %v1040
  %vm1042 = vweird.f32 %v1036
  %vm1043 = vweird.f32 %v1037
  %vm1044 = vmor %vm1042, %vm1043
  %v1045 = vsel %vm1044, %v1037, %v1041
  %v1046 = vand.u32 2147483647, %v1036
  %vm1047 = vcmp.eq.f32.partialorder %v1046, 8.507059e+37
  %v1048 = vand.u32 %v1036, 2147483648
  %v1049 = vor.u32 1.1754944e-38, %v1048
  %v1050 = vsel %vm1047, %v1049, %v1045
  %v1051 = vmul.f32 1.0, %v1050
  %v1052 = vtanh.pop %v1032
  %v1053 = vmul.f32 %v1051, %v996
  %1055 = vrot.lane.b32.xlu0 %v1052, 32
  %v1056 = vpop.permute.xlu0 %1055
  %v1058 = vmul.f32 %v1051, %v1056
  %1060 = vrot.lane.b32.xlu0 %v1058, 32
  %v1061 = vpop.permute.xlu0 %1060
  %v1063 = vadd.f32 %v1053, %v1061
  %v1064 = vtanh.pop %v1063
  %1066 = vrot.lane.b32.xlu0 %v1064, 32
  %v1067 = vpop.permute.xlu0 %1066
  %v1069 = vmul.f32 %v1051, %v1067
  %1071 = vrot.lane.b32.xlu0 %v1069, 64
  %v1072 = vpop.permute.xlu0 %1071
  %1074 = vst.msk [vmem:[#allocation3 + $0x20] sm:$0xff] %vm204, %v1072
  %1075 = vst.msk [vmem:[#allocation3 + $0x18] sm:$0xff] %vm806, %v1072
  %v1076 = vsel %vm738, %v1072, 0
  %1078 = vmatpush.msra.mxu0 0.0
  %1079 = vmatpush.msra.mxu0 0.0
  %1080 = vmatpush.msra.mxu0 0.0
  %1081 = vmatpush.msra.mxu0 0.0
  %1082 = vmatpush.msra.mxu0 0.0
  %1083 = vmatpush.msra.mxu0 0.0
  %1084 = vmatpush.msra.mxu0 0.0
  %1085 = vmatpush.msra.mxu0 0.0
  %1086 = vmatpush.msra.mxu0 0.0
  %1087 = vmatpush.msra.mxu0 0.0
  %1088 = vmatpush.msra.mxu0 0.0
  %1089 = vmatpush.msra.mxu0 0.0
  %1090 = vmatpush.msra.mxu0 %v627
  %1091 = vmatpush.msra.mxu0 %v626
  %1092 = vmatpush.msra.mxu0 %v625
  %1093 = vmatpush.msra.mxu0 %v624
  %1094 = vmatmul.f32.gmra.mxu0 %v1076
  %v1095 = vpop.f32.mrf.mxu0
  %v1096 = vadd.f32 %v736, %v1095
  %1097 = vdwg.mxu0
  %v1098 = vadd.f32 %v1096, %v686
  %v1099 = vadd.f32 %v1098, %v718
  %v1100 = vxor.u32 %v1099, 2147483648
  %v1101 = vmul.f32 %v1100, 1.442695
  %v1102 = vpow.pop %v1101
  %v1103 = vadd.f32 %v1102, 1.0
  %v1104 = vrcp.pop %v1103
  %v1105 = vmul.f32 %v1103, %v1104
  %v1106 = vsub.f32 1.0, %v1105
  %v1107 = vmul.f32 %v1104, %v1106
  %v1108 = vadd.f32 %v1104, %v1107
  %vm1109 = vweird.f32 %v1103
  %vm1110 = vweird.f32 %v1104
  %vm1111 = vmor %vm1109, %vm1110
  %v1112 = vsel %vm1111, %v1104, %v1108
  %v1113 = vand.u32 2147483647, %v1103
  %vm1114 = vcmp.eq.f32.partialorder %v1113, 8.507059e+37
  %v1115 = vand.u32 %v1103, 2147483648
  %v1116 = vor.u32 1.1754944e-38, %v1115
  %v1117 = vsel %vm1114, %v1116, %v1112
  %v1118 = vmul.f32 1.0, %v1117
  %v1119 = vtanh.pop %v1099
  %v1120 = vmul.f32 %v1118, %v1063
  %1122 = vrot.lane.b32.xlu0 %v1119, 32
  %v1123 = vpop.permute.xlu0 %1122
  %v1125 = vmul.f32 %v1118, %v1123
  %1127 = vrot.lane.b32.xlu0 %v1125, 32
  %v1128 = vpop.permute.xlu0 %1127
  %v1130 = vadd.f32 %v1120, %v1128
  %v1131 = vtanh.pop %v1130
  %1133 = vrot.lane.b32.xlu0 %v1131, 32
  %v1134 = vpop.permute.xlu0 %1133
  %v1136 = vmul.f32 %v1118, %v1134
  %1138 = vrot.lane.b32.xlu0 %v1136, 64
  %v1139 = vpop.permute.xlu0 %1138
  %1141 = vst.msk [vmem:[#allocation3 + $0x28] sm:$0xff] %vm204, %v1139
  %1142 = vst.msk [vmem:[#allocation3 + $0x10] sm:$0xff] %vm806, %v1139
  %v1143 = vsel %vm738, %v1139, 0
  %1145 = vmatpush.msra.mxu0 0.0
  %1146 = vmatpush.msra.mxu0 0.0
  %1147 = vmatpush.msra.mxu0 0.0
  %1148 = vmatpush.msra.mxu0 0.0
  %1149 = vmatpush.msra.mxu0 0.0
  %1150 = vmatpush.msra.mxu0 0.0
  %1151 = vmatpush.msra.mxu0 0.0
  %1152 = vmatpush.msra.mxu0 0.0
  %1153 = vmatpush.msra.mxu0 0.0
  %1154 = vmatpush.msra.mxu0 0.0
  %1155 = vmatpush.msra.mxu0 0.0
  %1156 = vmatpush.msra.mxu0 0.0
  %1157 = vmatpush.msra.mxu0 %v627
  %1158 = vmatpush.msra.mxu0 %v626
  %1159 = vmatpush.msra.mxu0 %v625
  %1160 = vmatpush.msra.mxu0 %v624
  %1161 = vmatmul.f32.gmra.mxu0 %v1143
  %v1162 = vpop.f32.mrf.mxu0
  %v1163 = vadd.f32 %v736, %v1162
  %1164 = vdwg.mxu0
  %v1165 = vadd.f32 %v1163, %v689
  %v1166 = vadd.f32 %v1165, %v715
  %v1167 = vxor.u32 %v1166, 2147483648
  %v1168 = vmul.f32 %v1167, 1.442695
  %v1169 = vpow.pop %v1168
  %v1170 = vadd.f32 %v1169, 1.0
  %v1171 = vrcp.pop %v1170
  %v1172 = vmul.f32 %v1170, %v1171
  %v1173 = vsub.f32 1.0, %v1172
  %v1174 = vmul.f32 %v1171, %v1173
  %v1175 = vadd.f32 %v1171, %v1174
  %vm1176 = vweird.f32 %v1170
  %vm1177 = vweird.f32 %v1171
  %vm1178 = vmor %vm1176, %vm1177
  %v1179 = vsel %vm1178, %v1171, %v1175
  %v1180 = vand.u32 2147483647, %v1170
  %vm1181 = vcmp.eq.f32.partialorder %v1180, 8.507059e+37
  %v1182 = vand.u32 %v1170, 2147483648
  %v1183 = vor.u32 1.1754944e-38, %v1182
  %v1184 = vsel %vm1181, %v1183, %v1179
  %v1185 = vmul.f32 1.0, %v1184
  %v1186 = vtanh.pop %v1166
  %v1187 = vmul.f32 %v1185, %v1130
  %1189 = vrot.lane.b32.xlu0 %v1186, 32
  %v1190 = vpop.permute.xlu0 %1189
  %v1192 = vmul.f32 %v1185, %v1190
  %1194 = vrot.lane.b32.xlu0 %v1192, 32
  %v1195 = vpop.permute.xlu0 %1194
  %v1197 = vadd.f32 %v1187, %v1195
  %v1198 = vtanh.pop %v1197
  %1200 = vrot.lane.b32.xlu0 %v1198, 32
  %v1201 = vpop.permute.xlu0 %1200
  %v1203 = vmul.f32 %v1185, %v1201
  %1205 = vrot.lane.b32.xlu0 %v1203, 64
  %v1206 = vpop.permute.xlu0 %1205
  %1208 = vst.msk [vmem:[#allocation3 + $0x30] sm:$0xff] %vm204, %v1206
  %1209 = vst.msk [vmem:[#allocation3 + $0x8] sm:$0xff] %vm806, %v1206
  %v1210 = vsel %vm738, %v1206, 0
  %1212 = vmatpush.msra.mxu0 0.0
  %1213 = vmatpush.msra.mxu0 0.0
  %1214 = vmatpush.msra.mxu0 0.0
  %1215 = vmatpush.msra.mxu0 0.0
  %1216 = vmatpush.msra.mxu0 0.0
  %1217 = vmatpush.msra.mxu0 0.0
  %1218 = vmatpush.msra.mxu0 0.0
  %1219 = vmatpush.msra.mxu0 0.0
  %1220 = vmatpush.msra.mxu0 0.0
  %1221 = vmatpush.msra.mxu0 0.0
  %1222 = vmatpush.msra.mxu0 0.0
  %1223 = vmatpush.msra.mxu0 0.0
  %1224 = vmatpush.msra.mxu0 %v627
  %1225 = vmatpush.msra.mxu0 %v626
  %1226 = vmatpush.msra.mxu0 %v625
  %1227 = vmatpush.msra.mxu0 %v624
  %1228 = vmatmul.f32.gmra.mxu0 %v1210
  %v1229 = vpop.f32.mrf.mxu0
  %v1230 = vadd.f32 %v736, %v1229
  %1231 = vdwg.mxu0
  %v1232 = vadd.f32 %v1230, %v692
  %v1233 = vadd.f32 %v1232, %v712
  %v1234 = vxor.u32 %v1233, 2147483648
  %v1235 = vmul.f32 %v1234, 1.442695
  %v1236 = vpow.pop %v1235
  %v1237 = vadd.f32 %v1236, 1.0
  %v1238 = vrcp.pop %v1237
  %v1239 = vmul.f32 %v1237, %v1238
  %v1240 = vsub.f32 1.0, %v1239
  %v1241 = vmul.f32 %v1238, %v1240
  %v1242 = vadd.f32 %v1238, %v1241
  %vm1243 = vweird.f32 %v1237
  %vm1244 = vweird.f32 %v1238
  %vm1245 = vmor %vm1243, %vm1244
  %v1246 = vsel %vm1245, %v1238, %v1242
  %v1247 = vand.u32 2147483647, %v1237
  %vm1248 = vcmp.eq.f32.partialorder %v1247, 8.507059e+37
  %v1249 = vand.u32 %v1237, 2147483648
  %v1250 = vor.u32 1.1754944e-38, %v1249
  %v1251 = vsel %vm1248, %v1250, %v1246
  %v1252 = vmul.f32 1.0, %v1251
  %v1253 = vtanh.pop %v1233
  %v1254 = vmul.f32 %v1252, %v1197
  %1256 = vrot.lane.b32.xlu0 %v1253, 32
  %v1257 = vpop.permute.xlu0 %1256
  %v1259 = vmul.f32 %v1252, %v1257
  %1261 = vrot.lane.b32.xlu0 %v1259, 32
  %v1262 = vpop.permute.xlu0 %1261
  %v1264 = vadd.f32 %v1254, %v1262
  %v1265 = vtanh.pop %v1264
  %1267 = vrot.lane.b32.xlu0 %v1265, 32
  %v1268 = vpop.permute.xlu0 %1267
  %v1270 = vmul.f32 %v1252, %v1268
  %1272 = vrot.lane.b32.xlu0 %v1270, 64
  %v1273 = vpop.permute.xlu0 %1272
  %1275 = vst.msk [vmem:[#allocation3 + $0x38] sm:$0xff] %vm204, %v1273
  %1276 = vst.msk [vmem:[#allocation3] sm:$0xff] %vm806, %v1273
  %v1277 = vld [vmem:[#allocation3] sm:$0xff]
  %v1278 = vld [vmem:[#allocation3 + $0x8] sm:$0xff]
  %v1279 = vld [vmem:[#allocation3 + $0x10] sm:$0xff]
  %v1280 = vld [vmem:[#allocation3 + $0x18] sm:$0xff]
  %v1281 = vld [vmem:[#allocation3 + $0x20] sm:$0xff]
  %v1282 = vld [vmem:[#allocation3 + $0x28] sm:$0xff]
  %v1283 = vld [vmem:[#allocation3 + $0x30] sm:$0xff]
  %v1284 = vld [vmem:[#allocation3 + $0x38] sm:$0xff]
  %v1285 = vld [vmem:[%s8] sm:$0xff]
  %v1286 = vld [vmem:[%s8 + $0x8] sm:$0xff]
  %v1287 = vld [vmem:[%s8 + $0x10] sm:$0xff]
  %v1288 = vld [vmem:[%s8 + $0x18] sm:$0xff]
  %v1289 = vld [vmem:[%s8 + $0x20] sm:$0xff]
  %v1290 = vld [vmem:[%s8 + $0x28] sm:$0xff]
  %v1291 = vld [vmem:[%s8 + $0x30] sm:$0xff]
  %v1292 = vld [vmem:[%s8 + $0x38] sm:$0xff]
  %v1293 = vld [vmem:[%s9] sm:$0xff]
  %v1294 = vld [vmem:[%s9 + $0x8] sm:$0xff]
  %v1295 = vld [vmem:[%s9 + $0x10] sm:$0xff]
  %v1296 = vld [vmem:[%s9 + $0x18] sm:$0xff]
  %v1297 = vld [vmem:[%s10] sm:$0x1]
  %v1299 = vsel %vm738, %v1277, 0
  %v1302 = vsel %vm738, %v1278, 0
  %v1305 = vsel %vm738, %v1279, 0
  %v1308 = vsel %vm738, %v1280, 0
  %v1311 = vsel %vm738, %v1281, 0
  %v1314 = vsel %vm738, %v1282, 0
  %v1317 = vsel %vm738, %v1283, 0
  %v1320 = vsel %vm738, %v1284, 0
  %1322 = vmatpush.msra.mxu0 0.0
  %1323 = vmatpush.msra.mxu0 0.0
  %1324 = vmatpush.msra.mxu0 0.0
  %1325 = vmatpush.msra.mxu0 0.0
  %1326 = vmatpush.msra.mxu0 0.0
  %1327 = vmatpush.msra.mxu0 0.0
  %1328 = vmatpush.msra.mxu0 0.0
  %1329 = vmatpush.msra.mxu0 0.0
  %1330 = vmatpush.msra.mxu0 0.0
  %1331 = vmatpush.msra.mxu0 0.0
  %1332 = vmatpush.msra.mxu0 0.0
  %1333 = vmatpush.msra.mxu0 0.0
  %1334 = vmatpush.msra.mxu0 %v1291
  %1335 = vmatpush.msra.mxu0 %v1289
  %1336 = vmatpush.msra.mxu0 %v1287
  %1337 = vmatpush.msra.mxu0 %v1285
  %1338 = vmatmul.f32.gmra.mxu0 %v1299
  %v1339 = vpop.f32.mrf.mxu0
  %v1340 = vadd.f32 0.0, %v1339
  %1341 = vmatmul.f32.gmra.mxu0 %v1302
  %v1342 = vpop.f32.mrf.mxu0
  %v1343 = vadd.f32 0.0, %v1342
  %1344 = vmatmul.f32.gmra.mxu0 %v1305
  %v1345 = vpop.f32.mrf.mxu0
  %v1346 = vadd.f32 0.0, %v1345
  %1347 = vmatmul.f32.gmra.mxu0 %v1308
  %v1348 = vpop.f32.mrf.mxu0
  %v1349 = vadd.f32 0.0, %v1348
  %1350 = vmatmul.f32.gmra.mxu0 %v1311
  %v1351 = vpop.f32.mrf.mxu0
  %v1352 = vadd.f32 0.0, %v1351
  %1353 = vmatmul.f32.gmra.mxu0 %v1314
  %v1354 = vpop.f32.mrf.mxu0
  %v1355 = vadd.f32 0.0, %v1354
  %1356 = vmatmul.f32.gmra.mxu0 %v1317
  %v1357 = vpop.f32.mrf.mxu0
  %v1358 = vadd.f32 0.0, %v1357
  %1359 = vmatmul.f32.gmra.mxu0 %v1320
  %v1360 = vpop.f32.mrf.mxu0
  %v1361 = vadd.f32 0.0, %v1360
  %1362 = vdwg.mxu0
  %1363 = vmatpush.msra.mxu0 0.0
  %1364 = vmatpush.msra.mxu0 0.0
  %1365 = vmatpush.msra.mxu0 0.0
  %1366 = vmatpush.msra.mxu0 0.0
  %1367 = vmatpush.msra.mxu0 0.0
  %1368 = vmatpush.msra.mxu0 0.0
  %1369 = vmatpush.msra.mxu0 0.0
  %1370 = vmatpush.msra.mxu0 0.0
  %1371 = vmatpush.msra.mxu0 0.0
  %1372 = vmatpush.msra.mxu0 0.0
  %1373 = vmatpush.msra.mxu0 0.0
  %1374 = vmatpush.msra.mxu0 0.0
  %1375 = vmatpush.msra.mxu0 %v1292
  %1376 = vmatpush.msra.mxu0 %v1290
  %1377 = vmatpush.msra.mxu0 %v1288
  %1378 = vmatpush.msra.mxu0 %v1286
  %1379 = vmatmul.f32.gmra.mxu0 %v1299
  %v1380 = vpop.f32.mrf.mxu0
  %v1381 = vadd.f32 0.0, %v1380
  %1382 = vmatmul.f32.gmra.mxu0 %v1302
  %v1383 = vpop.f32.mrf.mxu0
  %v1384 = vadd.f32 0.0, %v1383
  %1385 = vmatmul.f32.gmra.mxu0 %v1305
  %v1386 = vpop.f32.mrf.mxu0
  %v1387 = vadd.f32 0.0, %v1386
  %1388 = vmatmul.f32.gmra.mxu0 %v1308
  %v1389 = vpop.f32.mrf.mxu0
  %v1390 = vadd.f32 0.0, %v1389
  %1391 = vmatmul.f32.gmra.mxu0 %v1311
  %v1392 = vpop.f32.mrf.mxu0
  %v1393 = vadd.f32 0.0, %v1392
  %1394 = vmatmul.f32.gmra.mxu0 %v1314
  %v1395 = vpop.f32.mrf.mxu0
  %v1396 = vadd.f32 0.0, %v1395
  %1397 = vmatmul.f32.gmra.mxu0 %v1317
  %v1398 = vpop.f32.mrf.mxu0
  %v1399 = vadd.f32 0.0, %v1398
  %1400 = vmatmul.f32.gmra.mxu0 %v1320
  %v1401 = vpop.f32.mrf.mxu0
  %v1402 = vadd.f32 0.0, %v1401
  %1403 = vdwg.mxu0
  %v1405 = vperm.slane %v1297, 0
  %1407 = vmatpush.msra.mxu0 0.0
  %1408 = vmatpush.msra.mxu0 0.0
  %1409 = vmatpush.msra.mxu0 0.0
  %1410 = vmatpush.msra.mxu0 0.0
  %1411 = vmatpush.msra.mxu0 0.0
  %1412 = vmatpush.msra.mxu0 0.0
  %1413 = vmatpush.msra.mxu0 0.0
  %1414 = vmatpush.msra.mxu0 0.0
  %1415 = vmatpush.msra.mxu0 0.0
  %1416 = vmatpush.msra.mxu0 0.0
  %1417 = vmatpush.msra.mxu0 0.0
  %1418 = vmatpush.msra.mxu0 0.0
  %1419 = vmatpush.msra.mxu0 %v1296
  %1420 = vmatpush.msra.mxu0 %v1295
  %1421 = vmatpush.msra.mxu0 %v1294
  %1422 = vmatpush.msra.mxu0 %v1293
  %1423 = vmatmul.f32.gmra.mxu0 %v740
  %v1424 = vpop.f32.mrf.mxu0
  %v1425 = vadd.f32 %v1405, %v1424
  %1426 = vdwg.mxu0
  %v1427 = vadd.f32 %v1425, %v1340
  %v1428 = vadd.f32 %v1427, %v1402
  %v1429 = vxor.u32 %v1428, 2147483648
  %v1430 = vmul.f32 %v1429, 1.442695
  %v1431 = vpow.pop %v1430
  %v1432 = vadd.f32 %v1431, 1.0
  %v1433 = vrcp.pop %v1432
  %v1434 = vmul.f32 %v1432, %v1433
  %v1435 = vsub.f32 1.0, %v1434
  %v1436 = vmul.f32 %v1433, %v1435
  %v1437 = vadd.f32 %v1433, %v1436
  %vm1438 = vweird.f32 %v1432
  %vm1439 = vweird.f32 %v1433
  %vm1440 = vmor %vm1438, %vm1439
  %v1441 = vsel %vm1440, %v1433, %v1437
  %v1442 = vand.u32 2147483647, %v1432
  %vm1443 = vcmp.eq.f32.partialorder %v1442, 8.507059e+37
  %v1444 = vand.u32 %v1432, 2147483648
  %v1445 = vor.u32 1.1754944e-38, %v1444
  %v1446 = vsel %vm1443, %v1445, %v1441
  %v1447 = vmul.f32 1.0, %v1446
  %v1448 = vtanh.pop %v1428
  %v1449 = vmul.f32 %v1447, 0.0
  %1451 = vrot.lane.b32.xlu0 %v1448, 32
  %v1452 = vpop.permute.xlu0 %1451
  %v1454 = vmul.f32 %v1447, %v1452
  %1456 = vrot.lane.b32.xlu0 %v1454, 32
  %v1457 = vpop.permute.xlu0 %1456
  %v1459 = vadd.f32 %v1449, %v1457
  %v1460 = vtanh.pop %v1459
  %1462 = vrot.lane.b32.xlu0 %v1460, 32
  %v1463 = vpop.permute.xlu0 %1462
  %v1465 = vmul.f32 %v1447, %v1463
  %1467 = vrot.lane.b32.xlu0 %v1465, 64
  %v1468 = vpop.permute.xlu0 %1467
  %v1469 = vsel %vm738, %v1468, 0
  %1471 = vmatpush.msra.mxu0 0.0
  %1472 = vmatpush.msra.mxu0 0.0
  %1473 = vmatpush.msra.mxu0 0.0
  %1474 = vmatpush.msra.mxu0 0.0
  %1475 = vmatpush.msra.mxu0 0.0
  %1476 = vmatpush.msra.mxu0 0.0
  %1477 = vmatpush.msra.mxu0 0.0
  %1478 = vmatpush.msra.mxu0 0.0
  %1479 = vmatpush.msra.mxu0 0.0
  %1480 = vmatpush.msra.mxu0 0.0
  %1481 = vmatpush.msra.mxu0 0.0
  %1482 = vmatpush.msra.mxu0 0.0
  %1483 = vmatpush.msra.mxu0 %v1296
  %1484 = vmatpush.msra.mxu0 %v1295
  %1485 = vmatpush.msra.mxu0 %v1294
  %1486 = vmatpush.msra.mxu0 %v1293
  %1487 = vmatmul.f32.gmra.mxu0 %v1469
  %v1488 = vpop.f32.mrf.mxu0
  %v1489 = vadd.f32 %v1405, %v1488
  %1490 = vdwg.mxu0
  %v1491 = vadd.f32 %v1489, %v1343
  %v1492 = vadd.f32 %v1491, %v1399
  %v1493 = vxor.u32 %v1492, 2147483648
  %v1494 = vmul.f32 %v1493, 1.442695
  %v1495 = vpow.pop %v1494
  %v1496 = vadd.f32 %v1495, 1.0
  %v1497 = vrcp.pop %v1496
  %v1498 = vmul.f32 %v1496, %v1497
  %v1499 = vsub.f32 1.0, %v1498
  %v1500 = vmul.f32 %v1497, %v1499
  %v1501 = vadd.f32 %v1497, %v1500
  %vm1502 = vweird.f32 %v1496
  %vm1503 = vweird.f32 %v1497
  %vm1504 = vmor %vm1502, %vm1503
  %v1505 = vsel %vm1504, %v1497, %v1501
  %v1506 = vand.u32 2147483647, %v1496
  %vm1507 = vcmp.eq.f32.partialorder %v1506, 8.507059e+37
  %v1508 = vand.u32 %v1496, 2147483648
  %v1509 = vor.u32 1.1754944e-38, %v1508
  %v1510 = vsel %vm1507, %v1509, %v1505
  %v1511 = vmul.f32 1.0, %v1510
  %v1512 = vtanh.pop %v1492
  %v1513 = vmul.f32 %v1511, %v1459
  %1515 = vrot.lane.b32.xlu0 %v1512, 32
  %v1516 = vpop.permute.xlu0 %1515
  %v1518 = vmul.f32 %v1511, %v1516
  %1520 = vrot.lane.b32.xlu0 %v1518, 32
  %v1521 = vpop.permute.xlu0 %1520
  %v1523 = vadd.f32 %v1513, %v1521
  %v1524 = vtanh.pop %v1523
  %1526 = vrot.lane.b32.xlu0 %v1524, 32
  %v1527 = vpop.permute.xlu0 %1526
  %v1529 = vmul.f32 %v1511, %v1527
  %v1530 = vadd.f32 %v1465, %v1529
  %v1531 = vmax.f32 %v1465, %v1529
  %1533 = vrot.lane.b32.xlu0 %v1529, 64
  %v1534 = vpop.permute.xlu0 %1533
  %v1535 = vsel %vm738, %v1534, 0
  %1537 = vmatpush.msra.mxu0 0.0
  %1538 = vmatpush.msra.mxu0 0.0
  %1539 = vmatpush.msra.mxu0 0.0
  %1540 = vmatpush.msra.mxu0 0.0
  %1541 = vmatpush.msra.mxu0 0.0
  %1542 = vmatpush.msra.mxu0 0.0
  %1543 = vmatpush.msra.mxu0 0.0
  %1544 = vmatpush.msra.mxu0 0.0
  %1545 = vmatpush.msra.mxu0 0.0
  %1546 = vmatpush.msra.mxu0 0.0
  %1547 = vmatpush.msra.mxu0 0.0
  %1548 = vmatpush.msra.mxu0 0.0
  %1549 = vmatpush.msra.mxu0 %v1296
  %1550 = vmatpush.msra.mxu0 %v1295
  %1551 = vmatpush.msra.mxu0 %v1294
  %1552 = vmatpush.msra.mxu0 %v1293
  %1553 = vmatmul.f32.gmra.mxu0 %v1535
  %v1554 = vpop.f32.mrf.mxu0
  %v1555 = vadd.f32 %v1405, %v1554
  %1556 = vdwg.mxu0
  %v1557 = vadd.f32 %v1555, %v1346
  %v1558 = vadd.f32 %v1557, %v1396
  %v1559 = vxor.u32 %v1558, 2147483648
  %v1560 = vmul.f32 %v1559, 1.442695
  %v1561 = vpow.pop %v1560
  %v1562 = vadd.f32 %v1561, 1.0
  %v1563 = vrcp.pop %v1562
  %v1564 = vmul.f32 %v1562, %v1563
  %v1565 = vsub.f32 1.0, %v1564
  %v1566 = vmul.f32 %v1563, %v1565
  %v1567 = vadd.f32 %v1563, %v1566
  %vm1568 = vweird.f32 %v1562
  %vm1569 = vweird.f32 %v1563
  %vm1570 = vmor %vm1568, %vm1569
  %v1571 = vsel %vm1570, %v1563, %v1567
  %v1572 = vand.u32 2147483647, %v1562
  %vm1573 = vcmp.eq.f32.partialorder %v1572, 8.507059e+37
  %v1574 = vand.u32 %v1562, 2147483648
  %v1575 = vor.u32 1.1754944e-38, %v1574
  %v1576 = vsel %vm1573, %v1575, %v1571
  %v1577 = vmul.f32 1.0, %v1576
  %v1578 = vtanh.pop %v1558
  %v1579 = vmul.f32 %v1577, %v1523
  %1581 = vrot.lane.b32.xlu0 %v1578, 32
  %v1582 = vpop.permute.xlu0 %1581
  %v1584 = vmul.f32 %v1577, %v1582
  %1586 = vrot.lane.b32.xlu0 %v1584, 32
  %v1587 = vpop.permute.xlu0 %1586
  %v1589 = vadd.f32 %v1579, %v1587
  %v1590 = vtanh.pop %v1589
  %1592 = vrot.lane.b32.xlu0 %v1590, 32
  %v1593 = vpop.permute.xlu0 %1592
  %v1595 = vmul.f32 %v1577, %v1593
  %v1596 = vadd.f32 %v1530, %v1595
  %v1597 = vmax.f32 %v1531, %v1595
  %1599 = vrot.lane.b32.xlu0 %v1595, 64
  %v1600 = vpop.permute.xlu0 %1599
  %v1601 = vsel %vm738, %v1600, 0
  %1603 = vmatpush.msra.mxu0 0.0
  %1604 = vmatpush.msra.mxu0 0.0
  %1605 = vmatpush.msra.mxu0 0.0
  %1606 = vmatpush.msra.mxu0 0.0
  %1607 = vmatpush.msra.mxu0 0.0
  %1608 = vmatpush.msra.mxu0 0.0
  %1609 = vmatpush.msra.mxu0 0.0
  %1610 = vmatpush.msra.mxu0 0.0
  %1611 = vmatpush.msra.mxu0 0.0
  %1612 = vmatpush.msra.mxu0 0.0
  %1613 = vmatpush.msra.mxu0 0.0
  %1614 = vmatpush.msra.mxu0 0.0
  %1615 = vmatpush.msra.mxu0 %v1296
  %1616 = vmatpush.msra.mxu0 %v1295
  %1617 = vmatpush.msra.mxu0 %v1294
  %1618 = vmatpush.msra.mxu0 %v1293
  %1619 = vmatmul.f32.gmra.mxu0 %v1601
  %v1620 = vpop.f32.mrf.mxu0
  %v1621 = vadd.f32 %v1405, %v1620
  %1622 = vdwg.mxu0
  %v1623 = vadd.f32 %v1621, %v1349
  %v1624 = vadd.f32 %v1623, %v1393
  %v1625 = vxor.u32 %v1624, 2147483648
  %v1626 = vmul.f32 %v1625, 1.442695
  %v1627 = vpow.pop %v1626
  %v1628 = vadd.f32 %v1627, 1.0
  %v1629 = vrcp.pop %v1628
  %v1630 = vmul.f32 %v1628, %v1629
  %v1631 = vsub.f32 1.0, %v1630
  %v1632 = vmul.f32 %v1629, %v1631
  %v1633 = vadd.f32 %v1629, %v1632
  %vm1634 = vweird.f32 %v1628
  %vm1635 = vweird.f32 %v1629
  %vm1636 = vmor %vm1634, %vm1635
  %v1637 = vsel %vm1636, %v1629, %v1633
  %v1638 = vand.u32 2147483647, %v1628
  %vm1639 = vcmp.eq.f32.partialorder %v1638, 8.507059e+37
  %v1640 = vand.u32 %v1628, 2147483648
  %v1641 = vor.u32 1.1754944e-38, %v1640
  %v1642 = vsel %vm1639, %v1641, %v1637
  %v1643 = vmul.f32 1.0, %v1642
  %v1644 = vtanh.pop %v1624
  %v1645 = vmul.f32 %v1643, %v1589
  %1647 = vrot.lane.b32.xlu0 %v1644, 32
  %v1648 = vpop.permute.xlu0 %1647
  %v1650 = vmul.f32 %v1643, %v1648
  %1652 = vrot.lane.b32.xlu0 %v1650, 32
  %v1653 = vpop.permute.xlu0 %1652
  %v1655 = vadd.f32 %v1645, %v1653
  %v1656 = vtanh.pop %v1655
  %1658 = vrot.lane.b32.xlu0 %v1656, 32
  %v1659 = vpop.permute.xlu0 %1658
  %v1661 = vmul.f32 %v1643, %v1659
  %v1662 = vadd.f32 %v1596, %v1661
  %v1663 = vmax.f32 %v1597, %v1661
  %1665 = vrot.lane.b32.xlu0 %v1661, 64
  %v1666 = vpop.permute.xlu0 %1665
  %v1667 = vsel %vm738, %v1666, 0
  %1669 = vmatpush.msra.mxu0 0.0
  %1670 = vmatpush.msra.mxu0 0.0
  %1671 = vmatpush.msra.mxu0 0.0
  %1672 = vmatpush.msra.mxu0 0.0
  %1673 = vmatpush.msra.mxu0 0.0
  %1674 = vmatpush.msra.mxu0 0.0
  %1675 = vmatpush.msra.mxu0 0.0
  %1676 = vmatpush.msra.mxu0 0.0
  %1677 = vmatpush.msra.mxu0 0.0
  %1678 = vmatpush.msra.mxu0 0.0
  %1679 = vmatpush.msra.mxu0 0.0
  %1680 = vmatpush.msra.mxu0 0.0
  %1681 = vmatpush.msra.mxu0 %v1296
  %1682 = vmatpush.msra.mxu0 %v1295
  %1683 = vmatpush.msra.mxu0 %v1294
  %1684 = vmatpush.msra.mxu0 %v1293
  %1685 = vmatmul.f32.gmra.mxu0 %v1667
  %v1686 = vpop.f32.mrf.mxu0
  %v1687 = vadd.f32 %v1405, %v1686
  %1688 = vdwg.mxu0
  %v1689 = vadd.f32 %v1687, %v1352
  %v1690 = vadd.f32 %v1689, %v1390
  %v1691 = vxor.u32 %v1690, 2147483648
  %v1692 = vmul.f32 %v1691, 1.442695
  %v1693 = vpow.pop %v1692
  %v1694 = vadd.f32 %v1693, 1.0
  %v1695 = vrcp.pop %v1694
  %v1696 = vmul.f32 %v1694, %v1695
  %v1697 = vsub.f32 1.0, %v1696
  %v1698 = vmul.f32 %v1695, %v1697
  %v1699 = vadd.f32 %v1695, %v1698
  %vm1700 = vweird.f32 %v1694
  %vm1701 = vweird.f32 %v1695
  %vm1702 = vmor %vm1700, %vm1701
  %v1703 = vsel %vm1702, %v1695, %v1699
  %v1704 = vand.u32 2147483647, %v1694
  %vm1705 = vcmp.eq.f32.partialorder %v1704, 8.507059e+37
  %v1706 = vand.u32 %v1694, 2147483648
  %v1707 = vor.u32 1.1754944e-38, %v1706
  %v1708 = vsel %vm1705, %v1707, %v1703
  %v1709 = vmul.f32 1.0, %v1708
  %v1710 = vtanh.pop %v1690
  %v1711 = vmul.f32 %v1709, %v1655
  %1713 = vrot.lane.b32.xlu0 %v1710, 32
  %v1714 = vpop.permute.xlu0 %1713
  %v1716 = vmul.f32 %v1709, %v1714
  %1718 = vrot.lane.b32.xlu0 %v1716, 32
  %v1719 = vpop.permute.xlu0 %1718
  %v1721 = vadd.f32 %v1711, %v1719
  %v1722 = vtanh.pop %v1721
  %1724 = vrot.lane.b32.xlu0 %v1722, 32
  %v1725 = vpop.permute.xlu0 %1724
  %v1727 = vmul.f32 %v1709, %v1725
  %v1728 = vadd.f32 %v1662, %v1727
  %v1729 = vmax.f32 %v1663, %v1727
  %1731 = vrot.lane.b32.xlu0 %v1727, 64
  %v1732 = vpop.permute.xlu0 %1731
  %v1733 = vsel %vm738, %v1732, 0
  %1735 = vmatpush.msra.mxu0 0.0
  %1736 = vmatpush.msra.mxu0 0.0
  %1737 = vmatpush.msra.mxu0 0.0
  %1738 = vmatpush.msra.mxu0 0.0
  %1739 = vmatpush.msra.mxu0 0.0
  %1740 = vmatpush.msra.mxu0 0.0
  %1741 = vmatpush.msra.mxu0 0.0
  %1742 = vmatpush.msra.mxu0 0.0
  %1743 = vmatpush.msra.mxu0 0.0
  %1744 = vmatpush.msra.mxu0 0.0
  %1745 = vmatpush.msra.mxu0 0.0
  %1746 = vmatpush.msra.mxu0 0.0
  %1747 = vmatpush.msra.mxu0 %v1296
  %1748 = vmatpush.msra.mxu0 %v1295
  %1749 = vmatpush.msra.mxu0 %v1294
  %1750 = vmatpush.msra.mxu0 %v1293
  %1751 = vmatmul.f32.gmra.mxu0 %v1733
  %v1752 = vpop.f32.mrf.mxu0
  %v1753 = vadd.f32 %v1405, %v1752
  %1754 = vdwg.mxu0
  %v1755 = vadd.f32 %v1753, %v1355
  %v1756 = vadd.f32 %v1755, %v1387
  %v1757 = vxor.u32 %v1756, 2147483648
  %v1758 = vmul.f32 %v1757, 1.442695
  %v1759 = vpow.pop %v1758
  %v1760 = vadd.f32 %v1759, 1.0
  %v1761 = vrcp.pop %v1760
  %v1762 = vmul.f32 %v1760, %v1761
  %v1763 = vsub.f32 1.0, %v1762
  %v1764 = vmul.f32 %v1761, %v1763
  %v1765 = vadd.f32 %v1761, %v1764
  %vm1766 = vweird.f32 %v1760
  %vm1767 = vweird.f32 %v1761
  %vm1768 = vmor %vm1766, %vm1767
  %v1769 = vsel %vm1768, %v1761, %v1765
  %v1770 = vand.u32 2147483647, %v1760
  %vm1771 = vcmp.eq.f32.partialorder %v1770, 8.507059e+37
  %v1772 = vand.u32 %v1760, 2147483648
  %v1773 = vor.u32 1.1754944e-38, %v1772
  %v1774 = vsel %vm1771, %v1773, %v1769
  %v1775 = vmul.f32 1.0, %v1774
  %v1776 = vtanh.pop %v1756
  %v1777 = vmul.f32 %v1775, %v1721
  %1779 = vrot.lane.b32.xlu0 %v1776, 32
  %v1780 = vpop.permute.xlu0 %1779
  %v1782 = vmul.f32 %v1775, %v1780
  %1784 = vrot.lane.b32.xlu0 %v1782, 32
  %v1785 = vpop.permute.xlu0 %1784
  %v1787 = vadd.f32 %v1777, %v1785
  %v1788 = vtanh.pop %v1787
  %1790 = vrot.lane.b32.xlu0 %v1788, 32
  %v1791 = vpop.permute.xlu0 %1790
  %v1793 = vmul.f32 %v1775, %v1791
  %v1794 = vadd.f32 %v1728, %v1793
  %v1795 = vmax.f32 %v1729, %v1793
  %1797 = vrot.lane.b32.xlu0 %v1793, 64
  %v1798 = vpop.permute.xlu0 %1797
  %v1799 = vsel %vm738, %v1798, 0
  %1801 = vmatpush.msra.mxu0 0.0
  %1802 = vmatpush.msra.mxu0 0.0
  %1803 = vmatpush.msra.mxu0 0.0
  %1804 = vmatpush.msra.mxu0 0.0
  %1805 = vmatpush.msra.mxu0 0.0
  %1806 = vmatpush.msra.mxu0 0.0
  %1807 = vmatpush.msra.mxu0 0.0
  %1808 = vmatpush.msra.mxu0 0.0
  %1809 = vmatpush.msra.mxu0 0.0
  %1810 = vmatpush.msra.mxu0 0.0
  %1811 = vmatpush.msra.mxu0 0.0
  %1812 = vmatpush.msra.mxu0 0.0
  %1813 = vmatpush.msra.mxu0 %v1296
  %1814 = vmatpush.msra.mxu0 %v1295
  %1815 = vmatpush.msra.mxu0 %v1294
  %1816 = vmatpush.msra.mxu0 %v1293
  %1817 = vmatmul.f32.gmra.mxu0 %v1799
  %v1818 = vpop.f32.mrf.mxu0
  %v1819 = vadd.f32 %v1405, %v1818
  %1820 = vdwg.mxu0
  %v1821 = vadd.f32 %v1819, %v1358
  %v1822 = vadd.f32 %v1821, %v1384
  %v1823 = vxor.u32 %v1822, 2147483648
  %v1824 = vmul.f32 %v1823, 1.442695
  %v1825 = vpow.pop %v1824
  %v1826 = vadd.f32 %v1825, 1.0
  %v1827 = vrcp.pop %v1826
  %v1828 = vmul.f32 %v1826, %v1827
  %v1829 = vsub.f32 1.0, %v1828
  %v1830 = vmul.f32 %v1827, %v1829
  %v1831 = vadd.f32 %v1827, %v1830
  %vm1832 = vweird.f32 %v1826
  %vm1833 = vweird.f32 %v1827
  %vm1834 = vmor %vm1832, %vm1833
  %v1835 = vsel %vm1834, %v1827, %v1831
  %v1836 = vand.u32 2147483647, %v1826
  %vm1837 = vcmp.eq.f32.partialorder %v1836, 8.507059e+37
  %v1838 = vand.u32 %v1826, 2147483648
  %v1839 = vor.u32 1.1754944e-38, %v1838
  %v1840 = vsel %vm1837, %v1839, %v1835
  %v1841 = vmul.f32 1.0, %v1840
  %v1842 = vtanh.pop %v1822
  %v1843 = vmul.f32 %v1841, %v1787
  %1845 = vrot.lane.b32.xlu0 %v1842, 32
  %v1846 = vpop.permute.xlu0 %1845
  %v1848 = vmul.f32 %v1841, %v1846
  %1850 = vrot.lane.b32.xlu0 %v1848, 32
  %v1851 = vpop.permute.xlu0 %1850
  %v1853 = vadd.f32 %v1843, %v1851
  %v1854 = vtanh.pop %v1853
  %1856 = vrot.lane.b32.xlu0 %v1854, 32
  %v1857 = vpop.permute.xlu0 %1856
  %v1859 = vmul.f32 %v1841, %v1857
  %v1860 = vadd.f32 %v1794, %v1859
  %v1861 = vmax.f32 %v1795, %v1859
  %1863 = vrot.lane.b32.xlu0 %v1859, 64
  %v1864 = vpop.permute.xlu0 %1863
  %v1865 = vsel %vm738, %v1864, 0
  %1867 = vmatpush.msra.mxu0 0.0
  %1868 = vmatpush.msra.mxu0 0.0
  %1869 = vmatpush.msra.mxu0 0.0
  %1870 = vmatpush.msra.mxu0 0.0
  %1871 = vmatpush.msra.mxu0 0.0
  %1872 = vmatpush.msra.mxu0 0.0
  %1873 = vmatpush.msra.mxu0 0.0
  %1874 = vmatpush.msra.mxu0 0.0
  %1875 = vmatpush.msra.mxu0 0.0
  %1876 = vmatpush.msra.mxu0 0.0
  %1877 = vmatpush.msra.mxu0 0.0
  %1878 = vmatpush.msra.mxu0 0.0
  %1879 = vmatpush.msra.mxu0 %v1296
  %1880 = vmatpush.msra.mxu0 %v1295
  %1881 = vmatpush.msra.mxu0 %v1294
  %1882 = vmatpush.msra.mxu0 %v1293
  %1883 = vmatmul.f32.gmra.mxu0 %v1865
  %v1884 = vpop.f32.mrf.mxu0
  %v1885 = vadd.f32 %v1405, %v1884
  %1886 = vdwg.mxu0
  %v1887 = vadd.f32 %v1885, %v1361
  %v1888 = vadd.f32 %v1887, %v1381
  %v1889 = vxor.u32 %v1888, 2147483648
  %v1890 = vmul.f32 %v1889, 1.442695
  %v1891 = vpow.pop %v1890
  %v1892 = vadd.f32 %v1891, 1.0
  %v1893 = vrcp.pop %v1892
  %v1894 = vmul.f32 %v1892, %v1893
  %v1895 = vsub.f32 1.0, %v1894
  %v1896 = vmul.f32 %v1893, %v1895
  %v1897 = vadd.f32 %v1893, %v1896
  %vm1898 = vweird.f32 %v1892
  %vm1899 = vweird.f32 %v1893
  %vm1900 = vmor %vm1898, %vm1899
  %v1901 = vsel %vm1900, %v1893, %v1897
  %v1902 = vand.u32 2147483647, %v1892
  %vm1903 = vcmp.eq.f32.partialorder %v1902, 8.507059e+37
  %v1904 = vand.u32 %v1892, 2147483648
  %v1905 = vor.u32 1.1754944e-38, %v1904
  %v1906 = vsel %vm1903, %v1905, %v1901
  %v1907 = vmul.f32 1.0, %v1906
  %v1908 = vtanh.pop %v1888
  %v1909 = vmul.f32 %v1907, %v1853
  %1911 = vrot.lane.b32.xlu0 %v1908, 32
  %v1912 = vpop.permute.xlu0 %1911
  %v1914 = vmul.f32 %v1907, %v1912
  %1916 = vrot.lane.b32.xlu0 %v1914, 32
  %v1917 = vpop.permute.xlu0 %1916
  %v1919 = vadd.f32 %v1909, %v1917
  %v1920 = vtanh.pop %v1919
  %1922 = vrot.lane.b32.xlu0 %v1920, 32
  %v1923 = vpop.permute.xlu0 %1922
  %v1925 = vmul.f32 %v1907, %v1923
  %v1926 = vadd.f32 %v1860, %v1925
  %v1927 = vmax.f32 %v1861, %v1925
  %v1928 = vmul.f32 %v1926, 0.125
  %v1929 = vmul.f32 %v1927, 0.6
  %v1930 = vmul.f32 %v1928, 0.4
  %v1931 = vadd.f32 %v1929, %v1930
  %1933 = vrot.lane.b32.xlu0 %v1931, 64
  %v1934 = vpop.permute.xlu0 %1933
  %1937 = vrot.lane.b32.xlu0 %v1927, 96
  %v1938 = vpop.permute.xlu0 %1937
  %v1940 = vsel %vm738, %v1934, %v1938
  %v1941 = vld [vmem:[%s11] sm:$0xff]
  %v1942 = vld [vmem:[%s12] sm:$0xff]
  %v1943 = vld [vmem:[%s12 + $0x8] sm:$0xff]
  %v1944 = vld [vmem:[%s12 + $0x10] sm:$0x1]
  %v1945 = vld [vmem:[%s13] sm:$0x1]
  %v1947 = vperm.slane %v1945, 0
  %vm1949 = vcmask 138240
  %v1951 = vsel %vm1949, %v1941, 0
  %vm1953 = vcmask 1040384
  %v1955 = vsel %vm1953, %v1944, 0
  %1957 = vmatpush.msra.mxu0 0.0
  %1958 = vmatpush.msra.mxu0 0.0
  %1959 = vmatpush.msra.mxu0 0.0
  %1960 = vmatpush.msra.mxu0 0.0
  %1961 = vmatpush.msra.mxu0 0.0
  %1962 = vmatpush.msra.mxu0 0.0
  %1963 = vmatpush.msra.mxu0 0.0
  %1964 = vmatpush.msra.mxu0 0.0
  %1965 = vmatpush.msra.mxu0 0.0
  %1966 = vmatpush.msra.mxu0 0.0
  %1967 = vmatpush.msra.mxu0 0.0
  %1968 = vmatpush.msra.mxu0 0.0
  %1969 = vmatpush.msra.mxu0 0.0
  %1970 = vmatpush.msra.mxu0 %v1955
  %1971 = vmatpush.msra.mxu0 %v1943
  %1972 = vmatpush.msra.mxu0 %v1942
  %1973 = vmatmul.f32.gmra.mxu0 %v1951
  %v1974 = vpop.f32.mrf.mxu0
  %v1975 = vadd.f32 %v1947, %v1974
  %1976 = vdwg.mxu0
  %v1977 = vld [vmem:[%s14] sm:$0x1]
  %v1978 = vld [vmem:[%s15] sm:$0x1]
  %v1979 = vsel %vm204, %v1975, 0.0
  %1980 = vadd.xlane.f32.xlu0 %v1979
  %v1981 = vpop.xlane.xlu0 %1980
  %v1982 = vrcp.pop 16.0
  %v1983 = vmul.f32 16.0, %v1982
  %v1984 = vsub.f32 1.0, %v1983
  %v1985 = vmul.f32 %v1982, %v1984
  %v1986 = vadd.f32 %v1982, %v1985
  %vm1987 = vweird.f32 %v1982
  %v1988 = vsel %vm1987, %v1982, %v1986
  %v1989 = vmul.f32 %v1981, %v1988
  %v1990 = vsub.f32 %v1975, %v1989
  %v1991 = vmul.f32 %v1990, %v1990
  %v1992 = vsel %vm204, %v1991, 0.0
  %1993 = vadd.xlane.f32.xlu0 %v1992
  %v1994 = vpop.xlane.xlu0 %1993
  %v1995 = vmul.f32 %v1994, %v1988
  %v1996 = vadd.f32 %v1995, 1e-05
  %v1997 = vrsqrt.pop %v1996
  %v1998 = vmul.f32 %v1997, %v1996
  %v1999 = vmul.f32 %v1998, %v1997
  %v2000 = vmul.f32 0.5, %v1999
  %v2001 = vsub.f32 1.5, %v2000
  %v2002 = vmul.f32 %v1997, %v2001
  %vm2003 = vweird.f32 %v1996
  %vm2004 = vweird.f32 %v1997
  %vm2005 = vmor %vm2003, %vm2004
  %v2006 = vsel %vm2005, %v1997, %v2002
  %v2007 = vmul.f32 %v1990, %v2006
  %v2009 = vperm.slane %v1977, 0
  %v2011 = vmul.f32 %v2007, %v2009
  %v2013 = vperm.slane %v1978, 0
  %v2015 = vadd.f32 %v2011, %v2013
  %v2016 = vmax.f32 %v2015, 0.0
  %v2017 = vld [vmem:[%s16] sm:$0xff]
  %v2018 = vld [vmem:[%s16 + $0x8] sm:$0xff]
  %v2019 = vld [vmem:[%s17] sm:$0x1]
  %v2021 = vperm.slane %v2019, 0
  %v2024 = vsel %vm204, %v2016, 0
  %2026 = vmatpush.msra.mxu0 0.0
  %2027 = vmatpush.msra.mxu0 0.0
  %2028 = vmatpush.msra.mxu0 0.0
  %2029 = vmatpush.msra.mxu0 0.0
  %2030 = vmatpush.msra.mxu0 0.0
  %2031 = vmatpush.msra.mxu0 0.0
  %2032 = vmatpush.msra.mxu0 0.0
  %2033 = vmatpush.msra.mxu0 0.0
  %2034 = vmatpush.msra.mxu0 0.0
  %2035 = vmatpush.msra.mxu0 0.0
  %2036 = vmatpush.msra.mxu0 0.0
  %2037 = vmatpush.msra.mxu0 0.0
  %2038 = vmatpush.msra.mxu0 0.0
  %2039 = vmatpush.msra.mxu0 0.0
  %2040 = vmatpush.msra.mxu0 %v2018
  %2041 = vmatpush.msra.mxu0 %v2017
  %2042 = vmatmul.f32.gmra.mxu0 %v2024
  %v2043 = vpop.f32.mrf.mxu0
  %v2044 = vadd.f32 %v2021, %v2043
  %2045 = vdwg.mxu0
  %v2046 = vld [vmem:[%s18] sm:$0xff]
  %v2047 = vld [vmem:[%s18 + $0x8] sm:$0xff]
  %v2048 = vld [vmem:[%s18 + $0x10] sm:$0xff]
  %v2049 = vld [vmem:[%s18 + $0x18] sm:$0xff]
  %v2050 = vld [vmem:[%s18 + $0x20] sm:$0xff]
  %v2051 = vld [vmem:[%s18 + $0x28] sm:$0xff]
  %v2052 = vld [vmem:[%s18 + $0x30] sm:$0xff]
  %v2053 = vld [vmem:[%s18 + $0x38] sm:$0xff]
  %v2054 = vld [vmem:[%s18 + $0x40] sm:$0xff]
  %v2055 = vld [vmem:[%s18 + $0x48] sm:$0xff]
  %v2056 = vld [vmem:[%s18 + $0x50] sm:$0xff]
  %v2057 = vld [vmem:[%s18 + $0x58] sm:$0xff]
  %v2059 = vsel %vm738, %v2044, 0
  %2061 = vmatpush.msra.mxu0 0.0
  %2062 = vmatpush.msra.mxu0 0.0
  %2063 = vmatpush.msra.mxu0 0.0
  %2064 = vmatpush.msra.mxu0 0.0
  %2065 = vmatpush.msra.mxu0 0.0
  %2066 = vmatpush.msra.mxu0 0.0
  %2067 = vmatpush.msra.mxu0 0.0
  %2068 = vmatpush.msra.mxu0 0.0
  %2069 = vmatpush.msra.mxu0 0.0
  %2070 = vmatpush.msra.mxu0 0.0
  %2071 = vmatpush.msra.mxu0 0.0
  %2072 = vmatpush.msra.mxu0 0.0
  %2073 = vmatpush.msra.mxu0 %v2057
  %2074 = vmatpush.msra.mxu0 %v2056
  %2075 = vmatpush.msra.mxu0 %v2055
  %2076 = vmatpush.msra.mxu0 %v2054
  %2077 = vmatmul.f32.gmra.mxu0 %v2059
  %v2078 = vpop.f32.mrf.mxu0
  %v2079 = vadd.f32 0.0, %v2078
  %2080 = vdwg.mxu0
  %vm2081 = vcmask 523264
  %v2083 = vsel %vm2081, %v1940, 0
  %2085 = vmatpush.msra.mxu0 0.0
  %2086 = vmatpush.msra.mxu0 0.0
  %2087 = vmatpush.msra.mxu0 0.0
  %2088 = vmatpush.msra.mxu0 0.0
  %2089 = vmatpush.msra.mxu0 0.0
  %2090 = vmatpush.msra.mxu0 0.0
  %2091 = vmatpush.msra.mxu0 0.0
  %2092 = vmatpush.msra.mxu0 0.0
  %2093 = vmatpush.msra.mxu0 %v2053
  %2094 = vmatpush.msra.mxu0 %v2052
  %2095 = vmatpush.msra.mxu0 %v2051
  %2096 = vmatpush.msra.mxu0 %v2050
  %2097 = vmatpush.msra.mxu0 %v2049
  %2098 = vmatpush.msra.mxu0 %v2048
  %2099 = vmatpush.msra.mxu0 %v2047
  %2100 = vmatpush.msra.mxu0 %v2046
  %2101 = vmatmul.f32.gmra.mxu0 %v2083
  %v2102 = vpop.f32.mrf.mxu0
  %v2103 = vadd.f32 %v2079, %v2102
  %2104 = vdwg.mxu0
  %v2105 = vld [vmem:[%s19] sm:$0x1]
  %v2107 = vperm.slane %v2105, 0
  %v2109 = vadd.f32 %v2103, %v2107
  %v2110 = vld [vmem:[%s20] sm:$0x1]
  %v2111 = vld [vmem:[%s21] sm:$0x1]
  %v2112 = vsel %vm738, %v2109, 0.0
  %2113 = vadd.xlane.f32.xlu0 %v2112
  %v2114 = vpop.xlane.xlu0 %2113
  %v2115 = vrcp.pop 32.0
  %v2116 = vmul.f32 32.0, %v2115
  %v2117 = vsub.f32 1.0, %v2116
  %v2118 = vmul.f32 %v2115, %v2117
  %v2119 = vadd.f32 %v2115, %v2118
  %vm2120 = vweird.f32 %v2115
  %v2121 = vsel %vm2120, %v2115, %v2119
  %v2122 = vmul.f32 %v2114, %v2121
  %v2123 = vsub.f32 %v2109, %v2122
  %v2124 = vmul.f32 %v2123, %v2123
  %v2125 = vsel %vm738, %v2124, 0.0
  %2126 = vadd.xlane.f32.xlu0 %v2125
  %v2127 = vpop.xlane.xlu0 %2126
  %v2128 = vmul.f32 %v2127, %v2121
  %v2129 = vadd.f32 %v2128, 1e-05
  %v2130 = vrsqrt.pop %v2129
  %v2131 = vmul.f32 %v2130, %v2129
  %v2132 = vmul.f32 %v2131, %v2130
  %v2133 = vmul.f32 0.5, %v2132
  %v2134 = vsub.f32 1.5, %v2133
  %v2135 = vmul.f32 %v2130, %v2134
  %vm2136 = vweird.f32 %v2129
  %vm2137 = vweird.f32 %v2130
  %vm2138 = vmor %vm2136, %vm2137
  %v2139 = vsel %vm2138, %v2130, %v2135
  %v2140 = vmul.f32 %v2123, %v2139
  %v2142 = vperm.slane %v2110, 0
  %v2144 = vmul.f32 %v2140, %v2142
  %v2146 = vperm.slane %v2111, 0
  %v2148 = vadd.f32 %v2144, %v2146
  %v2149 = vmax.f32 %v2148, 0.0
  %v2150 = vld [vmem:[%s22] sm:$0xff]
  %v2151 = vld [vmem:[%s22 + $0x8] sm:$0xff]
  %v2152 = vld [vmem:[%s22 + $0x10] sm:$0xff]
  %v2153 = vld [vmem:[%s22 + $0x18] sm:$0xff]
  %v2154 = vld [vmem:[%s23] sm:$0x1]
  %v2156 = vperm.slane %v2154, 0
  %v2159 = vsel %vm738, %v2149, 0
  %2161 = vmatpush.msra.mxu0 0.0
  %2162 = vmatpush.msra.mxu0 0.0
  %2163 = vmatpush.msra.mxu0 0.0
  %2164 = vmatpush.msra.mxu0 0.0
  %2165 = vmatpush.msra.mxu0 0.0
  %2166 = vmatpush.msra.mxu0 0.0
  %2167 = vmatpush.msra.mxu0 0.0
  %2168 = vmatpush.msra.mxu0 0.0
  %2169 = vmatpush.msra.mxu0 0.0
  %2170 = vmatpush.msra.mxu0 0.0
  %2171 = vmatpush.msra.mxu0 0.0
  %2172 = vmatpush.msra.mxu0 0.0
  %2173 = vmatpush.msra.mxu0 %v2153
  %2174 = vmatpush.msra.mxu0 %v2152
  %2175 = vmatpush.msra.mxu0 %v2151
  %2176 = vmatpush.msra.mxu0 %v2150
  %2177 = vmatmul.f32.gmra.mxu0 %v2159
  %v2178 = vpop.f32.mrf.mxu0
  %v2179 = vadd.f32 %v2156, %v2178
  %2180 = vdwg.mxu0
  %v2181 = vld [vmem:[%s24] sm:$0x1]
  %v2182 = vld [vmem:[%s25] sm:$0x1]
  %v2183 = vsel %vm204, %v2179, 0.0
  %2184 = vadd.xlane.f32.xlu0 %v2183
  %v2185 = vpop.xlane.xlu0 %2184
  %v2186 = vmul.f32 %v2185, %v1988
  %v2187 = vsub.f32 %v2179, %v2186
  %v2188 = vmul.f32 %v2187, %v2187
  %v2189 = vsel %vm204, %v2188, 0.0
  %2190 = vadd.xlane.f32.xlu0 %v2189
  %v2191 = vpop.xlane.xlu0 %2190
  %v2192 = vmul.f32 %v2191, %v1988
  %v2193 = vadd.f32 %v2192, 1e-05
  %v2194 = vrsqrt.pop %v2193
  %v2195 = vmul.f32 %v2194, %v2193
  %v2196 = vmul.f32 %v2195, %v2194
  %v2197 = vmul.f32 0.5, %v2196
  %v2198 = vsub.f32 1.5, %v2197
  %v2199 = vmul.f32 %v2194, %v2198
  %vm2200 = vweird.f32 %v2193
  %vm2201 = vweird.f32 %v2194
  %vm2202 = vmor %vm2200, %vm2201
  %v2203 = vsel %vm2202, %v2194, %v2199
  %v2204 = vmul.f32 %v2187, %v2203
  %v2206 = vperm.slane %v2181, 0
  %v2208 = vmul.f32 %v2204, %v2206
  %v2210 = vperm.slane %v2182, 0
  %v2212 = vadd.f32 %v2208, %v2210
  %v2213 = vmax.f32 %v2212, 0.0
  %v2214 = vld [vmem:[%s26] sm:$0xff]
  %v2215 = vld [vmem:[%s26 + $0x8] sm:$0xff]
  %v2216 = vld [vmem:[%s27] sm:$0x1]
  %v2218 = vperm.slane %v2216, 0
  %v2221 = vsel %vm204, %v2213, 0
  %2223 = vmatpush.msra.mxu0 0.0
  %2224 = vmatpush.msra.mxu0 0.0
  %2225 = vmatpush.msra.mxu0 0.0
  %2226 = vmatpush.msra.mxu0 0.0
  %2227 = vmatpush.msra.mxu0 0.0
  %2228 = vmatpush.msra.mxu0 0.0
  %2229 = vmatpush.msra.mxu0 0.0
  %2230 = vmatpush.msra.mxu0 0.0
  %2231 = vmatpush.msra.mxu0 0.0
  %2232 = vmatpush.msra.mxu0 0.0
  %2233 = vmatpush.msra.mxu0 0.0
  %2234 = vmatpush.msra.mxu0 0.0
  %2235 = vmatpush.msra.mxu0 0.0
  %2236 = vmatpush.msra.mxu0 0.0
  %2237 = vmatpush.msra.mxu0 %v2215
  %2238 = vmatpush.msra.mxu0 %v2214
  %2239 = vmatmul.f32.gmra.mxu0 %v2221
  %v2240 = vpop.f32.mrf.mxu0
  %v2241 = vadd.f32 %v2218, %v2240
  %2242 = vdwg.mxu0
  %vm2243 = vcmask 15360
  %2244 = vst.msk [vmem:[%s28] sm:$0xff] %vm2243, %v2241
  // Predicated region
  $region114: #{forward.1} parent=0 // pred_check
    _
  $region115: #{forward.1} parent=0 // pred_check_branch
    %2246 = sbr.rel (0) target = $region117
  $region116: #{forward.1} parent=0 // pred_region
    _
  $region117: #{forward.1} parent=0 // pred_fallthru
    _
  // Predicated region
  $region118: #{forward.1} parent=0 // pred_check
    _
  $region119: #{forward.1} parent=0 // pred_check_branch
    %2248 = sbr.rel (0) target = $region121
  $region120: #{forward.1} parent=0 // pred_region
    _
  $region121: #{forward.1} parent=0 // pred_fallthru
    _

</llo_original>
